<compile_context>
chip_gen: v7x
topology: tpu7x:2x2x1
jax: 0.10.0
libtpu: 0.0.40
codegen_flags: <defaults>
</compile_context>

<pallas_src>
import functools

import jax
import jax.numpy as jnp
from jax import lax
from jax.experimental import pallas as pl
from jax.experimental.pallas import tpu as pltpu


def _round_up(x, m):
    return (x + m - 1) // m * m


# ----------------------------------------------------------------------------
# Pallas kernel: one batch element of ConvTranspose3d(k=3, s=1, p=0) + BN + ReLU
# ----------------------------------------------------------------------------
def _deconv3d_bn_relu_kernel(x_ref, w_ref, scale_ref, shift_ref, o_ref, col_ref,
                             *, cin_pad, wp, hp, n_cols):
    # x_ref:     (1, Cin_pad, S_flat)   zero-padded, channel-major, spatially-flat input
    # w_ref:     (Cout, 27*Cin_pad)     packed, spatially-flipped deconv weights (bf16)
    # scale_ref: (Cout, 1)              folded BN scale = gamma / sqrt(var + eps)
    # shift_ref: (Cout, 1)              folded BN shift = beta - mean * scale
    # o_ref:     (1, Cout, n_cols)      lane-dense output slab (padded column strides)
    # col_ref:   VMEM (27*Cin_pad, n_cols) K-major im2col scratch (bf16)
    hpwp = hp * wp
    # K-major im2col: every tap is a CONTIGUOUS lane slice of the flat padded activation,
    # written to a sublane-aligned (cin_pad x n_cols) slab of the col matrix.
    for kd in range(3):
        for kh in range(3):
            for kw in range(3):
                t = (kd * 3 + kh) * 3 + kw
                base = kd * hpwp + kh * wp + kw          # static offset
                col_ref[t * cin_pad:(t + 1) * cin_pad, :] = \
                    x_ref[0, :, base:base + n_cols]

    # Single big-K MXU matmul, bf16 operands, f32 accumulation.
    acc = jnp.dot(w_ref[...], col_ref[...], preferred_element_type=jnp.float32)

    # Folded BN affine + ReLU in f32; (Cout, n_cols) store is fully lane-dense.
    o_ref[0] = jnp.maximum(acc * scale_ref[...] + shift_ref[...], 0.0)


# ----------------------------------------------------------------------------
# Host-side packing (done once)
# ----------------------------------------------------------------------------
def pack_deconv_weight(w, cin_pad=16, dtype=jnp.bfloat16):
    """PyTorch ConvTranspose3d weight (Cin, Cout, 3, 3, 3) -> (Cout, 27*cin_pad).

    ConvTranspose(stride=1, pad=0) == full correlation with the spatially flipped
    kernel.  K ordering is (kd, kh, kw, ci) with ci zero-padded to cin_pad, matching the
    kernel's K-major im2col layout.  Cast to bf16 (MXU-native on v5e/v6e/v7x).
    """
    cin, cout = w.shape[0], w.shape[1]
    w_flip = w[:, :, ::-1, ::-1, ::-1]
    w_t = jnp.transpose(w_flip, (2, 3, 4, 0, 1))                 # (kd, kh, kw, ci, co)
    w_t = jnp.pad(w_t, ((0, 0), (0, 0), (0, 0), (0, cin_pad - cin), (0, 0)))
    return jnp.transpose(w_t.reshape(27 * cin_pad, cout), (1, 0)).astype(dtype)


def _prep_input(x_ncdhw, cin_pad, s_pad, dtype=jnp.bfloat16):
    """NCDHW -> (B, Cin_pad, S_flat): zero-pad channels to cin_pad, spatial by 2 (full
    conv halo), flatten spatial, zero-pad the flat axis to s_pad.  One fused XLA pad --
    no per-grid-step memset / masked interior copy inside the kernel."""
    B, Cin, D, H, W = x_ncdhw.shape
    xp = jnp.pad(x_ncdhw, ((0, 0), (0, cin_pad - Cin), (2, 2), (2, 2), (2, 2)))
    xp = xp.reshape(B, cin_pad, (D + 4) * (H + 4) * (W + 4))
    xp = jnp.pad(xp, ((0, 0), (0, 0), (0, s_pad - xp.shape[-1])))
    return xp.astype(dtype)


# ----------------------------------------------------------------------------
# Wrapper
# ----------------------------------------------------------------------------
def deconv3d_bn_relu(x_ncdhw, w_packed, scale, shift):
    """Deconv3d.forward (defaults: k=3, stride=1, bn=True, relu=True). NCDHW in/out."""
    # TODO(synk): stride=2 (zero-insertion upsampling) path of the module is not implemented.
    B, Cin, D, H, W = x_ncdhw.shape
    Cout, K = w_packed.shape
    cin_pad = K // 27
    Dp, Hp, Wp = D + 4, H + 4, W + 4                 # full-conv halo (2 each side)
    Do, Ho, Wo = D + 2, H + 2, W + 2                 # ConvTranspose3d(k=3,s=1,p=0) output
    n_cols = _round_up(Do * Hp * Wp, 128)            # padded-stride output columns, lane-dense
    base_max = 2 * Hp * Wp + 2 * Wp + 2
    s_pad = _round_up(base_max + n_cols, 128)        # flat input length incl. tap headroom

    x_flat = _prep_input(x_ncdhw, cin_pad, s_pad)
    scale2 = scale.reshape(Cout, 1).astype(jnp.float32)
    shift2 = shift.reshape(Cout, 1).astype(jnp.float32)

    kernel = functools.partial(_deconv3d_bn_relu_kernel,
                               cin_pad=cin_pad, wp=Wp, hp=Hp, n_cols=n_cols)

    out = pl.pallas_call(
        kernel,
        grid=(B,),
        in_specs=[
            pl.BlockSpec((1, cin_pad, s_pad), lambda b: (b, 0, 0)),
            pl.BlockSpec((Cout, K), lambda b: (0, 0)),
            pl.BlockSpec((Cout, 1), lambda b: (0, 0)),
            pl.BlockSpec((Cout, 1), lambda b: (0, 0)),
        ],
        out_specs=pl.BlockSpec((1, Cout, n_cols), lambda b: (b, 0, 0)),
        out_shape=jax.ShapeDtypeStruct((B, Cout, n_cols), jnp.float32),
        scratch_shapes=[pltpu.VMEM((K, n_cols), jnp.bfloat16)],   # K-major im2col
        compiler_params=pltpu.CompilerParams(
            dimension_semantics=("parallel",),        # batch -> both TCs on v7x
            vmem_limit_bytes=32 * 1024 * 1024),       # explicit (v5e default is only 16 MiB)
    )(x_flat, w_packed, scale2, shift2)

    # Columns use padded strides (Hp*Wp, Wp, 1); slice the valid (Do, Ho, Wo) positions.
    out = out[:, :, :Do * Hp * Wp].reshape(B, Cout, Do, Hp, Wp)
    return out[:, :, :, :Ho, :Wo]                     # NCDHW, no transpose needed


def init_deconv3d_params(key, cin, cout, eps=1e-5):
    """Deterministic synthetic parameters: ConvTranspose3d weight + folded BN."""
    kw_, kg, kb, km, kv = jax.random.split(key, 5)
    w = 0.1 * jax.random.normal(kw_, (cin, cout, 3, 3, 3), jnp.float32)  # torch layout
    gamma = 1.0 + 0.1 * jax.random.normal(kg, (cout,), jnp.float32)
    beta = 0.1 * jax.random.normal(kb, (cout,), jnp.float32)
    mean = 0.1 * jax.random.normal(km, (cout,), jnp.float32)
    var = jnp.abs(jax.random.normal(kv, (cout,), jnp.float32)) + 0.5
    scale = gamma / jnp.sqrt(var + eps)     # folded BN (inference / running stats)
    shift = beta - mean * scale
    return w, scale, shift


# ----------------------------------------------------------------------------
# Pure-JAX reference (correctness check)
# ----------------------------------------------------------------------------
def _ref_deconv3d_bn_relu(x, w, scale, shift):
    # ConvTranspose3d(k=3, s=1, p=0) == conv with flipped kernel and full (2,2) padding.
    w_conv = jnp.transpose(w[:, :, ::-1, ::-1, ::-1], (1, 0, 2, 3, 4))  # (Cout,Cin,3,3,3)
    y = lax.conv_general_dilated(
        x, w_conv, window_strides=(1, 1, 1), padding=[(2, 2)] * 3,
        dimension_numbers=("NCDHW", "OIDHW", "NCDHW"),
        precision=lax.Precision.HIGHEST)
    y = y * scale.reshape(1, -1, 1, 1, 1) + shift.reshape(1, -1, 1, 1, 1)
    return jnp.maximum(y, 0.0)


if __name__ == "__main__":
    key = jax.random.PRNGKey(0)
    k_x, k_p = jax.random.split(key)

    B, Cin, Cout, D, H, W = 2, 4, 32, 6, 6, 6
    x = jax.random.normal(k_x, (B, Cin, D, H, W), jnp.float32)   # NCDHW
    w, scale, shift = init_deconv3d_params(k_p, Cin, Cout)
    w_packed = pack_deconv_weight(w)                              # host-side, once

    out = jax.jit(deconv3d_bn_relu)(x, w_packed, scale, shift)
    out = jax.block_until_ready(out)
    assert out.shape == (B, Cout, D + 2, H + 2, W + 2) and out.dtype == jnp.float32

    ref = jax.block_until_ready(_ref_deconv3d_bn_relu(x, w, scale, shift))
    err = float(jnp.max(jnp.abs(out - ref)))
    # bf16 operands with f32 accumulation over K=108 -> tolerance loosened vs f32 run.
    assert jnp.allclose(out, ref, atol=3e-2, rtol=3e-2), err

    print("KERNEL_OK")
</pallas_src>

<mosaic_0001>
module attributes {stable_mosaic.version = 11 : i64} {
  func.func @_deconv3d_bn_relu_kernel(%arg0: i32, %arg1: memref<1x16x1152xbf16, #tpu.memory_space<vmem>>, %arg2: memref<32x432xbf16, #tpu.memory_space<vmem>>, %arg3: memref<32x1xf32, #tpu.memory_space<vmem>>, %arg4: memref<32x1xf32, #tpu.memory_space<vmem>>, %arg5: memref<1x32x896xf32, #tpu.memory_space<vmem>>, %arg6: memref<432x896xbf16, #tpu.memory_space<vmem>>) attributes {dimension_semantics = [#tpu.dimension_semantics<parallel>], iteration_bounds = array<i64: 2>, scalar_prefetch = 0 : i64, scratch_operands = 1 : i64, tpu.core_type = #tpu.core_type<tc>, window_params = [{transform_indices = @transform_0, window_bounds = array<i64: 1, 16, 1152>}, {pipeline_mode = #tpu.pipeline_mode<synchronous>, transform_indices = @transform_1, window_bounds = array<i64: 32, 432>}, {pipeline_mode = #tpu.pipeline_mode<synchronous>, transform_indices = @transform_2, window_bounds = array<i64: 32, 1>}, {pipeline_mode = #tpu.pipeline_mode<synchronous>, transform_indices = @transform_3, window_bounds = array<i64: 32, 1>}, {transform_indices = @transform_4, window_bounds = array<i64: 1, 32, 896>}]} {
    %c0 = arith.constant 0 : index
    %c0_0 = arith.constant 0 : index
    %c0_1 = arith.constant 0 : index
    %0 = vector.load %arg1[%c0, %c0_0, %c0_1] : memref<1x16x1152xbf16, #tpu.memory_space<vmem>>, vector<1x16x896xbf16>
    %1 = vector.shape_cast %0 : vector<1x16x896xbf16> to vector<16x896xbf16>
    %c0_2 = arith.constant 0 : index
    %c0_3 = arith.constant 0 : index
    %2 = vector.load %arg6[%c0_2, %c0_3] : memref<432x896xbf16, #tpu.memory_space<vmem>>, vector<16x896xbf16>
    tpu.vector_store %arg6[%c0_2, %c0_3], %1 {strides = array<i32>} : memref<432x896xbf16, #tpu.memory_space<vmem>>, vector<16x896xbf16>,
    %c0_4 = arith.constant 0 : index
    %c0_5 = arith.constant 0 : index
    %c1 = arith.constant 1 : index
    %3 = vector.load %arg1[%c0_4, %c0_5, %c1] : memref<1x16x1152xbf16, #tpu.memory_space<vmem>>, vector<1x16x896xbf16>
    %4 = vector.shape_cast %3 : vector<1x16x896xbf16> to vector<16x896xbf16>
    %c16 = arith.constant 16 : index
    %c0_6 = arith.constant 0 : index
    %5 = vector.load %arg6[%c16, %c0_6] : memref<432x896xbf16, #tpu.memory_space<vmem>>, vector<16x896xbf16>
    tpu.vector_store %arg6[%c16, %c0_6], %4 {strides = array<i32>} : memref<432x896xbf16, #tpu.memory_space<vmem>>, vector<16x896xbf16>,
    %c0_7 = arith.constant 0 : index
    %c0_8 = arith.constant 0 : index
    %c2 = arith.constant 2 : index
    %6 = vector.load %arg1[%c0_7, %c0_8, %c2] : memref<1x16x1152xbf16, #tpu.memory_space<vmem>>, vector<1x16x896xbf16>
    %7 = vector.shape_cast %6 : vector<1x16x896xbf16> to vector<16x896xbf16>
    %c32 = arith.constant 32 : index
    %c0_9 = arith.constant 0 : index
    %8 = vector.load %arg6[%c32, %c0_9] : memref<432x896xbf16, #tpu.memory_space<vmem>>, vector<16x896xbf16>
    tpu.vector_store %arg6[%c32, %c0_9], %7 {strides = array<i32>} : memref<432x896xbf16, #tpu.memory_space<vmem>>, vector<16x896xbf16>,
    %c0_10 = arith.constant 0 : index
    %c0_11 = arith.constant 0 : index
    %c10 = arith.constant 10 : index
    %9 = vector.load %arg1[%c0_10, %c0_11, %c10] : memref<1x16x1152xbf16, #tpu.memory_space<vmem>>, vector<1x16x896xbf16>
    %10 = vector.shape_cast %9 : vector<1x16x896xbf16> to vector<16x896xbf16>
    %c48 = arith.constant 48 : index
    %c0_12 = arith.constant 0 : index
    %11 = vector.load %arg6[%c48, %c0_12] : memref<432x896xbf16, #tpu.memory_space<vmem>>, vector<16x896xbf16>
    tpu.vector_store %arg6[%c48, %c0_12], %10 {strides = array<i32>} : memref<432x896xbf16, #tpu.memory_space<vmem>>, vector<16x896xbf16>,
    %c0_13 = arith.constant 0 : index
    %c0_14 = arith.constant 0 : index
    %c11 = arith.constant 11 : index
    %12 = vector.load %arg1[%c0_13, %c0_14, %c11] : memref<1x16x1152xbf16, #tpu.memory_space<vmem>>, vector<1x16x896xbf16>
    %13 = vector.shape_cast %12 : vector<1x16x896xbf16> to vector<16x896xbf16>
    %c64 = arith.constant 64 : index
    %c0_15 = arith.constant 0 : index
    %14 = vector.load %arg6[%c64, %c0_15] : memref<432x896xbf16, #tpu.memory_space<vmem>>, vector<16x896xbf16>
    tpu.vector_store %arg6[%c64, %c0_15], %13 {strides = array<i32>} : memref<432x896xbf16, #tpu.memory_space<vmem>>, vector<16x896xbf16>,
    %c0_16 = arith.constant 0 : index
    %c0_17 = arith.constant 0 : index
    %c12 = arith.constant 12 : index
    %15 = vector.load %arg1[%c0_16, %c0_17, %c12] : memref<1x16x1152xbf16, #tpu.memory_space<vmem>>, vector<1x16x896xbf16>
    %16 = vector.shape_cast %15 : vector<1x16x896xbf16> to vector<16x896xbf16>
    %c80 = arith.constant 80 : index
    %c0_18 = arith.constant 0 : index
    %17 = vector.load %arg6[%c80, %c0_18] : memref<432x896xbf16, #tpu.memory_space<vmem>>, vector<16x896xbf16>
    tpu.vector_store %arg6[%c80, %c0_18], %16 {strides = array<i32>} : memref<432x896xbf16, #tpu.memory_space<vmem>>, vector<16x896xbf16>,
    %c0_19 = arith.constant 0 : index
    %c0_20 = arith.constant 0 : index
    %c20 = arith.constant 20 : index
    %18 = vector.load %arg1[%c0_19, %c0_20, %c20] : memref<1x16x1152xbf16, #tpu.memory_space<vmem>>, vector<1x16x896xbf16>
    %19 = vector.shape_cast %18 : vector<1x16x896xbf16> to vector<16x896xbf16>
    %c96 = arith.constant 96 : index
    %c0_21 = arith.constant 0 : index
    %20 = vector.load %arg6[%c96, %c0_21] : memref<432x896xbf16, #tpu.memory_space<vmem>>, vector<16x896xbf16>
    tpu.vector_store %arg6[%c96, %c0_21], %19 {strides = array<i32>} : memref<432x896xbf16, #tpu.memory_space<vmem>>, vector<16x896xbf16>,
    %c0_22 = arith.constant 0 : index
    %c0_23 = arith.constant 0 : index
    %c21 = arith.constant 21 : index
    %21 = vector.load %arg1[%c0_22, %c0_23, %c21] : memref<1x16x1152xbf16, #tpu.memory_space<vmem>>, vector<1x16x896xbf16>
    %22 = vector.shape_cast %21 : vector<1x16x896xbf16> to vector<16x896xbf16>
    %c112 = arith.constant 112 : index
    %c0_24 = arith.constant 0 : index
    %23 = vector.load %arg6[%c112, %c0_24] : memref<432x896xbf16, #tpu.memory_space<vmem>>, vector<16x896xbf16>
    tpu.vector_store %arg6[%c112, %c0_24], %22 {strides = array<i32>} : memref<432x896xbf16, #tpu.memory_space<vmem>>, vector<16x896xbf16>,
    %c0_25 = arith.constant 0 : index
    %c0_26 = arith.constant 0 : index
    %c22 = arith.constant 22 : index
    %24 = vector.load %arg1[%c0_25, %c0_26, %c22] : memref<1x16x1152xbf16, #tpu.memory_space<vmem>>, vector<1x16x896xbf16>
    %25 = vector.shape_cast %24 : vector<1x16x896xbf16> to vector<16x896xbf16>
    %c128 = arith.constant 128 : index
    %c0_27 = arith.constant 0 : index
    %26 = vector.load %arg6[%c128, %c0_27] : memref<432x896xbf16, #tpu.memory_space<vmem>>, vector<16x896xbf16>
    tpu.vector_store %arg6[%c128, %c0_27], %25 {strides = array<i32>} : memref<432x896xbf16, #tpu.memory_space<vmem>>, vector<16x896xbf16>,
    %c0_28 = arith.constant 0 : index
    %c0_29 = arith.constant 0 : index
    %c100 = arith.constant 100 : index
    %27 = vector.load %arg1[%c0_28, %c0_29, %c100] : memref<1x16x1152xbf16, #tpu.memory_space<vmem>>, vector<1x16x896xbf16>
    %28 = vector.shape_cast %27 : vector<1x16x896xbf16> to vector<16x896xbf16>
    %c144 = arith.constant 144 : index
    %c0_30 = arith.constant 0 : index
    %29 = vector.load %arg6[%c144, %c0_30] : memref<432x896xbf16, #tpu.memory_space<vmem>>, vector<16x896xbf16>
    tpu.vector_store %arg6[%c144, %c0_30], %28 {strides = array<i32>} : memref<432x896xbf16, #tpu.memory_space<vmem>>, vector<16x896xbf16>,
    %c0_31 = arith.constant 0 : index
    %c0_32 = arith.constant 0 : index
    %c101 = arith.constant 101 : index
    %30 = vector.load %arg1[%c0_31, %c0_32, %c101] : memref<1x16x1152xbf16, #tpu.memory_space<vmem>>, vector<1x16x896xbf16>
    %31 = vector.shape_cast %30 : vector<1x16x896xbf16> to vector<16x896xbf16>
    %c160 = arith.constant 160 : index
    %c0_33 = arith.constant 0 : index
    %32 = vector.load %arg6[%c160, %c0_33] : memref<432x896xbf16, #tpu.memory_space<vmem>>, vector<16x896xbf16>
    tpu.vector_store %arg6[%c160, %c0_33], %31 {strides = array<i32>} : memref<432x896xbf16, #tpu.memory_space<vmem>>, vector<16x896xbf16>,
    %c0_34 = arith.constant 0 : index
    %c0_35 = arith.constant 0 : index
    %c102 = arith.constant 102 : index
    %33 = vector.load %arg1[%c0_34, %c0_35, %c102] : memref<1x16x1152xbf16, #tpu.memory_space<vmem>>, vector<1x16x896xbf16>
    %34 = vector.shape_cast %33 : vector<1x16x896xbf16> to vector<16x896xbf16>
    %c176 = arith.constant 176 : index
    %c0_36 = arith.constant 0 : index
    %35 = vector.load %arg6[%c176, %c0_36] : memref<432x896xbf16, #tpu.memory_space<vmem>>, vector<16x896xbf16>
    tpu.vector_store %arg6[%c176, %c0_36], %34 {strides = array<i32>} : memref<432x896xbf16, #tpu.memory_space<vmem>>, vector<16x896xbf16>,
    %c0_37 = arith.constant 0 : index
    %c0_38 = arith.constant 0 : index
    %c110 = arith.constant 110 : index
    %36 = vector.load %arg1[%c0_37, %c0_38, %c110] : memref<1x16x1152xbf16, #tpu.memory_space<vmem>>, vector<1x16x896xbf16>
    %37 = vector.shape_cast %36 : vector<1x16x896xbf16> to vector<16x896xbf16>
    %c192 = arith.constant 192 : index
    %c0_39 = arith.constant 0 : index
    %38 = vector.load %arg6[%c192, %c0_39] : memref<432x896xbf16, #tpu.memory_space<vmem>>, vector<16x896xbf16>
    tpu.vector_store %arg6[%c192, %c0_39], %37 {strides = array<i32>} : memref<432x896xbf16, #tpu.memory_space<vmem>>, vector<16x896xbf16>,
    %c0_40 = arith.constant 0 : index
    %c0_41 = arith.constant 0 : index
    %c111 = arith.constant 111 : index
    %39 = vector.load %arg1[%c0_40, %c0_41, %c111] : memref<1x16x1152xbf16, #tpu.memory_space<vmem>>, vector<1x16x896xbf16>
    %40 = vector.shape_cast %39 : vector<1x16x896xbf16> to vector<16x896xbf16>
    %c208 = arith.constant 208 : index
    %c0_42 = arith.constant 0 : index
    %41 = vector.load %arg6[%c208, %c0_42] : memref<432x896xbf16, #tpu.memory_space<vmem>>, vector<16x896xbf16>
    tpu.vector_store %arg6[%c208, %c0_42], %40 {strides = array<i32>} : memref<432x896xbf16, #tpu.memory_space<vmem>>, vector<16x896xbf16>,
    %c0_43 = arith.constant 0 : index
    %c0_44 = arith.constant 0 : index
    %c112_45 = arith.constant 112 : index
    %42 = vector.load %arg1[%c0_43, %c0_44, %c112_45] : memref<1x16x1152xbf16, #tpu.memory_space<vmem>>, vector<1x16x896xbf16>
    %43 = vector.shape_cast %42 : vector<1x16x896xbf16> to vector<16x896xbf16>
    %c224 = arith.constant 224 : index
    %c0_46 = arith.constant 0 : index
    %44 = vector.load %arg6[%c224, %c0_46] : memref<432x896xbf16, #tpu.memory_space<vmem>>, vector<16x896xbf16>
    tpu.vector_store %arg6[%c224, %c0_46], %43 {strides = array<i32>} : memref<432x896xbf16, #tpu.memory_space<vmem>>, vector<16x896xbf16>,
    %c0_47 = arith.constant 0 : index
    %c0_48 = arith.constant 0 : index
    %c120 = arith.constant 120 : index
    %45 = vector.load %arg1[%c0_47, %c0_48, %c120] : memref<1x16x1152xbf16, #tpu.memory_space<vmem>>, vector<1x16x896xbf16>
    %46 = vector.shape_cast %45 : vector<1x16x896xbf16> to vector<16x896xbf16>
    %c240 = arith.constant 240 : index
    %c0_49 = arith.constant 0 : index
    %47 = vector.load %arg6[%c240, %c0_49] : memref<432x896xbf16, #tpu.memory_space<vmem>>, vector<16x896xbf16>
    tpu.vector_store %arg6[%c240, %c0_49], %46 {strides = array<i32>} : memref<432x896xbf16, #tpu.memory_space<vmem>>, vector<16x896xbf16>,
    %c0_50 = arith.constant 0 : index
    %c0_51 = arith.constant 0 : index
    %c121 = arith.constant 121 : index
    %48 = vector.load %arg1[%c0_50, %c0_51, %c121] : memref<1x16x1152xbf16, #tpu.memory_space<vmem>>, vector<1x16x896xbf16>
    %49 = vector.shape_cast %48 : vector<1x16x896xbf16> to vector<16x896xbf16>
    %c256 = arith.constant 256 : index
    %c0_52 = arith.constant 0 : index
    %50 = vector.load %arg6[%c256, %c0_52] : memref<432x896xbf16, #tpu.memory_space<vmem>>, vector<16x896xbf16>
    tpu.vector_store %arg6[%c256, %c0_52], %49 {strides = array<i32>} : memref<432x896xbf16, #tpu.memory_space<vmem>>, vector<16x896xbf16>,
    %c0_53 = arith.constant 0 : index
    %c0_54 = arith.constant 0 : index
    %c122 = arith.constant 122 : index
    %51 = vector.load %arg1[%c0_53, %c0_54, %c122] : memref<1x16x1152xbf16, #tpu.memory_space<vmem>>, vector<1x16x896xbf16>
    %52 = vector.shape_cast %51 : vector<1x16x896xbf16> to vector<16x896xbf16>
    %c272 = arith.constant 272 : index
    %c0_55 = arith.constant 0 : index
    %53 = vector.load %arg6[%c272, %c0_55] : memref<432x896xbf16, #tpu.memory_space<vmem>>, vector<16x896xbf16>
    tpu.vector_store %arg6[%c272, %c0_55], %52 {strides = array<i32>} : memref<432x896xbf16, #tpu.memory_space<vmem>>, vector<16x896xbf16>,
    %c0_56 = arith.constant 0 : index
    %c0_57 = arith.constant 0 : index
    %c200 = arith.constant 200 : index
    %54 = vector.load %arg1[%c0_56, %c0_57, %c200] : memref<1x16x1152xbf16, #tpu.memory_space<vmem>>, vector<1x16x896xbf16>
    %55 = vector.shape_cast %54 : vector<1x16x896xbf16> to vector<16x896xbf16>
    %c288 = arith.constant 288 : index
    %c0_58 = arith.constant 0 : index
    %56 = vector.load %arg6[%c288, %c0_58] : memref<432x896xbf16, #tpu.memory_space<vmem>>, vector<16x896xbf16>
    tpu.vector_store %arg6[%c288, %c0_58], %55 {strides = array<i32>} : memref<432x896xbf16, #tpu.memory_space<vmem>>, vector<16x896xbf16>,
    %c0_59 = arith.constant 0 : index
    %c0_60 = arith.constant 0 : index
    %c201 = arith.constant 201 : index
    %57 = vector.load %arg1[%c0_59, %c0_60, %c201] : memref<1x16x1152xbf16, #tpu.memory_space<vmem>>, vector<1x16x896xbf16>
    %58 = vector.shape_cast %57 : vector<1x16x896xbf16> to vector<16x896xbf16>
    %c304 = arith.constant 304 : index
    %c0_61 = arith.constant 0 : index
    %59 = vector.load %arg6[%c304, %c0_61] : memref<432x896xbf16, #tpu.memory_space<vmem>>, vector<16x896xbf16>
    tpu.vector_store %arg6[%c304, %c0_61], %58 {strides = array<i32>} : memref<432x896xbf16, #tpu.memory_space<vmem>>, vector<16x896xbf16>,
    %c0_62 = arith.constant 0 : index
    %c0_63 = arith.constant 0 : index
    %c202 = arith.constant 202 : index
    %60 = vector.load %arg1[%c0_62, %c0_63, %c202] : memref<1x16x1152xbf16, #tpu.memory_space<vmem>>, vector<1x16x896xbf16>
    %61 = vector.shape_cast %60 : vector<1x16x896xbf16> to vector<16x896xbf16>
    %c320 = arith.constant 320 : index
    %c0_64 = arith.constant 0 : index
    %62 = vector.load %arg6[%c320, %c0_64] : memref<432x896xbf16, #tpu.memory_space<vmem>>, vector<16x896xbf16>
    tpu.vector_store %arg6[%c320, %c0_64], %61 {strides = array<i32>} : memref<432x896xbf16, #tpu.memory_space<vmem>>, vector<16x896xbf16>,
    %c0_65 = arith.constant 0 : index
    %c0_66 = arith.constant 0 : index
    %c210 = arith.constant 210 : index
    %63 = vector.load %arg1[%c0_65, %c0_66, %c210] : memref<1x16x1152xbf16, #tpu.memory_space<vmem>>, vector<1x16x896xbf16>
    %64 = vector.shape_cast %63 : vector<1x16x896xbf16> to vector<16x896xbf16>
    %c336 = arith.constant 336 : index
    %c0_67 = arith.constant 0 : index
    %65 = vector.load %arg6[%c336, %c0_67] : memref<432x896xbf16, #tpu.memory_space<vmem>>, vector<16x896xbf16>
    tpu.vector_store %arg6[%c336, %c0_67], %64 {strides = array<i32>} : memref<432x896xbf16, #tpu.memory_space<vmem>>, vector<16x896xbf16>,
    %c0_68 = arith.constant 0 : index
    %c0_69 = arith.constant 0 : index
    %c211 = arith.constant 211 : index
    %66 = vector.load %arg1[%c0_68, %c0_69, %c211] : memref<1x16x1152xbf16, #tpu.memory_space<vmem>>, vector<1x16x896xbf16>
    %67 = vector.shape_cast %66 : vector<1x16x896xbf16> to vector<16x896xbf16>
    %c352 = arith.constant 352 : index
    %c0_70 = arith.constant 0 : index
    %68 = vector.load %arg6[%c352, %c0_70] : memref<432x896xbf16, #tpu.memory_space<vmem>>, vector<16x896xbf16>
    tpu.vector_store %arg6[%c352, %c0_70], %67 {strides = array<i32>} : memref<432x896xbf16, #tpu.memory_space<vmem>>, vector<16x896xbf16>,
    %c0_71 = arith.constant 0 : index
    %c0_72 = arith.constant 0 : index
    %c212 = arith.constant 212 : index
    %69 = vector.load %arg1[%c0_71, %c0_72, %c212] : memref<1x16x1152xbf16, #tpu.memory_space<vmem>>, vector<1x16x896xbf16>
    %70 = vector.shape_cast %69 : vector<1x16x896xbf16> to vector<16x896xbf16>
    %c368 = arith.constant 368 : index
    %c0_73 = arith.constant 0 : index
    %71 = vector.load %arg6[%c368, %c0_73] : memref<432x896xbf16, #tpu.memory_space<vmem>>, vector<16x896xbf16>
    tpu.vector_store %arg6[%c368, %c0_73], %70 {strides = array<i32>} : memref<432x896xbf16, #tpu.memory_space<vmem>>, vector<16x896xbf16>,
    %c0_74 = arith.constant 0 : index
    %c0_75 = arith.constant 0 : index
    %c220 = arith.constant 220 : index
    %72 = vector.load %arg1[%c0_74, %c0_75, %c220] : memref<1x16x1152xbf16, #tpu.memory_space<vmem>>, vector<1x16x896xbf16>
    %73 = vector.shape_cast %72 : vector<1x16x896xbf16> to vector<16x896xbf16>
    %c384 = arith.constant 384 : index
    %c0_76 = arith.constant 0 : index
    %74 = vector.load %arg6[%c384, %c0_76] : memref<432x896xbf16, #tpu.memory_space<vmem>>, vector<16x896xbf16>
    tpu.vector_store %arg6[%c384, %c0_76], %73 {strides = array<i32>} : memref<432x896xbf16, #tpu.memory_space<vmem>>, vector<16x896xbf16>,
    %c0_77 = arith.constant 0 : index
    %c0_78 = arith.constant 0 : index
    %c221 = arith.constant 221 : index
    %75 = vector.load %arg1[%c0_77, %c0_78, %c221] : memref<1x16x1152xbf16, #tpu.memory_space<vmem>>, vector<1x16x896xbf16>
    %76 = vector.shape_cast %75 : vector<1x16x896xbf16> to vector<16x896xbf16>
    %c400 = arith.constant 400 : index
    %c0_79 = arith.constant 0 : index
    %77 = vector.load %arg6[%c400, %c0_79] : memref<432x896xbf16, #tpu.memory_space<vmem>>, vector<16x896xbf16>
    tpu.vector_store %arg6[%c400, %c0_79], %76 {strides = array<i32>} : memref<432x896xbf16, #tpu.memory_space<vmem>>, vector<16x896xbf16>,
    %c0_80 = arith.constant 0 : index
    %c0_81 = arith.constant 0 : index
    %c222 = arith.constant 222 : index
    %78 = vector.load %arg1[%c0_80, %c0_81, %c222] : memref<1x16x1152xbf16, #tpu.memory_space<vmem>>, vector<1x16x896xbf16>
    %79 = vector.shape_cast %78 : vector<1x16x896xbf16> to vector<16x896xbf16>
    %c416 = arith.constant 416 : index
    %c0_82 = arith.constant 0 : index
    %80 = vector.load %arg6[%c416, %c0_82] : memref<432x896xbf16, #tpu.memory_space<vmem>>, vector<16x896xbf16>
    tpu.vector_store %arg6[%c416, %c0_82], %79 {strides = array<i32>} : memref<432x896xbf16, #tpu.memory_space<vmem>>, vector<16x896xbf16>,
    %c0_83 = arith.constant 0 : index
    %c0_84 = arith.constant 0 : index
    %81 = vector.load %arg2[%c0_83, %c0_84] : memref<32x432xbf16, #tpu.memory_space<vmem>>, vector<32x432xbf16>
    %c0_85 = arith.constant 0 : index
    %c0_86 = arith.constant 0 : index
    %82 = vector.load %arg6[%c0_85, %c0_86] : memref<432x896xbf16, #tpu.memory_space<vmem>>, vector<432x896xbf16>
    %cst = arith.constant dense<0.000000e+00> : vector<32x896xf32>
    %83 = tpu.matmul %81, %82, %cst {dimension_numbers = #tpu.dot_dimension_numbers<[1], [0], [0], [1], [0, 0, 1, 1], [], []>} : vector<32x432xbf16>, vector<432x896xbf16>, vector<32x896xf32> -> vector<32x896xf32>
    %c0_87 = arith.constant 0 : index
    %c0_88 = arith.constant 0 : index
    %84 = vector.load %arg3[%c0_87, %c0_88] : memref<32x1xf32, #tpu.memory_space<vmem>>, vector<32x1xf32>
    %85 = vector.broadcast %84 : vector<32x1xf32> to vector<32x896xf32>
    %86 = arith.mulf %83, %85 : vector<32x896xf32>
    %c0_89 = arith.constant 0 : index
    %c0_90 = arith.constant 0 : index
    %87 = vector.load %arg4[%c0_89, %c0_90] : memref<32x1xf32, #tpu.memory_space<vmem>>, vector<32x1xf32>
    %88 = vector.broadcast %87 : vector<32x1xf32> to vector<32x896xf32>
    %89 = arith.addf %86, %88 : vector<32x896xf32>
    %cst_91 = arith.constant 0.000000e+00 : f32
    %90 = vector.broadcast %cst_91 : f32 to vector<32x896xf32>
    %91 = arith.maximumf %89, %90 : vector<32x896xf32>
    %c0_92 = arith.constant 0 : index
    %c0_93 = arith.constant 0 : index
    %c0_94 = arith.constant 0 : index
    %92 = vector.load %arg5[%c0_92, %c0_93, %c0_94] : memref<1x32x896xf32, #tpu.memory_space<vmem>>, vector<1x32x896xf32>
    %93 = vector.shape_cast %92 : vector<1x32x896xf32> to vector<32x896xf32>
    %94 = vector.shape_cast %91 : vector<32x896xf32> to vector<1x32x896xf32>
    tpu.vector_store %arg5[%c0_92, %c0_93, %c0_94], %94 {strides = array<i32>} : memref<1x32x896xf32, #tpu.memory_space<vmem>>, vector<1x32x896xf32>,
    return
  }
  func.func @transform_0(%arg0: i32) -> (i32, i32, i32) {
    %c0_i32 = arith.constant 0 : i32
    %c0_i32_0 = arith.constant 0 : i32
    %c0_i32_1 = arith.constant 0 : i32
    return %arg0, %c0_i32, %c0_i32_0 : i32, i32, i32
  }
  func.func @transform_1(%arg0: i32) -> (i32, i32) {
    %c0_i32 = arith.constant 0 : i32
    %c0_i32_0 = arith.constant 0 : i32
    %c0_i32_1 = arith.constant 0 : i32
    return %c0_i32, %c0_i32_0 : i32, i32
  }
  func.func @transform_2(%arg0: i32) -> (i32, i32) {
    %c0_i32 = arith.constant 0 : i32
    %c0_i32_0 = arith.constant 0 : i32
    %c0_i32_1 = arith.constant 0 : i32
    return %c0_i32, %c0_i32_0 : i32, i32
  }
  func.func @transform_3(%arg0: i32) -> (i32, i32) {
    %c0_i32 = arith.constant 0 : i32
    %c0_i32_0 = arith.constant 0 : i32
    %c0_i32_1 = arith.constant 0 : i32
    return %c0_i32, %c0_i32_0 : i32, i32
  }
  func.func @transform_4(%arg0: i32) -> (i32, i32, i32) {
    %c0_i32 = arith.constant 0 : i32
    %c0_i32_0 = arith.constant 0 : i32
    %c0_i32_1 = arith.constant 0 : i32
    return %arg0, %c0_i32, %c0_i32_0 : i32, i32, i32
  }
}

</mosaic_0001>

<llo_original>
// kernel: deconv3d_bn_relu.1
$region0: #{deconv3d_bn_relu.1}
  #allocation0 [shape = 'u32[]', space=smem, size = 0x4, offset = 0x4, fixed_abs, tag = 'smem constant byte address 0x4 - core index']
  #allocation1 [shape = 'u32[144,128]{1,0:T(1,128)}', space=vmem, size = 0x12000, scoped, tag = 'internal scratch']
  #allocation2 [shape = 'bf16[432,896]{1,0:T(16,128)(2,1)}', space=vmem, size = 0xbd000, scoped, tag = 'scratch operand']
  %s0 = inlined_call_operand.vmem [shape: bf16[2,16,1152], index: 0, kind: input, shape index: {}]
  %s1 = inlined_call_operand.vmem [shape: bf16[32,432], index: 1, kind: input, shape index: {}]
  %s2 = inlined_call_operand.vmem [shape: f32[32,1], index: 2, kind: input, shape index: {}]
  %s3 = inlined_call_operand.vmem [shape: f32[32,1], index: 3, kind: input, shape index: {}]
  %s4 = inlined_call_operand.vmem [shape: f32[2,32,896], index: 4, kind: output, shape index: {}]
  %s5 = sld [smem:[#allocation0]]
  $region49: #{deconv3d_bn_relu.1} parent=0
    _
  %s7 = ssub.s32 1, %s5
  %s8 = scalar_select 0, %s7, %s5
  loop: start=0, step=1, limit=4
  $region2: #{deconv3d_bn_relu.1} parent=0 // loop_pre_header
    _
  $region3: #{deconv3d_bn_relu.1} parent=0 // loop_header
    %s10 = sphi 0, %s14
    %p11 = scmp.ge.s32.totalorder %s10, 4
    %s20 = sphi 0, %s22
    %s23 = sphi 0, %s20
    %s24 = sphi 0, %s23
    %s40 = sphi 0, %s24
    %s44 = sphi 0, %s44
    %s46 = sphi 0, %s44
    %s47 = sphi 0, %s46
    %s61 = sphi 0, %s47
    %s65 = sphi 0, %s65
    %s67 = sphi 0, %s65
    %s68 = sphi 0, %s67
    %s82 = sphi 0, %s68
    %s86 = sphi 0, %s86
    %s88 = sphi 0, %s86
    %s89 = sphi 0, %s88
    %s103 = sphi 0, %s89
    %s109 = sphi 0, %s111
    %s112 = sphi 0, %s109
    %s113 = sphi 0, %s112
    %s129 = sphi 0, %s113
  $region4: #{deconv3d_bn_relu.1} parent=0 // loop_header_branch
    %13 = sbr.rel (%p11) target = $region8
  $region5: #{deconv3d_bn_relu.1} parent=0 // loop_body
    %s15 = ssub.s32 %s10, 1
    %s16 = ssub.s32 %s10, 2
    %s17 = sadd.s32 %s10, 1
    %s18 = ssub.s32 %s10, %s17
    %p19 = scmp.eq.s32.totalorder %s18, 0
    %s21 = sadd.s32 %s20, 1
    %s22 = scalar_select %p19, %s20, %s21
    %p25 = pneg %p19
    %p26 = scmp.eq.s32.totalorder %s10, 1
    %p27 = por %p25, %p26
    %p28 = scmp.ne.s32.totalorder %s20, %s23
    %p29 = scmp.eq.s32.totalorder %s10, 0
    %p30 = por %p28, %p29
    %p31 = scmp.ne.s32.totalorder %s20, %s23
    %p32 = scmp.eq.s32.totalorder %s15, 1
    %p33 = por %p31, %p32
    %p34 = scmp.ne.s32.totalorder %s23, %s24
    %p35 = scmp.eq.s32.totalorder %s15, 0
    %p36 = por %p34, %p35
    %p37 = scmp.ne.s32.totalorder %s23, %s24
    %p38 = scmp.eq.s32.totalorder %s16, 1
    %p39 = por %p37, %p38
    %p41 = scmp.ne.s32.totalorder %s24, %s40
    %p42 = scmp.eq.s32.totalorder %s16, 0
    %p43 = por %p41, %p42
    %s45 = sadd.s32 %s44, 1
    %p48 = scmp.eq.s32.totalorder %s10, 1
    %p49 = scmp.ne.s32.totalorder %s44, %s46
    %p50 = scmp.eq.s32.totalorder %s10, 0
    %p51 = por %p49, %p50
    %p52 = scmp.ne.s32.totalorder %s44, %s46
    %p53 = scmp.eq.s32.totalorder %s15, 1
    %p54 = por %p52, %p53
    %p55 = scmp.ne.s32.totalorder %s46, %s47
    %p56 = scmp.eq.s32.totalorder %s15, 0
    %p57 = por %p55, %p56
    %p58 = scmp.ne.s32.totalorder %s46, %s47
    %p59 = scmp.eq.s32.totalorder %s16, 1
    %p60 = por %p58, %p59
    %p62 = scmp.ne.s32.totalorder %s47, %s61
    %p63 = scmp.eq.s32.totalorder %s16, 0
    %p64 = por %p62, %p63
    %s66 = sadd.s32 %s65, 1
    %p69 = scmp.eq.s32.totalorder %s10, 1
    %p70 = scmp.ne.s32.totalorder %s65, %s67
    %p71 = scmp.eq.s32.totalorder %s10, 0
    %p72 = por %p70, %p71
    %p73 = scmp.ne.s32.totalorder %s65, %s67
    %p74 = scmp.eq.s32.totalorder %s15, 1
    %p75 = por %p73, %p74
    %p76 = scmp.ne.s32.totalorder %s67, %s68
    %p77 = scmp.eq.s32.totalorder %s15, 0
    %p78 = por %p76, %p77
    %p79 = scmp.ne.s32.totalorder %s67, %s68
    %p80 = scmp.eq.s32.totalorder %s16, 1
    %p81 = por %p79, %p80
    %p83 = scmp.ne.s32.totalorder %s68, %s82
    %p84 = scmp.eq.s32.totalorder %s16, 0
    %p85 = por %p83, %p84
    %s87 = sadd.s32 %s86, 1
    %p90 = scmp.eq.s32.totalorder %s10, 1
    %p91 = scmp.ne.s32.totalorder %s86, %s88
    %p92 = scmp.eq.s32.totalorder %s10, 0
    %p93 = por %p91, %p92
    %p94 = scmp.ne.s32.totalorder %s86, %s88
    %p95 = scmp.eq.s32.totalorder %s15, 1
    %p96 = por %p94, %p95
    %p97 = scmp.ne.s32.totalorder %s88, %s89
    %p98 = scmp.eq.s32.totalorder %s15, 0
    %p99 = por %p97, %p98
    %p100 = scmp.ne.s32.totalorder %s88, %s89
    %p101 = scmp.eq.s32.totalorder %s16, 1
    %p102 = por %p100, %p101
    %p104 = scmp.ne.s32.totalorder %s89, %s103
    %p105 = scmp.eq.s32.totalorder %s16, 0
    %p106 = por %p104, %p105
    %s107 = ssub.s32 %s10, %s17
    %p108 = scmp.eq.s32.totalorder %s107, 0
    %s110 = sadd.s32 %s109, 1
    %s111 = scalar_select %p108, %s109, %s110
    %p114 = pneg %p108
    %p115 = scmp.eq.s32.totalorder %s10, 1
    %p116 = por %p114, %p115
    %p117 = scmp.ne.s32.totalorder %s109, %s112
    %p118 = scmp.eq.s32.totalorder %s10, 0
    %p119 = por %p117, %p118
    %p120 = scmp.ne.s32.totalorder %s109, %s112
    %p121 = scmp.eq.s32.totalorder %s15, 1
    %p122 = por %p120, %p121
    %p123 = scmp.ne.s32.totalorder %s112, %s113
    %p124 = scmp.eq.s32.totalorder %s15, 0
    %p125 = por %p123, %p124
    %p126 = scmp.ne.s32.totalorder %s112, %s113
    %p127 = scmp.eq.s32.totalorder %s16, 1
    %p128 = por %p126, %p127
    %p130 = scmp.ne.s32.totalorder %s113, %s129
    %p131 = scmp.eq.s32.totalorder %s16, 0
    %p132 = por %p130, %p131
    %p133 = scmp.le.s32.totalorder 1, %s10
    %p134 = scmp.lt.s32.totalorder %s10, 3
    %p135 = pnand %p133, %p134
    %p136 = pneg %p135
    // Predicated region
    $region9: #{deconv3d_bn_relu.1} parent=5 // pred_check
      _
    $region10: #{deconv3d_bn_relu.1} parent=5 // pred_check_branch
      %138 = sbr.rel (%p135) target = $region12
    $region11: #{deconv3d_bn_relu.1} parent=5 // pred_region
      %s139 = ssub.s32 %s10, 1
      // Predicated region
      $region13: #{deconv3d_bn_relu.1} parent=11 // pred_check
        %p140 = pneg %p57
      $region14: #{deconv3d_bn_relu.1} parent=11 // pred_check_branch
        %142 = sbr.rel (%p140) target = $region16
      $region15: #{deconv3d_bn_relu.1} parent=11 // pred_region
        _
      $region16: #{deconv3d_bn_relu.1} parent=11 // pred_fallthru
        _
      // Predicated region
      $region17: #{deconv3d_bn_relu.1} parent=11 // pred_check
        %p143 = pneg %p78
      $region18: #{deconv3d_bn_relu.1} parent=11 // pred_check_branch
        %145 = sbr.rel (%p143) target = $region20
      $region19: #{deconv3d_bn_relu.1} parent=11 // pred_region
        _
      $region20: #{deconv3d_bn_relu.1} parent=11 // pred_fallthru
        _
      // Predicated region
      $region21: #{deconv3d_bn_relu.1} parent=11 // pred_check
        %p146 = pneg %p99
      $region22: #{deconv3d_bn_relu.1} parent=11 // pred_check_branch
        %148 = sbr.rel (%p146) target = $region24
      $region23: #{deconv3d_bn_relu.1} parent=11 // pred_region
        _
      $region24: #{deconv3d_bn_relu.1} parent=11 // pred_fallthru
        _
    $region12: #{deconv3d_bn_relu.1} parent=5 // pred_fallthru
      _
    %p149 = scmp.lt.s32.totalorder %s10, 2
    // Predicated region
    $region25: #{deconv3d_bn_relu.1} parent=5 // pred_check
      %p150 = pneg %p149
    $region26: #{deconv3d_bn_relu.1} parent=5 // pred_check_branch
      %152 = sbr.rel (%p150) target = $region28
    $region27: #{deconv3d_bn_relu.1} parent=5 // pred_region
      // Predicated region
      $region29: #{deconv3d_bn_relu.1} parent=27 // pred_check
        %p153 = pneg %p30
      $region30: #{deconv3d_bn_relu.1} parent=27 // pred_check_branch
        %155 = sbr.rel (%p153) target = $region32
      $region31: #{deconv3d_bn_relu.1} parent=27 // pred_region
        %p156 = scmp.lt.s32.totalorder %s10, 1
        %s157 = scalar_select %p156, %s10, 1
        %s158 = smul.addr %s157, 18
        %s159 = smul.addr %s158, 4
        %s160 = scalar_lea.vmem %s0, %s159
      $region32: #{deconv3d_bn_relu.1} parent=27 // pred_fallthru
        _
    $region28: #{deconv3d_bn_relu.1} parent=5 // pred_fallthru
      _
    %p161 = scmp.le.s32.totalorder 1, %s10
    %p162 = scmp.lt.s32.totalorder %s10, 3
    %p163 = pnand %p161, %p162
    %p164 = pneg %p163
    // Predicated region
    $region33: #{deconv3d_bn_relu.1} parent=5 // pred_check
      _
    $region34: #{deconv3d_bn_relu.1} parent=5 // pred_check_branch
      %166 = sbr.rel (%p163) target = $region36
    $region35: #{deconv3d_bn_relu.1} parent=5 // pred_region
      %s167 = ssub.s32 %s10, 1
      %p168 = scmp.lt.s32.totalorder %s15, 1
      %s169 = scalar_select %p168, %s15, 1
      %s170 = smul.addr %s169, 18
      %s171 = smul.addr %s170, 4
      %s172 = scalar_lea.vmem %s0, %s171
      %p173 = pneg %p36
      %p174 = pneg %p33
      %p175 = pneg %p57
      %p176 = pneg %p54
      %p177 = pneg %p78
      %p178 = pneg %p75
      %p179 = pneg %p99
      %p180 = pneg %p96
      %p181 = pneg %p125
      %p182 = pneg %p122
      %p183 = scmp.lt.s32.totalorder %s15, 1
      %s184 = scalar_select %p183, %s15, 1
      %s185 = smul.addr %s184, 28
      %s186 = smul.addr %s185, 8
      %s187 = scalar_lea.vmem %s4, %s186
      %p188 = scmp.lt.s32.totalorder %s15, 1
      %s189 = scalar_select %p188, %s15, 1
      %s190 = smul.addr %s189, 18
      %s191 = smul.addr %s190, 4
      %s192 = scalar_lea.vmem %s0, %s191
      %p193 = scmp.lt.s32.totalorder %s15, 1
      %s194 = scalar_select %p193, %s15, 1
      %s195 = smul.addr %s194, 28
      %s196 = smul.addr %s195, 8
      %s197 = scalar_lea.vmem %s4, %s196
      %v199 = vld [vmem:[%s192] sm:$0xff]
      %v200 = vld [vmem:[%s192 + $0x8] sm:$0xff]
      %v201 = vld [vmem:[%s192 + $0x10] sm:$0xff]
      %v202 = vld [vmem:[%s192 + $0x18] sm:$0xf]
      %v203 = vld [vmem:[%s192 + $0x24] sm:$0xff]
      %v204 = vld [vmem:[%s192 + $0x2c] sm:$0xff]
      %v205 = vld [vmem:[%s192 + $0x34] sm:$0xff]
      %v206 = vld [vmem:[%s192 + $0x3c] sm:$0xf]
      %v215 = vunpack.c.l.b16 %v199
      %v216 = vunpack.c.h.b16 %v199
      %v217 = vunpack.c.l.b16 %v200
      %v218 = vunpack.c.h.b16 %v200
      %v219 = vunpack.c.l.b16 %v201
      %v220 = vunpack.c.h.b16 %v201
      %v221 = vunpack.c.l.b16 %v202
      %v222 = vunpack.c.l.b16 %v203
      %v223 = vunpack.c.h.b16 %v203
      %v224 = vunpack.c.l.b16 %v204
      %v225 = vunpack.c.h.b16 %v204
      %v226 = vunpack.c.l.b16 %v205
      %v227 = vunpack.c.h.b16 %v205
      %v228 = vunpack.c.l.b16 %v206
      %v229 = vpack.c.b16 %v222, %v215
      %v230 = vpack.c.b16 %v223, %v216
      %v231 = vpack.c.b16 %v224, %v217
      %v232 = vpack.c.b16 %v225, %v218
      %v233 = vpack.c.b16 %v226, %v219
      %v234 = vpack.c.b16 %v227, %v220
      %v235 = vpack.c.b16 %v228, %v221
      %243 = vst [vmem:[#allocation2] sm:$0xff] %v229
      %244 = vst [vmem:[#allocation2 + $0x8] sm:$0xff] %v230
      %245 = vst [vmem:[#allocation2 + $0x10] sm:$0xff] %v231
      %246 = vst [vmem:[#allocation2 + $0x18] sm:$0xff] %v232
      %247 = vst [vmem:[#allocation2 + $0x20] sm:$0xff] %v233
      %248 = vst [vmem:[#allocation2 + $0x28] sm:$0xff] %v234
      %249 = vst [vmem:[#allocation2 + $0x30] sm:$0xff] %v235
      %v250 = vld [vmem:[%s192] sm:$0xff]
      %v251 = vld [vmem:[%s192 + $0x8] sm:$0xff]
      %v252 = vld [vmem:[%s192 + $0x10] sm:$0xff]
      %v253 = vld [vmem:[%s192 + $0x18] sm:$0xff]
      %v254 = vld [vmem:[%s192 + $0x24] sm:$0xff]
      %v255 = vld [vmem:[%s192 + $0x2c] sm:$0xff]
      %v256 = vld [vmem:[%s192 + $0x34] sm:$0xff]
      %v257 = vld [vmem:[%s192 + $0x3c] sm:$0xff]
      %v266 = vunpack.c.l.b16 %v250
      %v267 = vunpack.c.h.b16 %v250
      %v268 = vunpack.c.l.b16 %v251
      %v269 = vunpack.c.h.b16 %v251
      %v270 = vunpack.c.l.b16 %v252
      %v271 = vunpack.c.h.b16 %v252
      %v272 = vunpack.c.l.b16 %v253
      %v273 = vunpack.c.h.b16 %v253
      %v274 = vunpack.c.l.b16 %v254
      %v275 = vunpack.c.h.b16 %v254
      %v276 = vunpack.c.l.b16 %v255
      %v277 = vunpack.c.h.b16 %v255
      %v278 = vunpack.c.l.b16 %v256
      %v279 = vunpack.c.h.b16 %v256
      %v280 = vunpack.c.l.b16 %v257
      %v281 = vunpack.c.h.b16 %v257
      %v282 = vpack.c.b16 %v274, %v266
      %v283 = vpack.c.b16 %v275, %v267
      %v284 = vpack.c.b16 %v276, %v268
      %v285 = vpack.c.b16 %v277, %v269
      %v286 = vpack.c.b16 %v278, %v270
      %v287 = vpack.c.b16 %v279, %v271
      %v288 = vpack.c.b16 %v280, %v272
      %v289 = vpack.c.b16 %v281, %v273
      %290 = vrot.lane.b32.xlu0 %v282, 127
      %v291 = vpop.permute.xlu0 %290
      %292 = vrot.lane.b32.xlu0 %v283, 127
      %v293 = vpop.permute.xlu0 %292
      %294 = vrot.lane.b32.xlu0 %v284, 127
      %v295 = vpop.permute.xlu0 %294
      %296 = vrot.lane.b32.xlu0 %v285, 127
      %v297 = vpop.permute.xlu0 %296
      %298 = vrot.lane.b32.xlu0 %v286, 127
      %v299 = vpop.permute.xlu0 %298
      %300 = vrot.lane.b32.xlu0 %v287, 127
      %v301 = vpop.permute.xlu0 %300
      %302 = vrot.lane.b32.xlu0 %v288, 127
      %v303 = vpop.permute.xlu0 %302
      %304 = vrot.lane.b32.xlu0 %v289, 127
      %v305 = vpop.permute.xlu0 %304
      %vm306 = vcmask 1039360
      %v307 = vsel %vm306, %v291, %v293
      %v308 = vsel %vm306, %v293, %v295
      %v309 = vsel %vm306, %v295, %v297
      %v310 = vsel %vm306, %v297, %v299
      %v311 = vsel %vm306, %v299, %v301
      %v312 = vsel %vm306, %v301, %v303
      %v313 = vsel %vm306, %v303, %v305
      %321 = vst [vmem:[#allocation2 + $0x38] sm:$0xff] %v307
      %322 = vst [vmem:[#allocation2 + $0x40] sm:$0xff] %v308
      %323 = vst [vmem:[#allocation2 + $0x48] sm:$0xff] %v309
      %324 = vst [vmem:[#allocation2 + $0x50] sm:$0xff] %v310
      %325 = vst [vmem:[#allocation2 + $0x58] sm:$0xff] %v311
      %326 = vst [vmem:[#allocation2 + $0x60] sm:$0xff] %v312
      %327 = vst [vmem:[#allocation2 + $0x68] sm:$0xff] %v313
      %v328 = vld [vmem:[%s192] sm:$0xff]
      %v329 = vld [vmem:[%s192 + $0x8] sm:$0xff]
      %v330 = vld [vmem:[%s192 + $0x10] sm:$0xff]
      %v331 = vld [vmem:[%s192 + $0x18] sm:$0xff]
      %v332 = vld [vmem:[%s192 + $0x24] sm:$0xff]
      %v333 = vld [vmem:[%s192 + $0x2c] sm:$0xff]
      %v334 = vld [vmem:[%s192 + $0x34] sm:$0xff]
      %v335 = vld [vmem:[%s192 + $0x3c] sm:$0xff]
      %v344 = vunpack.c.l.b16 %v328
      %v345 = vunpack.c.h.b16 %v328
      %v346 = vunpack.c.l.b16 %v329
      %v347 = vunpack.c.h.b16 %v329
      %v348 = vunpack.c.l.b16 %v330
      %v349 = vunpack.c.h.b16 %v330
      %v350 = vunpack.c.l.b16 %v331
      %v351 = vunpack.c.h.b16 %v331
      %v352 = vunpack.c.l.b16 %v332
      %v353 = vunpack.c.h.b16 %v332
      %v354 = vunpack.c.l.b16 %v333
      %v355 = vunpack.c.h.b16 %v333
      %v356 = vunpack.c.l.b16 %v334
      %v357 = vunpack.c.h.b16 %v334
      %v358 = vunpack.c.l.b16 %v335
      %v359 = vunpack.c.h.b16 %v335
      %v360 = vpack.c.b16 %v352, %v344
      %v361 = vpack.c.b16 %v353, %v345
      %v362 = vpack.c.b16 %v354, %v346
      %v363 = vpack.c.b16 %v355, %v347
      %v364 = vpack.c.b16 %v356, %v348
      %v365 = vpack.c.b16 %v357, %v349
      %v366 = vpack.c.b16 %v358, %v350
      %v367 = vpack.c.b16 %v359, %v351
      %368 = vrot.lane.b32.xlu0 %v360, 126
      %v369 = vpop.permute.xlu0 %368
      %370 = vrot.lane.b32.xlu0 %v361, 126
      %v371 = vpop.permute.xlu0 %370
      %372 = vrot.lane.b32.xlu0 %v362, 126
      %v373 = vpop.permute.xlu0 %372
      %374 = vrot.lane.b32.xlu0 %v363, 126
      %v375 = vpop.permute.xlu0 %374
      %376 = vrot.lane.b32.xlu0 %v364, 126
      %v377 = vpop.permute.xlu0 %376
      %378 = vrot.lane.b32.xlu0 %v365, 126
      %v379 = vpop.permute.xlu0 %378
      %380 = vrot.lane.b32.xlu0 %v366, 126
      %v381 = vpop.permute.xlu0 %380
      %382 = vrot.lane.b32.xlu0 %v367, 126
      %v383 = vpop.permute.xlu0 %382
      %vm384 = vcmask 1031168
      %v385 = vsel %vm384, %v369, %v371
      %v386 = vsel %vm384, %v371, %v373
      %v387 = vsel %vm384, %v373, %v375
      %v388 = vsel %vm384, %v375, %v377
      %v389 = vsel %vm384, %v377, %v379
      %v390 = vsel %vm384, %v379, %v381
      %v391 = vsel %vm384, %v381, %v383
      %399 = vst [vmem:[#allocation2 + $0x70] sm:$0xff] %v385
      %400 = vst [vmem:[#allocation2 + $0x78] sm:$0xff] %v386
      %401 = vst [vmem:[#allocation2 + $0x80] sm:$0xff] %v387
      %402 = vst [vmem:[#allocation2 + $0x88] sm:$0xff] %v388
      %403 = vst [vmem:[#allocation2 + $0x90] sm:$0xff] %v389
      %404 = vst [vmem:[#allocation2 + $0x98] sm:$0xff] %v390
      %405 = vst [vmem:[#allocation2 + $0xa0] sm:$0xff] %v391
      %v406 = vld [vmem:[%s192] sm:$0xff]
      %v407 = vld [vmem:[%s192 + $0x8] sm:$0xff]
      %v408 = vld [vmem:[%s192 + $0x10] sm:$0xff]
      %v409 = vld [vmem:[%s192 + $0x18] sm:$0xff]
      %v410 = vld [vmem:[%s192 + $0x24] sm:$0xff]
      %v411 = vld [vmem:[%s192 + $0x2c] sm:$0xff]
      %v412 = vld [vmem:[%s192 + $0x34] sm:$0xff]
      %v413 = vld [vmem:[%s192 + $0x3c] sm:$0xff]
      %v422 = vunpack.c.l.b16 %v406
      %v423 = vunpack.c.h.b16 %v406
      %v424 = vunpack.c.l.b16 %v407
      %v425 = vunpack.c.h.b16 %v407
      %v426 = vunpack.c.l.b16 %v408
      %v427 = vunpack.c.h.b16 %v408
      %v428 = vunpack.c.l.b16 %v409
      %v429 = vunpack.c.h.b16 %v409
      %v430 = vunpack.c.l.b16 %v410
      %v431 = vunpack.c.h.b16 %v410
      %v432 = vunpack.c.l.b16 %v411
      %v433 = vunpack.c.h.b16 %v411
      %v434 = vunpack.c.l.b16 %v412
      %v435 = vunpack.c.h.b16 %v412
      %v436 = vunpack.c.l.b16 %v413
      %v437 = vunpack.c.h.b16 %v413
      %v438 = vpack.c.b16 %v430, %v422
      %v439 = vpack.c.b16 %v431, %v423
      %v440 = vpack.c.b16 %v432, %v424
      %v441 = vpack.c.b16 %v433, %v425
      %v442 = vpack.c.b16 %v434, %v426
      %v443 = vpack.c.b16 %v435, %v427
      %v444 = vpack.c.b16 %v436, %v428
      %v445 = vpack.c.b16 %v437, %v429
      %446 = vrot.lane.b32.xlu0 %v438, 118
      %v447 = vpop.permute.xlu0 %446
      %448 = vrot.lane.b32.xlu0 %v439, 118
      %v449 = vpop.permute.xlu0 %448
      %450 = vrot.lane.b32.xlu0 %v440, 118
      %v451 = vpop.permute.xlu0 %450
      %452 = vrot.lane.b32.xlu0 %v441, 118
      %v453 = vpop.permute.xlu0 %452
      %454 = vrot.lane.b32.xlu0 %v442, 118
      %v455 = vpop.permute.xlu0 %454
      %456 = vrot.lane.b32.xlu0 %v443, 118
      %v457 = vpop.permute.xlu0 %456
      %458 = vrot.lane.b32.xlu0 %v444, 118
      %v459 = vpop.permute.xlu0 %458
      %460 = vrot.lane.b32.xlu0 %v445, 118
      %v461 = vpop.permute.xlu0 %460
      %vm462 = vcmask 965632
      %v463 = vsel %vm462, %v447, %v449
      %v464 = vsel %vm462, %v449, %v451
      %v465 = vsel %vm462, %v451, %v453
      %v466 = vsel %vm462, %v453, %v455
      %v467 = vsel %vm462, %v455, %v457
      %v468 = vsel %vm462, %v457, %v459
      %v469 = vsel %vm462, %v459, %v461
      %477 = vst [vmem:[#allocation2 + $0xa8] sm:$0xff] %v463
      %478 = vst [vmem:[#allocation2 + $0xb0] sm:$0xff] %v464
      %479 = vst [vmem:[#allocation2 + $0xb8] sm:$0xff] %v465
      %480 = vst [vmem:[#allocation2 + $0xc0] sm:$0xff] %v466
      %481 = vst [vmem:[#allocation2 + $0xc8] sm:$0xff] %v467
      %482 = vst [vmem:[#allocation2 + $0xd0] sm:$0xff] %v468
      %483 = vst [vmem:[#allocation2 + $0xd8] sm:$0xff] %v469
      %v484 = vld [vmem:[%s192] sm:$0xff]
      %v485 = vld [vmem:[%s192 + $0x8] sm:$0xff]
      %v486 = vld [vmem:[%s192 + $0x10] sm:$0xff]
      %v487 = vld [vmem:[%s192 + $0x18] sm:$0xff]
      %v488 = vld [vmem:[%s192 + $0x24] sm:$0xff]
      %v489 = vld [vmem:[%s192 + $0x2c] sm:$0xff]
      %v490 = vld [vmem:[%s192 + $0x34] sm:$0xff]
      %v491 = vld [vmem:[%s192 + $0x3c] sm:$0xff]
      %v500 = vunpack.c.l.b16 %v484
      %v501 = vunpack.c.h.b16 %v484
      %v502 = vunpack.c.l.b16 %v485
      %v503 = vunpack.c.h.b16 %v485
      %v504 = vunpack.c.l.b16 %v486
      %v505 = vunpack.c.h.b16 %v486
      %v506 = vunpack.c.l.b16 %v487
      %v507 = vunpack.c.h.b16 %v487
      %v508 = vunpack.c.l.b16 %v488
      %v509 = vunpack.c.h.b16 %v488
      %v510 = vunpack.c.l.b16 %v489
      %v511 = vunpack.c.h.b16 %v489
      %v512 = vunpack.c.l.b16 %v490
      %v513 = vunpack.c.h.b16 %v490
      %v514 = vunpack.c.l.b16 %v491
      %v515 = vunpack.c.h.b16 %v491
      %v516 = vpack.c.b16 %v508, %v500
      %v517 = vpack.c.b16 %v509, %v501
      %v518 = vpack.c.b16 %v510, %v502
      %v519 = vpack.c.b16 %v511, %v503
      %v520 = vpack.c.b16 %v512, %v504
      %v521 = vpack.c.b16 %v513, %v505
      %v522 = vpack.c.b16 %v514, %v506
      %v523 = vpack.c.b16 %v515, %v507
      %524 = vrot.lane.b32.xlu0 %v516, 117
      %v525 = vpop.permute.xlu0 %524
      %526 = vrot.lane.b32.xlu0 %v517, 117
      %v527 = vpop.permute.xlu0 %526
      %528 = vrot.lane.b32.xlu0 %v518, 117
      %v529 = vpop.permute.xlu0 %528
      %530 = vrot.lane.b32.xlu0 %v519, 117
      %v531 = vpop.permute.xlu0 %530
      %532 = vrot.lane.b32.xlu0 %v520, 117
      %v533 = vpop.permute.xlu0 %532
      %534 = vrot.lane.b32.xlu0 %v521, 117
      %v535 = vpop.permute.xlu0 %534
      %536 = vrot.lane.b32.xlu0 %v522, 117
      %v537 = vpop.permute.xlu0 %536
      %538 = vrot.lane.b32.xlu0 %v523, 117
      %v539 = vpop.permute.xlu0 %538
      %vm540 = vcmask 957440
      %v541 = vsel %vm540, %v525, %v527
      %v542 = vsel %vm540, %v527, %v529
      %v543 = vsel %vm540, %v529, %v531
      %v544 = vsel %vm540, %v531, %v533
      %v545 = vsel %vm540, %v533, %v535
      %v546 = vsel %vm540, %v535, %v537
      %v547 = vsel %vm540, %v537, %v539
      %555 = vst [vmem:[#allocation2 + $0xe0] sm:$0xff] %v541
      %556 = vst [vmem:[#allocation2 + $0xe8] sm:$0xff] %v542
      %557 = vst [vmem:[#allocation2 + $0xf0] sm:$0xff] %v543
      %558 = vst [vmem:[#allocation2 + $0xf8] sm:$0xff] %v544
      %559 = vst [vmem:[#allocation2 + $0x100] sm:$0xff] %v545
      %560 = vst [vmem:[#allocation2 + $0x108] sm:$0xff] %v546
      %561 = vst [vmem:[#allocation2 + $0x110] sm:$0xff] %v547
      %v562 = vld [vmem:[%s192] sm:$0xff]
      %v563 = vld [vmem:[%s192 + $0x8] sm:$0xff]
      %v564 = vld [vmem:[%s192 + $0x10] sm:$0xff]
      %v565 = vld [vmem:[%s192 + $0x18] sm:$0xff]
      %v566 = vld [vmem:[%s192 + $0x24] sm:$0xff]
      %v567 = vld [vmem:[%s192 + $0x2c] sm:$0xff]
      %v568 = vld [vmem:[%s192 + $0x34] sm:$0xff]
      %v569 = vld [vmem:[%s192 + $0x3c] sm:$0xff]
      %v578 = vunpack.c.l.b16 %v562
      %v579 = vunpack.c.h.b16 %v562
      %v580 = vunpack.c.l.b16 %v563
      %v581 = vunpack.c.h.b16 %v563
      %v582 = vunpack.c.l.b16 %v564
      %v583 = vunpack.c.h.b16 %v564
      %v584 = vunpack.c.l.b16 %v565
      %v585 = vunpack.c.h.b16 %v565
      %v586 = vunpack.c.l.b16 %v566
      %v587 = vunpack.c.h.b16 %v566
      %v588 = vunpack.c.l.b16 %v567
      %v589 = vunpack.c.h.b16 %v567
      %v590 = vunpack.c.l.b16 %v568
      %v591 = vunpack.c.h.b16 %v568
      %v592 = vunpack.c.l.b16 %v569
      %v593 = vunpack.c.h.b16 %v569
      %v594 = vpack.c.b16 %v586, %v578
      %v595 = vpack.c.b16 %v587, %v579
      %v596 = vpack.c.b16 %v588, %v580
      %v597 = vpack.c.b16 %v589, %v581
      %v598 = vpack.c.b16 %v590, %v582
      %v599 = vpack.c.b16 %v591, %v583
      %v600 = vpack.c.b16 %v592, %v584
      %v601 = vpack.c.b16 %v593, %v585
      %602 = vrot.lane.b32.xlu0 %v594, 116
      %v603 = vpop.permute.xlu0 %602
      %604 = vrot.lane.b32.xlu0 %v595, 116
      %v605 = vpop.permute.xlu0 %604
      %606 = vrot.lane.b32.xlu0 %v596, 116
      %v607 = vpop.permute.xlu0 %606
      %608 = vrot.lane.b32.xlu0 %v597, 116
      %v609 = vpop.permute.xlu0 %608
      %610 = vrot.lane.b32.xlu0 %v598, 116
      %v611 = vpop.permute.xlu0 %610
      %612 = vrot.lane.b32.xlu0 %v599, 116
      %v613 = vpop.permute.xlu0 %612
      %614 = vrot.lane.b32.xlu0 %v600, 116
      %v615 = vpop.permute.xlu0 %614
      %616 = vrot.lane.b32.xlu0 %v601, 116
      %v617 = vpop.permute.xlu0 %616
      %vm618 = vcmask 949248
      %v619 = vsel %vm618, %v603, %v605
      %v620 = vsel %vm618, %v605, %v607
      %v621 = vsel %vm618, %v607, %v609
      %v622 = vsel %vm618, %v609, %v611
      %v623 = vsel %vm618, %v611, %v613
      %v624 = vsel %vm618, %v613, %v615
      %v625 = vsel %vm618, %v615, %v617
      %633 = vst [vmem:[#allocation2 + $0x118] sm:$0xff] %v619
      %634 = vst [vmem:[#allocation2 + $0x120] sm:$0xff] %v620
      %635 = vst [vmem:[#allocation2 + $0x128] sm:$0xff] %v621
      %636 = vst [vmem:[#allocation2 + $0x130] sm:$0xff] %v622
      %637 = vst [vmem:[#allocation2 + $0x138] sm:$0xff] %v623
      %638 = vst [vmem:[#allocation2 + $0x140] sm:$0xff] %v624
      %639 = vst [vmem:[#allocation2 + $0x148] sm:$0xff] %v625
      %v640 = vld [vmem:[%s192] sm:$0xff]
      %v641 = vld [vmem:[%s192 + $0x8] sm:$0xff]
      %v642 = vld [vmem:[%s192 + $0x10] sm:$0xff]
      %v643 = vld [vmem:[%s192 + $0x18] sm:$0xff]
      %v644 = vld [vmem:[%s192 + $0x24] sm:$0xff]
      %v645 = vld [vmem:[%s192 + $0x2c] sm:$0xff]
      %v646 = vld [vmem:[%s192 + $0x34] sm:$0xff]
      %v647 = vld [vmem:[%s192 + $0x3c] sm:$0xff]
      %v656 = vunpack.c.l.b16 %v640
      %v657 = vunpack.c.h.b16 %v640
      %v658 = vunpack.c.l.b16 %v641
      %v659 = vunpack.c.h.b16 %v641
      %v660 = vunpack.c.l.b16 %v642
      %v661 = vunpack.c.h.b16 %v642
      %v662 = vunpack.c.l.b16 %v643
      %v663 = vunpack.c.h.b16 %v643
      %v664 = vunpack.c.l.b16 %v644
      %v665 = vunpack.c.h.b16 %v644
      %v666 = vunpack.c.l.b16 %v645
      %v667 = vunpack.c.h.b16 %v645
      %v668 = vunpack.c.l.b16 %v646
      %v669 = vunpack.c.h.b16 %v646
      %v670 = vunpack.c.l.b16 %v647
      %v671 = vunpack.c.h.b16 %v647
      %v672 = vpack.c.b16 %v664, %v656
      %v673 = vpack.c.b16 %v665, %v657
      %v674 = vpack.c.b16 %v666, %v658
      %v675 = vpack.c.b16 %v667, %v659
      %v676 = vpack.c.b16 %v668, %v660
      %v677 = vpack.c.b16 %v669, %v661
      %v678 = vpack.c.b16 %v670, %v662
      %v679 = vpack.c.b16 %v671, %v663
      %680 = vrot.lane.b32.xlu0 %v672, 108
      %v681 = vpop.permute.xlu0 %680
      %682 = vrot.lane.b32.xlu0 %v673, 108
      %v683 = vpop.permute.xlu0 %682
      %684 = vrot.lane.b32.xlu0 %v674, 108
      %v685 = vpop.permute.xlu0 %684
      %686 = vrot.lane.b32.xlu0 %v675, 108
      %v687 = vpop.permute.xlu0 %686
      %688 = vrot.lane.b32.xlu0 %v676, 108
      %v689 = vpop.permute.xlu0 %688
      %690 = vrot.lane.b32.xlu0 %v677, 108
      %v691 = vpop.permute.xlu0 %690
      %692 = vrot.lane.b32.xlu0 %v678, 108
      %v693 = vpop.permute.xlu0 %692
      %694 = vrot.lane.b32.xlu0 %v679, 108
      %v695 = vpop.permute.xlu0 %694
      %vm696 = vcmask 883712
      %v697 = vsel %vm696, %v681, %v683
      %v698 = vsel %vm696, %v683, %v685
      %v699 = vsel %vm696, %v685, %v687
      %v700 = vsel %vm696, %v687, %v689
      %v701 = vsel %vm696, %v689, %v691
      %v702 = vsel %vm696, %v691, %v693
      %v703 = vsel %vm696, %v693, %v695
      %711 = vst [vmem:[#allocation2 + $0x150] sm:$0xff] %v697
      %712 = vst [vmem:[#allocation2 + $0x158] sm:$0xff] %v698
      %713 = vst [vmem:[#allocation2 + $0x160] sm:$0xff] %v699
      %714 = vst [vmem:[#allocation2 + $0x168] sm:$0xff] %v700
      %715 = vst [vmem:[#allocation2 + $0x170] sm:$0xff] %v701
      %716 = vst [vmem:[#allocation2 + $0x178] sm:$0xff] %v702
      %717 = vst [vmem:[#allocation2 + $0x180] sm:$0xff] %v703
      %v718 = vld [vmem:[%s192] sm:$0xff]
      %v719 = vld [vmem:[%s192 + $0x8] sm:$0xff]
      %v720 = vld [vmem:[%s192 + $0x10] sm:$0xff]
      %v721 = vld [vmem:[%s192 + $0x18] sm:$0xff]
      %v722 = vld [vmem:[%s192 + $0x24] sm:$0xff]
      %v723 = vld [vmem:[%s192 + $0x2c] sm:$0xff]
      %v724 = vld [vmem:[%s192 + $0x34] sm:$0xff]
      %v725 = vld [vmem:[%s192 + $0x3c] sm:$0xff]
      %v734 = vunpack.c.l.b16 %v718
      %v735 = vunpack.c.h.b16 %v718
      %v736 = vunpack.c.l.b16 %v719
      %v737 = vunpack.c.h.b16 %v719
      %v738 = vunpack.c.l.b16 %v720
      %v739 = vunpack.c.h.b16 %v720
      %v740 = vunpack.c.l.b16 %v721
      %v741 = vunpack.c.h.b16 %v721
      %v742 = vunpack.c.l.b16 %v722
      %v743 = vunpack.c.h.b16 %v722
      %v744 = vunpack.c.l.b16 %v723
      %v745 = vunpack.c.h.b16 %v723
      %v746 = vunpack.c.l.b16 %v724
      %v747 = vunpack.c.h.b16 %v724
      %v748 = vunpack.c.l.b16 %v725
      %v749 = vunpack.c.h.b16 %v725
      %v750 = vpack.c.b16 %v742, %v734
      %v751 = vpack.c.b16 %v743, %v735
      %v752 = vpack.c.b16 %v744, %v736
      %v753 = vpack.c.b16 %v745, %v737
      %v754 = vpack.c.b16 %v746, %v738
      %v755 = vpack.c.b16 %v747, %v739
      %v756 = vpack.c.b16 %v748, %v740
      %v757 = vpack.c.b16 %v749, %v741
      %758 = vrot.lane.b32.xlu0 %v750, 107
      %v759 = vpop.permute.xlu0 %758
      %760 = vrot.lane.b32.xlu0 %v751, 107
      %v761 = vpop.permute.xlu0 %760
      %762 = vrot.lane.b32.xlu0 %v752, 107
      %v763 = vpop.permute.xlu0 %762
      %764 = vrot.lane.b32.xlu0 %v753, 107
      %v765 = vpop.permute.xlu0 %764
      %766 = vrot.lane.b32.xlu0 %v754, 107
      %v767 = vpop.permute.xlu0 %766
      %768 = vrot.lane.b32.xlu0 %v755, 107
      %v769 = vpop.permute.xlu0 %768
      %770 = vrot.lane.b32.xlu0 %v756, 107
      %v771 = vpop.permute.xlu0 %770
      %772 = vrot.lane.b32.xlu0 %v757, 107
      %v773 = vpop.permute.xlu0 %772
      %vm774 = vcmask 875520
      %v775 = vsel %vm774, %v759, %v761
      %v776 = vsel %vm774, %v761, %v763
      %v777 = vsel %vm774, %v763, %v765
      %v778 = vsel %vm774, %v765, %v767
      %v779 = vsel %vm774, %v767, %v769
      %v780 = vsel %vm774, %v769, %v771
      %v781 = vsel %vm774, %v771, %v773
      %789 = vst [vmem:[#allocation2 + $0x188] sm:$0xff] %v775
      %790 = vst [vmem:[#allocation2 + $0x190] sm:$0xff] %v776
      %791 = vst [vmem:[#allocation2 + $0x198] sm:$0xff] %v777
      %792 = vst [vmem:[#allocation2 + $0x1a0] sm:$0xff] %v778
      %793 = vst [vmem:[#allocation2 + $0x1a8] sm:$0xff] %v779
      %794 = vst [vmem:[#allocation2 + $0x1b0] sm:$0xff] %v780
      %795 = vst [vmem:[#allocation2 + $0x1b8] sm:$0xff] %v781
      %v796 = vld [vmem:[%s192] sm:$0xff]
      %v797 = vld [vmem:[%s192 + $0x8] sm:$0xff]
      %v798 = vld [vmem:[%s192 + $0x10] sm:$0xff]
      %v799 = vld [vmem:[%s192 + $0x18] sm:$0xff]
      %v800 = vld [vmem:[%s192 + $0x24] sm:$0xff]
      %v801 = vld [vmem:[%s192 + $0x2c] sm:$0xff]
      %v802 = vld [vmem:[%s192 + $0x34] sm:$0xff]
      %v803 = vld [vmem:[%s192 + $0x3c] sm:$0xff]
      %v812 = vunpack.c.l.b16 %v796
      %v813 = vunpack.c.h.b16 %v796
      %v814 = vunpack.c.l.b16 %v797
      %v815 = vunpack.c.h.b16 %v797
      %v816 = vunpack.c.l.b16 %v798
      %v817 = vunpack.c.h.b16 %v798
      %v818 = vunpack.c.l.b16 %v799
      %v819 = vunpack.c.h.b16 %v799
      %v820 = vunpack.c.l.b16 %v800
      %v821 = vunpack.c.h.b16 %v800
      %v822 = vunpack.c.l.b16 %v801
      %v823 = vunpack.c.h.b16 %v801
      %v824 = vunpack.c.l.b16 %v802
      %v825 = vunpack.c.h.b16 %v802
      %v826 = vunpack.c.l.b16 %v803
      %v827 = vunpack.c.h.b16 %v803
      %v828 = vpack.c.b16 %v820, %v812
      %v829 = vpack.c.b16 %v821, %v813
      %v830 = vpack.c.b16 %v822, %v814
      %v831 = vpack.c.b16 %v823, %v815
      %v832 = vpack.c.b16 %v824, %v816
      %v833 = vpack.c.b16 %v825, %v817
      %v834 = vpack.c.b16 %v826, %v818
      %v835 = vpack.c.b16 %v827, %v819
      %836 = vrot.lane.b32.xlu0 %v828, 106
      %v837 = vpop.permute.xlu0 %836
      %838 = vrot.lane.b32.xlu0 %v829, 106
      %v839 = vpop.permute.xlu0 %838
      %840 = vrot.lane.b32.xlu0 %v830, 106
      %v841 = vpop.permute.xlu0 %840
      %842 = vrot.lane.b32.xlu0 %v831, 106
      %v843 = vpop.permute.xlu0 %842
      %844 = vrot.lane.b32.xlu0 %v832, 106
      %v845 = vpop.permute.xlu0 %844
      %846 = vrot.lane.b32.xlu0 %v833, 106
      %v847 = vpop.permute.xlu0 %846
      %848 = vrot.lane.b32.xlu0 %v834, 106
      %v849 = vpop.permute.xlu0 %848
      %850 = vrot.lane.b32.xlu0 %v835, 106
      %v851 = vpop.permute.xlu0 %850
      %vm852 = vcmask 867328
      %v853 = vsel %vm852, %v837, %v839
      %v854 = vsel %vm852, %v839, %v841
      %v855 = vsel %vm852, %v841, %v843
      %v856 = vsel %vm852, %v843, %v845
      %v857 = vsel %vm852, %v845, %v847
      %v858 = vsel %vm852, %v847, %v849
      %v859 = vsel %vm852, %v849, %v851
      %867 = vst [vmem:[#allocation2 + $0x1c0] sm:$0xff] %v853
      %868 = vst [vmem:[#allocation2 + $0x1c8] sm:$0xff] %v854
      %869 = vst [vmem:[#allocation2 + $0x1d0] sm:$0xff] %v855
      %870 = vst [vmem:[#allocation2 + $0x1d8] sm:$0xff] %v856
      %871 = vst [vmem:[#allocation2 + $0x1e0] sm:$0xff] %v857
      %872 = vst [vmem:[#allocation2 + $0x1e8] sm:$0xff] %v858
      %873 = vst [vmem:[#allocation2 + $0x1f0] sm:$0xff] %v859
      %v874 = vld [vmem:[%s192] sm:$0xff]
      %v875 = vld [vmem:[%s192 + $0x8] sm:$0xff]
      %v876 = vld [vmem:[%s192 + $0x10] sm:$0xff]
      %v877 = vld [vmem:[%s192 + $0x18] sm:$0xff]
      %v878 = vld [vmem:[%s192 + $0x24] sm:$0xff]
      %v879 = vld [vmem:[%s192 + $0x2c] sm:$0xff]
      %v880 = vld [vmem:[%s192 + $0x34] sm:$0xff]
      %v881 = vld [vmem:[%s192 + $0x3c] sm:$0xff]
      %v890 = vunpack.c.l.b16 %v874
      %v891 = vunpack.c.h.b16 %v874
      %v892 = vunpack.c.l.b16 %v875
      %v893 = vunpack.c.h.b16 %v875
      %v894 = vunpack.c.l.b16 %v876
      %v895 = vunpack.c.h.b16 %v876
      %v896 = vunpack.c.l.b16 %v877
      %v897 = vunpack.c.h.b16 %v877
      %v898 = vunpack.c.l.b16 %v878
      %v899 = vunpack.c.h.b16 %v878
      %v900 = vunpack.c.l.b16 %v879
      %v901 = vunpack.c.h.b16 %v879
      %v902 = vunpack.c.l.b16 %v880
      %v903 = vunpack.c.h.b16 %v880
      %v904 = vunpack.c.l.b16 %v881
      %v905 = vunpack.c.h.b16 %v881
      %v906 = vpack.c.b16 %v898, %v890
      %v907 = vpack.c.b16 %v899, %v891
      %v908 = vpack.c.b16 %v900, %v892
      %v909 = vpack.c.b16 %v901, %v893
      %v910 = vpack.c.b16 %v902, %v894
      %v911 = vpack.c.b16 %v903, %v895
      %v912 = vpack.c.b16 %v904, %v896
      %v913 = vpack.c.b16 %v905, %v897
      %914 = vrot.lane.b32.xlu0 %v906, 28
      %v915 = vpop.permute.xlu0 %914
      %916 = vrot.lane.b32.xlu0 %v907, 28
      %v917 = vpop.permute.xlu0 %916
      %918 = vrot.lane.b32.xlu0 %v908, 28
      %v919 = vpop.permute.xlu0 %918
      %920 = vrot.lane.b32.xlu0 %v909, 28
      %v921 = vpop.permute.xlu0 %920
      %922 = vrot.lane.b32.xlu0 %v910, 28
      %v923 = vpop.permute.xlu0 %922
      %924 = vrot.lane.b32.xlu0 %v911, 28
      %v925 = vpop.permute.xlu0 %924
      %926 = vrot.lane.b32.xlu0 %v912, 28
      %v927 = vpop.permute.xlu0 %926
      %928 = vrot.lane.b32.xlu0 %v913, 28
      %v929 = vpop.permute.xlu0 %928
      %vm930 = vcmask 228352
      %v931 = vsel %vm930, %v915, %v917
      %v932 = vsel %vm930, %v917, %v919
      %v933 = vsel %vm930, %v919, %v921
      %v934 = vsel %vm930, %v921, %v923
      %v935 = vsel %vm930, %v923, %v925
      %v936 = vsel %vm930, %v925, %v927
      %v937 = vsel %vm930, %v927, %v929
      %945 = vst [vmem:[#allocation2 + $0x1f8] sm:$0xff] %v931
      %946 = vst [vmem:[#allocation2 + $0x200] sm:$0xff] %v932
      %947 = vst [vmem:[#allocation2 + $0x208] sm:$0xff] %v933
      %948 = vst [vmem:[#allocation2 + $0x210] sm:$0xff] %v934
      %949 = vst [vmem:[#allocation2 + $0x218] sm:$0xff] %v935
      %950 = vst [vmem:[#allocation2 + $0x220] sm:$0xff] %v936
      %951 = vst [vmem:[#allocation2 + $0x228] sm:$0xff] %v937
      %v952 = vld [vmem:[%s192] sm:$0xff]
      %v953 = vld [vmem:[%s192 + $0x8] sm:$0xff]
      %v954 = vld [vmem:[%s192 + $0x10] sm:$0xff]
      %v955 = vld [vmem:[%s192 + $0x18] sm:$0xff]
      %v956 = vld [vmem:[%s192 + $0x24] sm:$0xff]
      %v957 = vld [vmem:[%s192 + $0x2c] sm:$0xff]
      %v958 = vld [vmem:[%s192 + $0x34] sm:$0xff]
      %v959 = vld [vmem:[%s192 + $0x3c] sm:$0xff]
      %v968 = vunpack.c.l.b16 %v952
      %v969 = vunpack.c.h.b16 %v952
      %v970 = vunpack.c.l.b16 %v953
      %v971 = vunpack.c.h.b16 %v953
      %v972 = vunpack.c.l.b16 %v954
      %v973 = vunpack.c.h.b16 %v954
      %v974 = vunpack.c.l.b16 %v955
      %v975 = vunpack.c.h.b16 %v955
      %v976 = vunpack.c.l.b16 %v956
      %v977 = vunpack.c.h.b16 %v956
      %v978 = vunpack.c.l.b16 %v957
      %v979 = vunpack.c.h.b16 %v957
      %v980 = vunpack.c.l.b16 %v958
      %v981 = vunpack.c.h.b16 %v958
      %v982 = vunpack.c.l.b16 %v959
      %v983 = vunpack.c.h.b16 %v959
      %v984 = vpack.c.b16 %v976, %v968
      %v985 = vpack.c.b16 %v977, %v969
      %v986 = vpack.c.b16 %v978, %v970
      %v987 = vpack.c.b16 %v979, %v971
      %v988 = vpack.c.b16 %v980, %v972
      %v989 = vpack.c.b16 %v981, %v973
      %v990 = vpack.c.b16 %v982, %v974
      %v991 = vpack.c.b16 %v983, %v975
      %992 = vrot.lane.b32.xlu0 %v984, 27
      %v993 = vpop.permute.xlu0 %992
      %994 = vrot.lane.b32.xlu0 %v985, 27
      %v995 = vpop.permute.xlu0 %994
      %996 = vrot.lane.b32.xlu0 %v986, 27
      %v997 = vpop.permute.xlu0 %996
      %998 = vrot.lane.b32.xlu0 %v987, 27
      %v999 = vpop.permute.xlu0 %998
      %1000 = vrot.lane.b32.xlu0 %v988, 27
      %v1001 = vpop.permute.xlu0 %1000
      %1002 = vrot.lane.b32.xlu0 %v989, 27
      %v1003 = vpop.permute.xlu0 %1002
      %1004 = vrot.lane.b32.xlu0 %v990, 27
      %v1005 = vpop.permute.xlu0 %1004
      %1006 = vrot.lane.b32.xlu0 %v991, 27
      %v1007 = vpop.permute.xlu0 %1006
      %vm1008 = vcmask 220160
      %v1009 = vsel %vm1008, %v993, %v995
      %v1010 = vsel %vm1008, %v995, %v997
      %v1011 = vsel %vm1008, %v997, %v999
      %v1012 = vsel %vm1008, %v999, %v1001
      %v1013 = vsel %vm1008, %v1001, %v1003
      %v1014 = vsel %vm1008, %v1003, %v1005
      %v1015 = vsel %vm1008, %v1005, %v1007
      %1023 = vst [vmem:[#allocation2 + $0x230] sm:$0xff] %v1009
      %1024 = vst [vmem:[#allocation2 + $0x238] sm:$0xff] %v1010
      %1025 = vst [vmem:[#allocation2 + $0x240] sm:$0xff] %v1011
      %1026 = vst [vmem:[#allocation2 + $0x248] sm:$0xff] %v1012
      %1027 = vst [vmem:[#allocation2 + $0x250] sm:$0xff] %v1013
      %1028 = vst [vmem:[#allocation2 + $0x258] sm:$0xff] %v1014
      %1029 = vst [vmem:[#allocation2 + $0x260] sm:$0xff] %v1015
      %v1030 = vld [vmem:[%s192] sm:$0xff]
      %v1031 = vld [vmem:[%s192 + $0x8] sm:$0xff]
      %v1032 = vld [vmem:[%s192 + $0x10] sm:$0xff]
      %v1033 = vld [vmem:[%s192 + $0x18] sm:$0xff]
      %v1034 = vld [vmem:[%s192 + $0x24] sm:$0xff]
      %v1035 = vld [vmem:[%s192 + $0x2c] sm:$0xff]
      %v1036 = vld [vmem:[%s192 + $0x34] sm:$0xff]
      %v1037 = vld [vmem:[%s192 + $0x3c] sm:$0xff]
      %v1046 = vunpack.c.l.b16 %v1030
      %v1047 = vunpack.c.h.b16 %v1030
      %v1048 = vunpack.c.l.b16 %v1031
      %v1049 = vunpack.c.h.b16 %v1031
      %v1050 = vunpack.c.l.b16 %v1032
      %v1051 = vunpack.c.h.b16 %v1032
      %v1052 = vunpack.c.l.b16 %v1033
      %v1053 = vunpack.c.h.b16 %v1033
      %v1054 = vunpack.c.l.b16 %v1034
      %v1055 = vunpack.c.h.b16 %v1034
      %v1056 = vunpack.c.l.b16 %v1035
      %v1057 = vunpack.c.h.b16 %v1035
      %v1058 = vunpack.c.l.b16 %v1036
      %v1059 = vunpack.c.h.b16 %v1036
      %v1060 = vunpack.c.l.b16 %v1037
      %v1061 = vunpack.c.h.b16 %v1037
      %v1062 = vpack.c.b16 %v1054, %v1046
      %v1063 = vpack.c.b16 %v1055, %v1047
      %v1064 = vpack.c.b16 %v1056, %v1048
      %v1065 = vpack.c.b16 %v1057, %v1049
      %v1066 = vpack.c.b16 %v1058, %v1050
      %v1067 = vpack.c.b16 %v1059, %v1051
      %v1068 = vpack.c.b16 %v1060, %v1052
      %v1069 = vpack.c.b16 %v1061, %v1053
      %1070 = vrot.lane.b32.xlu0 %v1062, 26
      %v1071 = vpop.permute.xlu0 %1070
      %1072 = vrot.lane.b32.xlu0 %v1063, 26
      %v1073 = vpop.permute.xlu0 %1072
      %1074 = vrot.lane.b32.xlu0 %v1064, 26
      %v1075 = vpop.permute.xlu0 %1074
      %1076 = vrot.lane.b32.xlu0 %v1065, 26
      %v1077 = vpop.permute.xlu0 %1076
      %1078 = vrot.lane.b32.xlu0 %v1066, 26
      %v1079 = vpop.permute.xlu0 %1078
      %1080 = vrot.lane.b32.xlu0 %v1067, 26
      %v1081 = vpop.permute.xlu0 %1080
      %1082 = vrot.lane.b32.xlu0 %v1068, 26
      %v1083 = vpop.permute.xlu0 %1082
      %1084 = vrot.lane.b32.xlu0 %v1069, 26
      %v1085 = vpop.permute.xlu0 %1084
      %vm1086 = vcmask 211968
      %v1087 = vsel %vm1086, %v1071, %v1073
      %v1088 = vsel %vm1086, %v1073, %v1075
      %v1089 = vsel %vm1086, %v1075, %v1077
      %v1090 = vsel %vm1086, %v1077, %v1079
      %v1091 = vsel %vm1086, %v1079, %v1081
      %v1092 = vsel %vm1086, %v1081, %v1083
      %v1093 = vsel %vm1086, %v1083, %v1085
      %1101 = vst [vmem:[#allocation2 + $0x268] sm:$0xff] %v1087
      %1102 = vst [vmem:[#allocation2 + $0x270] sm:$0xff] %v1088
      %1103 = vst [vmem:[#allocation2 + $0x278] sm:$0xff] %v1089
      %1104 = vst [vmem:[#allocation2 + $0x280] sm:$0xff] %v1090
      %1105 = vst [vmem:[#allocation2 + $0x288] sm:$0xff] %v1091
      %1106 = vst [vmem:[#allocation2 + $0x290] sm:$0xff] %v1092
      %1107 = vst [vmem:[#allocation2 + $0x298] sm:$0xff] %v1093
      %v1108 = vld [vmem:[%s192] sm:$0xff]
      %v1109 = vld [vmem:[%s192 + $0x8] sm:$0xff]
      %v1110 = vld [vmem:[%s192 + $0x10] sm:$0xff]
      %v1111 = vld [vmem:[%s192 + $0x18] sm:$0xff]
      %v1112 = vld [vmem:[%s192 + $0x24] sm:$0xff]
      %v1113 = vld [vmem:[%s192 + $0x2c] sm:$0xff]
      %v1114 = vld [vmem:[%s192 + $0x34] sm:$0xff]
      %v1115 = vld [vmem:[%s192 + $0x3c] sm:$0xff]
      %v1124 = vunpack.c.l.b16 %v1108
      %v1125 = vunpack.c.h.b16 %v1108
      %v1126 = vunpack.c.l.b16 %v1109
      %v1127 = vunpack.c.h.b16 %v1109
      %v1128 = vunpack.c.l.b16 %v1110
      %v1129 = vunpack.c.h.b16 %v1110
      %v1130 = vunpack.c.l.b16 %v1111
      %v1131 = vunpack.c.h.b16 %v1111
      %v1132 = vunpack.c.l.b16 %v1112
      %v1133 = vunpack.c.h.b16 %v1112
      %v1134 = vunpack.c.l.b16 %v1113
      %v1135 = vunpack.c.h.b16 %v1113
      %v1136 = vunpack.c.l.b16 %v1114
      %v1137 = vunpack.c.h.b16 %v1114
      %v1138 = vunpack.c.l.b16 %v1115
      %v1139 = vunpack.c.h.b16 %v1115
      %v1140 = vpack.c.b16 %v1132, %v1124
      %v1141 = vpack.c.b16 %v1133, %v1125
      %v1142 = vpack.c.b16 %v1134, %v1126
      %v1143 = vpack.c.b16 %v1135, %v1127
      %v1144 = vpack.c.b16 %v1136, %v1128
      %v1145 = vpack.c.b16 %v1137, %v1129
      %v1146 = vpack.c.b16 %v1138, %v1130
      %v1147 = vpack.c.b16 %v1139, %v1131
      %1148 = vrot.lane.b32.xlu0 %v1140, 18
      %v1149 = vpop.permute.xlu0 %1148
      %1150 = vrot.lane.b32.xlu0 %v1141, 18
      %v1151 = vpop.permute.xlu0 %1150
      %1152 = vrot.lane.b32.xlu0 %v1142, 18
      %v1153 = vpop.permute.xlu0 %1152
      %1154 = vrot.lane.b32.xlu0 %v1143, 18
      %v1155 = vpop.permute.xlu0 %1154
      %1156 = vrot.lane.b32.xlu0 %v1144, 18
      %v1157 = vpop.permute.xlu0 %1156
      %1158 = vrot.lane.b32.xlu0 %v1145, 18
      %v1159 = vpop.permute.xlu0 %1158
      %1160 = vrot.lane.b32.xlu0 %v1146, 18
      %v1161 = vpop.permute.xlu0 %1160
      %1162 = vrot.lane.b32.xlu0 %v1147, 18
      %v1163 = vpop.permute.xlu0 %1162
      %vm1164 = vcmask 146432
      %v1165 = vsel %vm1164, %v1149, %v1151
      %v1166 = vsel %vm1164, %v1151, %v1153
      %v1167 = vsel %vm1164, %v1153, %v1155
      %v1168 = vsel %vm1164, %v1155, %v1157
      %v1169 = vsel %vm1164, %v1157, %v1159
      %v1170 = vsel %vm1164, %v1159, %v1161
      %v1171 = vsel %vm1164, %v1161, %v1163
      %1179 = vst [vmem:[#allocation2 + $0x2a0] sm:$0xff] %v1165
      %1180 = vst [vmem:[#allocation2 + $0x2a8] sm:$0xff] %v1166
      %1181 = vst [vmem:[#allocation2 + $0x2b0] sm:$0xff] %v1167
      %1182 = vst [vmem:[#allocation2 + $0x2b8] sm:$0xff] %v1168
      %1183 = vst [vmem:[#allocation2 + $0x2c0] sm:$0xff] %v1169
      %1184 = vst [vmem:[#allocation2 + $0x2c8] sm:$0xff] %v1170
      %1185 = vst [vmem:[#allocation2 + $0x2d0] sm:$0xff] %v1171
      %v1186 = vld [vmem:[%s192] sm:$0xff]
      %v1187 = vld [vmem:[%s192 + $0x8] sm:$0xff]
      %v1188 = vld [vmem:[%s192 + $0x10] sm:$0xff]
      %v1189 = vld [vmem:[%s192 + $0x18] sm:$0xff]
      %v1190 = vld [vmem:[%s192 + $0x24] sm:$0xff]
      %v1191 = vld [vmem:[%s192 + $0x2c] sm:$0xff]
      %v1192 = vld [vmem:[%s192 + $0x34] sm:$0xff]
      %v1193 = vld [vmem:[%s192 + $0x3c] sm:$0xff]
      %v1202 = vunpack.c.l.b16 %v1186
      %v1203 = vunpack.c.h.b16 %v1186
      %v1204 = vunpack.c.l.b16 %v1187
      %v1205 = vunpack.c.h.b16 %v1187
      %v1206 = vunpack.c.l.b16 %v1188
      %v1207 = vunpack.c.h.b16 %v1188
      %v1208 = vunpack.c.l.b16 %v1189
      %v1209 = vunpack.c.h.b16 %v1189
      %v1210 = vunpack.c.l.b16 %v1190
      %v1211 = vunpack.c.h.b16 %v1190
      %v1212 = vunpack.c.l.b16 %v1191
      %v1213 = vunpack.c.h.b16 %v1191
      %v1214 = vunpack.c.l.b16 %v1192
      %v1215 = vunpack.c.h.b16 %v1192
      %v1216 = vunpack.c.l.b16 %v1193
      %v1217 = vunpack.c.h.b16 %v1193
      %v1218 = vpack.c.b16 %v1210, %v1202
      %v1219 = vpack.c.b16 %v1211, %v1203
      %v1220 = vpack.c.b16 %v1212, %v1204
      %v1221 = vpack.c.b16 %v1213, %v1205
      %v1222 = vpack.c.b16 %v1214, %v1206
      %v1223 = vpack.c.b16 %v1215, %v1207
      %v1224 = vpack.c.b16 %v1216, %v1208
      %v1225 = vpack.c.b16 %v1217, %v1209
      %1226 = vrot.lane.b32.xlu0 %v1218, 17
      %v1227 = vpop.permute.xlu0 %1226
      %1228 = vrot.lane.b32.xlu0 %v1219, 17
      %v1229 = vpop.permute.xlu0 %1228
      %1230 = vrot.lane.b32.xlu0 %v1220, 17
      %v1231 = vpop.permute.xlu0 %1230
      %1232 = vrot.lane.b32.xlu0 %v1221, 17
      %v1233 = vpop.permute.xlu0 %1232
      %1234 = vrot.lane.b32.xlu0 %v1222, 17
      %v1235 = vpop.permute.xlu0 %1234
      %1236 = vrot.lane.b32.xlu0 %v1223, 17
      %v1237 = vpop.permute.xlu0 %1236
      %1238 = vrot.lane.b32.xlu0 %v1224, 17
      %v1239 = vpop.permute.xlu0 %1238
      %1240 = vrot.lane.b32.xlu0 %v1225, 17
      %v1241 = vpop.permute.xlu0 %1240
      %vm1242 = vcmask 138240
      %v1243 = vsel %vm1242, %v1227, %v1229
      %v1244 = vsel %vm1242, %v1229, %v1231
      %v1245 = vsel %vm1242, %v1231, %v1233
      %v1246 = vsel %vm1242, %v1233, %v1235
      %v1247 = vsel %vm1242, %v1235, %v1237
      %v1248 = vsel %vm1242, %v1237, %v1239
      %v1249 = vsel %vm1242, %v1239, %v1241
      %1257 = vst [vmem:[#allocation2 + $0x2d8] sm:$0xff] %v1243
      %1258 = vst [vmem:[#allocation2 + $0x2e0] sm:$0xff] %v1244
      %1259 = vst [vmem:[#allocation2 + $0x2e8] sm:$0xff] %v1245
      %1260 = vst [vmem:[#allocation2 + $0x2f0] sm:$0xff] %v1246
      %1261 = vst [vmem:[#allocation2 + $0x2f8] sm:$0xff] %v1247
      %1262 = vst [vmem:[#allocation2 + $0x300] sm:$0xff] %v1248
      %1263 = vst [vmem:[#allocation2 + $0x308] sm:$0xff] %v1249
      %v1264 = vld [vmem:[%s192] sm:$0xff]
      %v1265 = vld [vmem:[%s192 + $0x8] sm:$0xff]
      %v1266 = vld [vmem:[%s192 + $0x10] sm:$0xff]
      %v1267 = vld [vmem:[%s192 + $0x18] sm:$0xff]
      %v1268 = vld [vmem:[%s192 + $0x24] sm:$0xff]
      %v1269 = vld [vmem:[%s192 + $0x2c] sm:$0xff]
      %v1270 = vld [vmem:[%s192 + $0x34] sm:$0xff]
      %v1271 = vld [vmem:[%s192 + $0x3c] sm:$0xff]
      %v1280 = vunpack.c.l.b16 %v1264
      %v1281 = vunpack.c.h.b16 %v1264
      %v1282 = vunpack.c.l.b16 %v1265
      %v1283 = vunpack.c.h.b16 %v1265
      %v1284 = vunpack.c.l.b16 %v1266
      %v1285 = vunpack.c.h.b16 %v1266
      %v1286 = vunpack.c.l.b16 %v1267
      %v1287 = vunpack.c.h.b16 %v1267
      %v1288 = vunpack.c.l.b16 %v1268
      %v1289 = vunpack.c.h.b16 %v1268
      %v1290 = vunpack.c.l.b16 %v1269
      %v1291 = vunpack.c.h.b16 %v1269
      %v1292 = vunpack.c.l.b16 %v1270
      %v1293 = vunpack.c.h.b16 %v1270
      %v1294 = vunpack.c.l.b16 %v1271
      %v1295 = vunpack.c.h.b16 %v1271
      %v1296 = vpack.c.b16 %v1288, %v1280
      %v1297 = vpack.c.b16 %v1289, %v1281
      %v1298 = vpack.c.b16 %v1290, %v1282
      %v1299 = vpack.c.b16 %v1291, %v1283
      %v1300 = vpack.c.b16 %v1292, %v1284
      %v1301 = vpack.c.b16 %v1293, %v1285
      %v1302 = vpack.c.b16 %v1294, %v1286
      %v1303 = vpack.c.b16 %v1295, %v1287
      %1304 = vrot.lane.b32.xlu0 %v1296, 16
      %v1305 = vpop.permute.xlu0 %1304
      %1306 = vrot.lane.b32.xlu0 %v1297, 16
      %v1307 = vpop.permute.xlu0 %1306
      %1308 = vrot.lane.b32.xlu0 %v1298, 16
      %v1309 = vpop.permute.xlu0 %1308
      %1310 = vrot.lane.b32.xlu0 %v1299, 16
      %v1311 = vpop.permute.xlu0 %1310
      %1312 = vrot.lane.b32.xlu0 %v1300, 16
      %v1313 = vpop.permute.xlu0 %1312
      %1314 = vrot.lane.b32.xlu0 %v1301, 16
      %v1315 = vpop.permute.xlu0 %1314
      %1316 = vrot.lane.b32.xlu0 %v1302, 16
      %v1317 = vpop.permute.xlu0 %1316
      %1318 = vrot.lane.b32.xlu0 %v1303, 16
      %v1319 = vpop.permute.xlu0 %1318
      %vm1320 = vcmask 130048
      %v1321 = vsel %vm1320, %v1305, %v1307
      %v1322 = vsel %vm1320, %v1307, %v1309
      %v1323 = vsel %vm1320, %v1309, %v1311
      %v1324 = vsel %vm1320, %v1311, %v1313
      %v1325 = vsel %vm1320, %v1313, %v1315
      %v1326 = vsel %vm1320, %v1315, %v1317
      %v1327 = vsel %vm1320, %v1317, %v1319
      %1335 = vst [vmem:[#allocation2 + $0x310] sm:$0xff] %v1321
      %1336 = vst [vmem:[#allocation2 + $0x318] sm:$0xff] %v1322
      %1337 = vst [vmem:[#allocation2 + $0x320] sm:$0xff] %v1323
      %1338 = vst [vmem:[#allocation2 + $0x328] sm:$0xff] %v1324
      %1339 = vst [vmem:[#allocation2 + $0x330] sm:$0xff] %v1325
      %1340 = vst [vmem:[#allocation2 + $0x338] sm:$0xff] %v1326
      %1341 = vst [vmem:[#allocation2 + $0x340] sm:$0xff] %v1327
      %v1342 = vld [vmem:[%s192] sm:$0xff]
      %v1343 = vld [vmem:[%s192 + $0x8] sm:$0xff]
      %v1344 = vld [vmem:[%s192 + $0x10] sm:$0xff]
      %v1345 = vld [vmem:[%s192 + $0x18] sm:$0xff]
      %v1346 = vld [vmem:[%s192 + $0x24] sm:$0xff]
      %v1347 = vld [vmem:[%s192 + $0x2c] sm:$0xff]
      %v1348 = vld [vmem:[%s192 + $0x34] sm:$0xff]
      %v1349 = vld [vmem:[%s192 + $0x3c] sm:$0xff]
      %v1358 = vunpack.c.l.b16 %v1342
      %v1359 = vunpack.c.h.b16 %v1342
      %v1360 = vunpack.c.l.b16 %v1343
      %v1361 = vunpack.c.h.b16 %v1343
      %v1362 = vunpack.c.l.b16 %v1344
      %v1363 = vunpack.c.h.b16 %v1344
      %v1364 = vunpack.c.l.b16 %v1345
      %v1365 = vunpack.c.h.b16 %v1345
      %v1366 = vunpack.c.l.b16 %v1346
      %v1367 = vunpack.c.h.b16 %v1346
      %v1368 = vunpack.c.l.b16 %v1347
      %v1369 = vunpack.c.h.b16 %v1347
      %v1370 = vunpack.c.l.b16 %v1348
      %v1371 = vunpack.c.h.b16 %v1348
      %v1372 = vunpack.c.l.b16 %v1349
      %v1373 = vunpack.c.h.b16 %v1349
      %v1374 = vpack.c.b16 %v1366, %v1358
      %v1375 = vpack.c.b16 %v1367, %v1359
      %v1376 = vpack.c.b16 %v1368, %v1360
      %v1377 = vpack.c.b16 %v1369, %v1361
      %v1378 = vpack.c.b16 %v1370, %v1362
      %v1379 = vpack.c.b16 %v1371, %v1363
      %v1380 = vpack.c.b16 %v1372, %v1364
      %v1381 = vpack.c.b16 %v1373, %v1365
      %1382 = vrot.lane.b32.xlu0 %v1374, 8
      %v1383 = vpop.permute.xlu0 %1382
      %1384 = vrot.lane.b32.xlu0 %v1375, 8
      %v1385 = vpop.permute.xlu0 %1384
      %1386 = vrot.lane.b32.xlu0 %v1376, 8
      %v1387 = vpop.permute.xlu0 %1386
      %1388 = vrot.lane.b32.xlu0 %v1377, 8
      %v1389 = vpop.permute.xlu0 %1388
      %1390 = vrot.lane.b32.xlu0 %v1378, 8
      %v1391 = vpop.permute.xlu0 %1390
      %1392 = vrot.lane.b32.xlu0 %v1379, 8
      %v1393 = vpop.permute.xlu0 %1392
      %1394 = vrot.lane.b32.xlu0 %v1380, 8
      %v1395 = vpop.permute.xlu0 %1394
      %1396 = vrot.lane.b32.xlu0 %v1381, 8
      %v1397 = vpop.permute.xlu0 %1396
      %vm1398 = vcmask 64512
      %v1399 = vsel %vm1398, %v1383, %v1385
      %v1400 = vsel %vm1398, %v1385, %v1387
      %v1401 = vsel %vm1398, %v1387, %v1389
      %v1402 = vsel %vm1398, %v1389, %v1391
      %v1403 = vsel %vm1398, %v1391, %v1393
      %v1404 = vsel %vm1398, %v1393, %v1395
      %v1405 = vsel %vm1398, %v1395, %v1397
      %1413 = vst [vmem:[#allocation2 + $0x348] sm:$0xff] %v1399
      %1414 = vst [vmem:[#allocation2 + $0x350] sm:$0xff] %v1400
      %1415 = vst [vmem:[#allocation2 + $0x358] sm:$0xff] %v1401
      %1416 = vst [vmem:[#allocation2 + $0x360] sm:$0xff] %v1402
      %1417 = vst [vmem:[#allocation2 + $0x368] sm:$0xff] %v1403
      %1418 = vst [vmem:[#allocation2 + $0x370] sm:$0xff] %v1404
      %1419 = vst [vmem:[#allocation2 + $0x378] sm:$0xff] %v1405
      %v1420 = vld [vmem:[%s192] sm:$0xff]
      %v1421 = vld [vmem:[%s192 + $0x8] sm:$0xff]
      %v1422 = vld [vmem:[%s192 + $0x10] sm:$0xff]
      %v1423 = vld [vmem:[%s192 + $0x18] sm:$0xff]
      %v1424 = vld [vmem:[%s192 + $0x24] sm:$0xff]
      %v1425 = vld [vmem:[%s192 + $0x2c] sm:$0xff]
      %v1426 = vld [vmem:[%s192 + $0x34] sm:$0xff]
      %v1427 = vld [vmem:[%s192 + $0x3c] sm:$0xff]
      %v1436 = vunpack.c.l.b16 %v1420
      %v1437 = vunpack.c.h.b16 %v1420
      %v1438 = vunpack.c.l.b16 %v1421
      %v1439 = vunpack.c.h.b16 %v1421
      %v1440 = vunpack.c.l.b16 %v1422
      %v1441 = vunpack.c.h.b16 %v1422
      %v1442 = vunpack.c.l.b16 %v1423
      %v1443 = vunpack.c.h.b16 %v1423
      %v1444 = vunpack.c.l.b16 %v1424
      %v1445 = vunpack.c.h.b16 %v1424
      %v1446 = vunpack.c.l.b16 %v1425
      %v1447 = vunpack.c.h.b16 %v1425
      %v1448 = vunpack.c.l.b16 %v1426
      %v1449 = vunpack.c.h.b16 %v1426
      %v1450 = vunpack.c.l.b16 %v1427
      %v1451 = vunpack.c.h.b16 %v1427
      %v1452 = vpack.c.b16 %v1444, %v1436
      %v1453 = vpack.c.b16 %v1445, %v1437
      %v1454 = vpack.c.b16 %v1446, %v1438
      %v1455 = vpack.c.b16 %v1447, %v1439
      %v1456 = vpack.c.b16 %v1448, %v1440
      %v1457 = vpack.c.b16 %v1449, %v1441
      %v1458 = vpack.c.b16 %v1450, %v1442
      %v1459 = vpack.c.b16 %v1451, %v1443
      %1460 = vrot.lane.b32.xlu0 %v1452, 7
      %v1461 = vpop.permute.xlu0 %1460
      %1462 = vrot.lane.b32.xlu0 %v1453, 7
      %v1463 = vpop.permute.xlu0 %1462
      %1464 = vrot.lane.b32.xlu0 %v1454, 7
      %v1465 = vpop.permute.xlu0 %1464
      %1466 = vrot.lane.b32.xlu0 %v1455, 7
      %v1467 = vpop.permute.xlu0 %1466
      %1468 = vrot.lane.b32.xlu0 %v1456, 7
      %v1469 = vpop.permute.xlu0 %1468
      %1470 = vrot.lane.b32.xlu0 %v1457, 7
      %v1471 = vpop.permute.xlu0 %1470
      %1472 = vrot.lane.b32.xlu0 %v1458, 7
      %v1473 = vpop.permute.xlu0 %1472
      %1474 = vrot.lane.b32.xlu0 %v1459, 7
      %v1475 = vpop.permute.xlu0 %1474
      %vm1476 = vcmask 56320
      %v1477 = vsel %vm1476, %v1461, %v1463
      %v1478 = vsel %vm1476, %v1463, %v1465
      %v1479 = vsel %vm1476, %v1465, %v1467
      %v1480 = vsel %vm1476, %v1467, %v1469
      %v1481 = vsel %vm1476, %v1469, %v1471
      %v1482 = vsel %vm1476, %v1471, %v1473
      %v1483 = vsel %vm1476, %v1473, %v1475
      %1491 = vst [vmem:[#allocation2 + $0x380] sm:$0xff] %v1477
      %1492 = vst [vmem:[#allocation2 + $0x388] sm:$0xff] %v1478
      %1493 = vst [vmem:[#allocation2 + $0x390] sm:$0xff] %v1479
      %1494 = vst [vmem:[#allocation2 + $0x398] sm:$0xff] %v1480
      %1495 = vst [vmem:[#allocation2 + $0x3a0] sm:$0xff] %v1481
      %1496 = vst [vmem:[#allocation2 + $0x3a8] sm:$0xff] %v1482
      %1497 = vst [vmem:[#allocation2 + $0x3b0] sm:$0xff] %v1483
      %v1498 = vld [vmem:[%s192] sm:$0xff]
      %v1499 = vld [vmem:[%s192 + $0x8] sm:$0xff]
      %v1500 = vld [vmem:[%s192 + $0x10] sm:$0xff]
      %v1501 = vld [vmem:[%s192 + $0x18] sm:$0xff]
      %v1502 = vld [vmem:[%s192 + $0x24] sm:$0xff]
      %v1503 = vld [vmem:[%s192 + $0x2c] sm:$0xff]
      %v1504 = vld [vmem:[%s192 + $0x34] sm:$0xff]
      %v1505 = vld [vmem:[%s192 + $0x3c] sm:$0xff]
      %v1514 = vunpack.c.l.b16 %v1498
      %v1515 = vunpack.c.h.b16 %v1498
      %v1516 = vunpack.c.l.b16 %v1499
      %v1517 = vunpack.c.h.b16 %v1499
      %v1518 = vunpack.c.l.b16 %v1500
      %v1519 = vunpack.c.h.b16 %v1500
      %v1520 = vunpack.c.l.b16 %v1501
      %v1521 = vunpack.c.h.b16 %v1501
      %v1522 = vunpack.c.l.b16 %v1502
      %v1523 = vunpack.c.h.b16 %v1502
      %v1524 = vunpack.c.l.b16 %v1503
      %v1525 = vunpack.c.h.b16 %v1503
      %v1526 = vunpack.c.l.b16 %v1504
      %v1527 = vunpack.c.h.b16 %v1504
      %v1528 = vunpack.c.l.b16 %v1505
      %v1529 = vunpack.c.h.b16 %v1505
      %v1530 = vpack.c.b16 %v1522, %v1514
      %v1531 = vpack.c.b16 %v1523, %v1515
      %v1532 = vpack.c.b16 %v1524, %v1516
      %v1533 = vpack.c.b16 %v1525, %v1517
      %v1534 = vpack.c.b16 %v1526, %v1518
      %v1535 = vpack.c.b16 %v1527, %v1519
      %v1536 = vpack.c.b16 %v1528, %v1520
      %v1537 = vpack.c.b16 %v1529, %v1521
      %1538 = vrot.lane.b32.xlu0 %v1530, 6
      %v1539 = vpop.permute.xlu0 %1538
      %1540 = vrot.lane.b32.xlu0 %v1531, 6
      %v1541 = vpop.permute.xlu0 %1540
      %1542 = vrot.lane.b32.xlu0 %v1532, 6
      %v1543 = vpop.permute.xlu0 %1542
      %1544 = vrot.lane.b32.xlu0 %v1533, 6
      %v1545 = vpop.permute.xlu0 %1544
      %1546 = vrot.lane.b32.xlu0 %v1534, 6
      %v1547 = vpop.permute.xlu0 %1546
      %1548 = vrot.lane.b32.xlu0 %v1535, 6
      %v1549 = vpop.permute.xlu0 %1548
      %1550 = vrot.lane.b32.xlu0 %v1536, 6
      %v1551 = vpop.permute.xlu0 %1550
      %1552 = vrot.lane.b32.xlu0 %v1537, 6
      %v1553 = vpop.permute.xlu0 %1552
      %vm1554 = vcmask 48128
      %v1555 = vsel %vm1554, %v1539, %v1541
      %v1556 = vsel %vm1554, %v1541, %v1543
      %v1557 = vsel %vm1554, %v1543, %v1545
      %v1558 = vsel %vm1554, %v1545, %v1547
      %v1559 = vsel %vm1554, %v1547, %v1549
      %v1560 = vsel %vm1554, %v1549, %v1551
      %v1561 = vsel %vm1554, %v1551, %v1553
      %1569 = vst [vmem:[#allocation2 + $0x3b8] sm:$0xff] %v1555
      %1570 = vst [vmem:[#allocation2 + $0x3c0] sm:$0xff] %v1556
      %1571 = vst [vmem:[#allocation2 + $0x3c8] sm:$0xff] %v1557
      %1572 = vst [vmem:[#allocation2 + $0x3d0] sm:$0xff] %v1558
      %1573 = vst [vmem:[#allocation2 + $0x3d8] sm:$0xff] %v1559
      %1574 = vst [vmem:[#allocation2 + $0x3e0] sm:$0xff] %v1560
      %1575 = vst [vmem:[#allocation2 + $0x3e8] sm:$0xff] %v1561
      %v1576 = vld [vmem:[%s192 + $0x4] sm:$0xff]
      %v1577 = vld [vmem:[%s192 + $0xc] sm:$0xff]
      %v1578 = vld [vmem:[%s192 + $0x14] sm:$0xff]
      %v1579 = vld [vmem:[%s192 + $0x1c] sm:$0xff]
      %v1580 = vld [vmem:[%s192 + $0x28] sm:$0xff]
      %v1581 = vld [vmem:[%s192 + $0x30] sm:$0xff]
      %v1582 = vld [vmem:[%s192 + $0x38] sm:$0xff]
      %v1583 = vld [vmem:[%s192 + $0x40] sm:$0xff]
      %v1592 = vunpack.c.l.b16 %v1576
      %v1593 = vunpack.c.h.b16 %v1576
      %v1594 = vunpack.c.l.b16 %v1577
      %v1595 = vunpack.c.h.b16 %v1577
      %v1596 = vunpack.c.l.b16 %v1578
      %v1597 = vunpack.c.h.b16 %v1578
      %v1598 = vunpack.c.l.b16 %v1579
      %v1599 = vunpack.c.h.b16 %v1579
      %v1600 = vunpack.c.l.b16 %v1580
      %v1601 = vunpack.c.h.b16 %v1580
      %v1602 = vunpack.c.l.b16 %v1581
      %v1603 = vunpack.c.h.b16 %v1581
      %v1604 = vunpack.c.l.b16 %v1582
      %v1605 = vunpack.c.h.b16 %v1582
      %v1606 = vunpack.c.l.b16 %v1583
      %v1607 = vunpack.c.h.b16 %v1583
      %v1608 = vpack.c.b16 %v1600, %v1592
      %v1609 = vpack.c.b16 %v1601, %v1593
      %v1610 = vpack.c.b16 %v1602, %v1594
      %v1611 = vpack.c.b16 %v1603, %v1595
      %v1612 = vpack.c.b16 %v1604, %v1596
      %v1613 = vpack.c.b16 %v1605, %v1597
      %v1614 = vpack.c.b16 %v1606, %v1598
      %v1615 = vpack.c.b16 %v1607, %v1599
      %1616 = vrot.lane.b32.xlu0 %v1608, 56
      %v1617 = vpop.permute.xlu0 %1616
      %1618 = vrot.lane.b32.xlu0 %v1609, 56
      %v1619 = vpop.permute.xlu0 %1618
      %1620 = vrot.lane.b32.xlu0 %v1610, 56
      %v1621 = vpop.permute.xlu0 %1620
      %1622 = vrot.lane.b32.xlu0 %v1611, 56
      %v1623 = vpop.permute.xlu0 %1622
      %1624 = vrot.lane.b32.xlu0 %v1612, 56
      %v1625 = vpop.permute.xlu0 %1624
      %1626 = vrot.lane.b32.xlu0 %v1613, 56
      %v1627 = vpop.permute.xlu0 %1626
      %1628 = vrot.lane.b32.xlu0 %v1614, 56
      %v1629 = vpop.permute.xlu0 %1628
      %1630 = vrot.lane.b32.xlu0 %v1615, 56
      %v1631 = vpop.permute.xlu0 %1630
      %vm1632 = vcmask 457728
      %v1633 = vsel %vm1632, %v1617, %v1619
      %v1634 = vsel %vm1632, %v1619, %v1621
      %v1635 = vsel %vm1632, %v1621, %v1623
      %v1636 = vsel %vm1632, %v1623, %v1625
      %v1637 = vsel %vm1632, %v1625, %v1627
      %v1638 = vsel %vm1632, %v1627, %v1629
      %v1639 = vsel %vm1632, %v1629, %v1631
      %1647 = vst [vmem:[#allocation2 + $0x3f0] sm:$0xff] %v1633
      %1648 = vst [vmem:[#allocation2 + $0x3f8] sm:$0xff] %v1634
      %1649 = vst [vmem:[#allocation2 + $0x400] sm:$0xff] %v1635
      %1650 = vst [vmem:[#allocation2 + $0x408] sm:$0xff] %v1636
      %1651 = vst [vmem:[#allocation2 + $0x410] sm:$0xff] %v1637
      %1652 = vst [vmem:[#allocation2 + $0x418] sm:$0xff] %v1638
      %1653 = vst [vmem:[#allocation2 + $0x420] sm:$0xff] %v1639
      %v1654 = vld [vmem:[%s192 + $0x4] sm:$0xff]
      %v1655 = vld [vmem:[%s192 + $0xc] sm:$0xff]
      %v1656 = vld [vmem:[%s192 + $0x14] sm:$0xff]
      %v1657 = vld [vmem:[%s192 + $0x1c] sm:$0xff]
      %v1658 = vld [vmem:[%s192 + $0x28] sm:$0xff]
      %v1659 = vld [vmem:[%s192 + $0x30] sm:$0xff]
      %v1660 = vld [vmem:[%s192 + $0x38] sm:$0xff]
      %v1661 = vld [vmem:[%s192 + $0x40] sm:$0xff]
      %v1670 = vunpack.c.l.b16 %v1654
      %v1671 = vunpack.c.h.b16 %v1654
      %v1672 = vunpack.c.l.b16 %v1655
      %v1673 = vunpack.c.h.b16 %v1655
      %v1674 = vunpack.c.l.b16 %v1656
      %v1675 = vunpack.c.h.b16 %v1656
      %v1676 = vunpack.c.l.b16 %v1657
      %v1677 = vunpack.c.h.b16 %v1657
      %v1678 = vunpack.c.l.b16 %v1658
      %v1679 = vunpack.c.h.b16 %v1658
      %v1680 = vunpack.c.l.b16 %v1659
      %v1681 = vunpack.c.h.b16 %v1659
      %v1682 = vunpack.c.l.b16 %v1660
      %v1683 = vunpack.c.h.b16 %v1660
      %v1684 = vunpack.c.l.b16 %v1661
      %v1685 = vunpack.c.h.b16 %v1661
      %v1686 = vpack.c.b16 %v1678, %v1670
      %v1687 = vpack.c.b16 %v1679, %v1671
      %v1688 = vpack.c.b16 %v1680, %v1672
      %v1689 = vpack.c.b16 %v1681, %v1673
      %v1690 = vpack.c.b16 %v1682, %v1674
      %v1691 = vpack.c.b16 %v1683, %v1675
      %v1692 = vpack.c.b16 %v1684, %v1676
      %v1693 = vpack.c.b16 %v1685, %v1677
      %1694 = vrot.lane.b32.xlu0 %v1686, 55
      %v1695 = vpop.permute.xlu0 %1694
      %1696 = vrot.lane.b32.xlu0 %v1687, 55
      %v1697 = vpop.permute.xlu0 %1696
      %1698 = vrot.lane.b32.xlu0 %v1688, 55
      %v1699 = vpop.permute.xlu0 %1698
      %1700 = vrot.lane.b32.xlu0 %v1689, 55
      %v1701 = vpop.permute.xlu0 %1700
      %1702 = vrot.lane.b32.xlu0 %v1690, 55
      %v1703 = vpop.permute.xlu0 %1702
      %1704 = vrot.lane.b32.xlu0 %v1691, 55
      %v1705 = vpop.permute.xlu0 %1704
      %1706 = vrot.lane.b32.xlu0 %v1692, 55
      %v1707 = vpop.permute.xlu0 %1706
      %1708 = vrot.lane.b32.xlu0 %v1693, 55
      %v1709 = vpop.permute.xlu0 %1708
      %vm1710 = vcmask 449536
      %v1711 = vsel %vm1710, %v1695, %v1697
      %v1712 = vsel %vm1710, %v1697, %v1699
      %v1713 = vsel %vm1710, %v1699, %v1701
      %v1714 = vsel %vm1710, %v1701, %v1703
      %v1715 = vsel %vm1710, %v1703, %v1705
      %v1716 = vsel %vm1710, %v1705, %v1707
      %v1717 = vsel %vm1710, %v1707, %v1709
      %1725 = vst [vmem:[#allocation2 + $0x428] sm:$0xff] %v1711
      %1726 = vst [vmem:[#allocation2 + $0x430] sm:$0xff] %v1712
      %1727 = vst [vmem:[#allocation2 + $0x438] sm:$0xff] %v1713
      %1728 = vst [vmem:[#allocation2 + $0x440] sm:$0xff] %v1714
      %1729 = vst [vmem:[#allocation2 + $0x448] sm:$0xff] %v1715
      %1730 = vst [vmem:[#allocation2 + $0x450] sm:$0xff] %v1716
      %1731 = vst [vmem:[#allocation2 + $0x458] sm:$0xff] %v1717
      %v1732 = vld [vmem:[%s192 + $0x4] sm:$0xff]
      %v1733 = vld [vmem:[%s192 + $0xc] sm:$0xff]
      %v1734 = vld [vmem:[%s192 + $0x14] sm:$0xff]
      %v1735 = vld [vmem:[%s192 + $0x1c] sm:$0xff]
      %v1736 = vld [vmem:[%s192 + $0x28] sm:$0xff]
      %v1737 = vld [vmem:[%s192 + $0x30] sm:$0xff]
      %v1738 = vld [vmem:[%s192 + $0x38] sm:$0xff]
      %v1739 = vld [vmem:[%s192 + $0x40] sm:$0xff]
      %v1748 = vunpack.c.l.b16 %v1732
      %v1749 = vunpack.c.h.b16 %v1732
      %v1750 = vunpack.c.l.b16 %v1733
      %v1751 = vunpack.c.h.b16 %v1733
      %v1752 = vunpack.c.l.b16 %v1734
      %v1753 = vunpack.c.h.b16 %v1734
      %v1754 = vunpack.c.l.b16 %v1735
      %v1755 = vunpack.c.h.b16 %v1735
      %v1756 = vunpack.c.l.b16 %v1736
      %v1757 = vunpack.c.h.b16 %v1736
      %v1758 = vunpack.c.l.b16 %v1737
      %v1759 = vunpack.c.h.b16 %v1737
      %v1760 = vunpack.c.l.b16 %v1738
      %v1761 = vunpack.c.h.b16 %v1738
      %v1762 = vunpack.c.l.b16 %v1739
      %v1763 = vunpack.c.h.b16 %v1739
      %v1764 = vpack.c.b16 %v1756, %v1748
      %v1765 = vpack.c.b16 %v1757, %v1749
      %v1766 = vpack.c.b16 %v1758, %v1750
      %v1767 = vpack.c.b16 %v1759, %v1751
      %v1768 = vpack.c.b16 %v1760, %v1752
      %v1769 = vpack.c.b16 %v1761, %v1753
      %v1770 = vpack.c.b16 %v1762, %v1754
      %v1771 = vpack.c.b16 %v1763, %v1755
      %1772 = vrot.lane.b32.xlu0 %v1764, 54
      %v1773 = vpop.permute.xlu0 %1772
      %1774 = vrot.lane.b32.xlu0 %v1765, 54
      %v1775 = vpop.permute.xlu0 %1774
      %1776 = vrot.lane.b32.xlu0 %v1766, 54
      %v1777 = vpop.permute.xlu0 %1776
      %1778 = vrot.lane.b32.xlu0 %v1767, 54
      %v1779 = vpop.permute.xlu0 %1778
      %1780 = vrot.lane.b32.xlu0 %v1768, 54
      %v1781 = vpop.permute.xlu0 %1780
      %1782 = vrot.lane.b32.xlu0 %v1769, 54
      %v1783 = vpop.permute.xlu0 %1782
      %1784 = vrot.lane.b32.xlu0 %v1770, 54
      %v1785 = vpop.permute.xlu0 %1784
      %1786 = vrot.lane.b32.xlu0 %v1771, 54
      %v1787 = vpop.permute.xlu0 %1786
      %vm1788 = vcmask 441344
      %v1789 = vsel %vm1788, %v1773, %v1775
      %v1790 = vsel %vm1788, %v1775, %v1777
      %v1791 = vsel %vm1788, %v1777, %v1779
      %v1792 = vsel %vm1788, %v1779, %v1781
      %v1793 = vsel %vm1788, %v1781, %v1783
      %v1794 = vsel %vm1788, %v1783, %v1785
      %v1795 = vsel %vm1788, %v1785, %v1787
      %1803 = vst [vmem:[#allocation2 + $0x460] sm:$0xff] %v1789
      %1804 = vst [vmem:[#allocation2 + $0x468] sm:$0xff] %v1790
      %1805 = vst [vmem:[#allocation2 + $0x470] sm:$0xff] %v1791
      %1806 = vst [vmem:[#allocation2 + $0x478] sm:$0xff] %v1792
      %1807 = vst [vmem:[#allocation2 + $0x480] sm:$0xff] %v1793
      %1808 = vst [vmem:[#allocation2 + $0x488] sm:$0xff] %v1794
      %1809 = vst [vmem:[#allocation2 + $0x490] sm:$0xff] %v1795
      %v1810 = vld [vmem:[%s192 + $0x4] sm:$0xff]
      %v1811 = vld [vmem:[%s192 + $0xc] sm:$0xff]
      %v1812 = vld [vmem:[%s192 + $0x14] sm:$0xff]
      %v1813 = vld [vmem:[%s192 + $0x1c] sm:$0xff]
      %v1814 = vld [vmem:[%s192 + $0x28] sm:$0xff]
      %v1815 = vld [vmem:[%s192 + $0x30] sm:$0xff]
      %v1816 = vld [vmem:[%s192 + $0x38] sm:$0xff]
      %v1817 = vld [vmem:[%s192 + $0x40] sm:$0xff]
      %v1826 = vunpack.c.l.b16 %v1810
      %v1827 = vunpack.c.h.b16 %v1810
      %v1828 = vunpack.c.l.b16 %v1811
      %v1829 = vunpack.c.h.b16 %v1811
      %v1830 = vunpack.c.l.b16 %v1812
      %v1831 = vunpack.c.h.b16 %v1812
      %v1832 = vunpack.c.l.b16 %v1813
      %v1833 = vunpack.c.h.b16 %v1813
      %v1834 = vunpack.c.l.b16 %v1814
      %v1835 = vunpack.c.h.b16 %v1814
      %v1836 = vunpack.c.l.b16 %v1815
      %v1837 = vunpack.c.h.b16 %v1815
      %v1838 = vunpack.c.l.b16 %v1816
      %v1839 = vunpack.c.h.b16 %v1816
      %v1840 = vunpack.c.l.b16 %v1817
      %v1841 = vunpack.c.h.b16 %v1817
      %v1842 = vpack.c.b16 %v1834, %v1826
      %v1843 = vpack.c.b16 %v1835, %v1827
      %v1844 = vpack.c.b16 %v1836, %v1828
      %v1845 = vpack.c.b16 %v1837, %v1829
      %v1846 = vpack.c.b16 %v1838, %v1830
      %v1847 = vpack.c.b16 %v1839, %v1831
      %v1848 = vpack.c.b16 %v1840, %v1832
      %v1849 = vpack.c.b16 %v1841, %v1833
      %1850 = vrot.lane.b32.xlu0 %v1842, 46
      %v1851 = vpop.permute.xlu0 %1850
      %1852 = vrot.lane.b32.xlu0 %v1843, 46
      %v1853 = vpop.permute.xlu0 %1852
      %1854 = vrot.lane.b32.xlu0 %v1844, 46
      %v1855 = vpop.permute.xlu0 %1854
      %1856 = vrot.lane.b32.xlu0 %v1845, 46
      %v1857 = vpop.permute.xlu0 %1856
      %1858 = vrot.lane.b32.xlu0 %v1846, 46
      %v1859 = vpop.permute.xlu0 %1858
      %1860 = vrot.lane.b32.xlu0 %v1847, 46
      %v1861 = vpop.permute.xlu0 %1860
      %1862 = vrot.lane.b32.xlu0 %v1848, 46
      %v1863 = vpop.permute.xlu0 %1862
      %1864 = vrot.lane.b32.xlu0 %v1849, 46
      %v1865 = vpop.permute.xlu0 %1864
      %vm1866 = vcmask 375808
      %v1867 = vsel %vm1866, %v1851, %v1853
      %v1868 = vsel %vm1866, %v1853, %v1855
      %v1869 = vsel %vm1866, %v1855, %v1857
      %v1870 = vsel %vm1866, %v1857, %v1859
      %v1871 = vsel %vm1866, %v1859, %v1861
      %v1872 = vsel %vm1866, %v1861, %v1863
      %v1873 = vsel %vm1866, %v1863, %v1865
      %1881 = vst [vmem:[#allocation2 + $0x498] sm:$0xff] %v1867
      %1882 = vst [vmem:[#allocation2 + $0x4a0] sm:$0xff] %v1868
      %1883 = vst [vmem:[#allocation2 + $0x4a8] sm:$0xff] %v1869
      %1884 = vst [vmem:[#allocation2 + $0x4b0] sm:$0xff] %v1870
      %1885 = vst [vmem:[#allocation2 + $0x4b8] sm:$0xff] %v1871
      %1886 = vst [vmem:[#allocation2 + $0x4c0] sm:$0xff] %v1872
      %1887 = vst [vmem:[#allocation2 + $0x4c8] sm:$0xff] %v1873
      %v1888 = vld [vmem:[%s192 + $0x4] sm:$0xff]
      %v1889 = vld [vmem:[%s192 + $0xc] sm:$0xff]
      %v1890 = vld [vmem:[%s192 + $0x14] sm:$0xff]
      %v1891 = vld [vmem:[%s192 + $0x1c] sm:$0xff]
      %v1892 = vld [vmem:[%s192 + $0x28] sm:$0xff]
      %v1893 = vld [vmem:[%s192 + $0x30] sm:$0xff]
      %v1894 = vld [vmem:[%s192 + $0x38] sm:$0xff]
      %v1895 = vld [vmem:[%s192 + $0x40] sm:$0xff]
      %v1904 = vunpack.c.l.b16 %v1888
      %v1905 = vunpack.c.h.b16 %v1888
      %v1906 = vunpack.c.l.b16 %v1889
      %v1907 = vunpack.c.h.b16 %v1889
      %v1908 = vunpack.c.l.b16 %v1890
      %v1909 = vunpack.c.h.b16 %v1890
      %v1910 = vunpack.c.l.b16 %v1891
      %v1911 = vunpack.c.h.b16 %v1891
      %v1912 = vunpack.c.l.b16 %v1892
      %v1913 = vunpack.c.h.b16 %v1892
      %v1914 = vunpack.c.l.b16 %v1893
      %v1915 = vunpack.c.h.b16 %v1893
      %v1916 = vunpack.c.l.b16 %v1894
      %v1917 = vunpack.c.h.b16 %v1894
      %v1918 = vunpack.c.l.b16 %v1895
      %v1919 = vunpack.c.h.b16 %v1895
      %v1920 = vpack.c.b16 %v1912, %v1904
      %v1921 = vpack.c.b16 %v1913, %v1905
      %v1922 = vpack.c.b16 %v1914, %v1906
      %v1923 = vpack.c.b16 %v1915, %v1907
      %v1924 = vpack.c.b16 %v1916, %v1908
      %v1925 = vpack.c.b16 %v1917, %v1909
      %v1926 = vpack.c.b16 %v1918, %v1910
      %v1927 = vpack.c.b16 %v1919, %v1911
      %1928 = vrot.lane.b32.xlu0 %v1920, 45
      %v1929 = vpop.permute.xlu0 %1928
      %1930 = vrot.lane.b32.xlu0 %v1921, 45
      %v1931 = vpop.permute.xlu0 %1930
      %1932 = vrot.lane.b32.xlu0 %v1922, 45
      %v1933 = vpop.permute.xlu0 %1932
      %1934 = vrot.lane.b32.xlu0 %v1923, 45
      %v1935 = vpop.permute.xlu0 %1934
      %1936 = vrot.lane.b32.xlu0 %v1924, 45
      %v1937 = vpop.permute.xlu0 %1936
      %1938 = vrot.lane.b32.xlu0 %v1925, 45
      %v1939 = vpop.permute.xlu0 %1938
      %1940 = vrot.lane.b32.xlu0 %v1926, 45
      %v1941 = vpop.permute.xlu0 %1940
      %1942 = vrot.lane.b32.xlu0 %v1927, 45
      %v1943 = vpop.permute.xlu0 %1942
      %vm1944 = vcmask 367616
      %v1945 = vsel %vm1944, %v1929, %v1931
      %v1946 = vsel %vm1944, %v1931, %v1933
      %v1947 = vsel %vm1944, %v1933, %v1935
      %v1948 = vsel %vm1944, %v1935, %v1937
      %v1949 = vsel %vm1944, %v1937, %v1939
      %v1950 = vsel %vm1944, %v1939, %v1941
      %v1951 = vsel %vm1944, %v1941, %v1943
      %1959 = vst [vmem:[#allocation2 + $0x4d0] sm:$0xff] %v1945
      %1960 = vst [vmem:[#allocation2 + $0x4d8] sm:$0xff] %v1946
      %1961 = vst [vmem:[#allocation2 + $0x4e0] sm:$0xff] %v1947
      %1962 = vst [vmem:[#allocation2 + $0x4e8] sm:$0xff] %v1948
      %1963 = vst [vmem:[#allocation2 + $0x4f0] sm:$0xff] %v1949
      %1964 = vst [vmem:[#allocation2 + $0x4f8] sm:$0xff] %v1950
      %1965 = vst [vmem:[#allocation2 + $0x500] sm:$0xff] %v1951
      %v1966 = vld [vmem:[%s192 + $0x4] sm:$0xff]
      %v1967 = vld [vmem:[%s192 + $0xc] sm:$0xff]
      %v1968 = vld [vmem:[%s192 + $0x14] sm:$0xff]
      %v1969 = vld [vmem:[%s192 + $0x1c] sm:$0xff]
      %v1970 = vld [vmem:[%s192 + $0x28] sm:$0xff]
      %v1971 = vld [vmem:[%s192 + $0x30] sm:$0xff]
      %v1972 = vld [vmem:[%s192 + $0x38] sm:$0xff]
      %v1973 = vld [vmem:[%s192 + $0x40] sm:$0xff]
      %v1982 = vunpack.c.l.b16 %v1966
      %v1983 = vunpack.c.h.b16 %v1966
      %v1984 = vunpack.c.l.b16 %v1967
      %v1985 = vunpack.c.h.b16 %v1967
      %v1986 = vunpack.c.l.b16 %v1968
      %v1987 = vunpack.c.h.b16 %v1968
      %v1988 = vunpack.c.l.b16 %v1969
      %v1989 = vunpack.c.h.b16 %v1969
      %v1990 = vunpack.c.l.b16 %v1970
      %v1991 = vunpack.c.h.b16 %v1970
      %v1992 = vunpack.c.l.b16 %v1971
      %v1993 = vunpack.c.h.b16 %v1971
      %v1994 = vunpack.c.l.b16 %v1972
      %v1995 = vunpack.c.h.b16 %v1972
      %v1996 = vunpack.c.l.b16 %v1973
      %v1997 = vunpack.c.h.b16 %v1973
      %v1998 = vpack.c.b16 %v1990, %v1982
      %v1999 = vpack.c.b16 %v1991, %v1983
      %v2000 = vpack.c.b16 %v1992, %v1984
      %v2001 = vpack.c.b16 %v1993, %v1985
      %v2002 = vpack.c.b16 %v1994, %v1986
      %v2003 = vpack.c.b16 %v1995, %v1987
      %v2004 = vpack.c.b16 %v1996, %v1988
      %v2005 = vpack.c.b16 %v1997, %v1989
      %2006 = vrot.lane.b32.xlu0 %v1998, 44
      %v2007 = vpop.permute.xlu0 %2006
      %2008 = vrot.lane.b32.xlu0 %v1999, 44
      %v2009 = vpop.permute.xlu0 %2008
      %2010 = vrot.lane.b32.xlu0 %v2000, 44
      %v2011 = vpop.permute.xlu0 %2010
      %2012 = vrot.lane.b32.xlu0 %v2001, 44
      %v2013 = vpop.permute.xlu0 %2012
      %2014 = vrot.lane.b32.xlu0 %v2002, 44
      %v2015 = vpop.permute.xlu0 %2014
      %2016 = vrot.lane.b32.xlu0 %v2003, 44
      %v2017 = vpop.permute.xlu0 %2016
      %2018 = vrot.lane.b32.xlu0 %v2004, 44
      %v2019 = vpop.permute.xlu0 %2018
      %2020 = vrot.lane.b32.xlu0 %v2005, 44
      %v2021 = vpop.permute.xlu0 %2020
      %vm2022 = vcmask 359424
      %v2023 = vsel %vm2022, %v2007, %v2009
      %v2024 = vsel %vm2022, %v2009, %v2011
      %v2025 = vsel %vm2022, %v2011, %v2013
      %v2026 = vsel %vm2022, %v2013, %v2015
      %v2027 = vsel %vm2022, %v2015, %v2017
      %v2028 = vsel %vm2022, %v2017, %v2019
      %v2029 = vsel %vm2022, %v2019, %v2021
      %2037 = vst [vmem:[#allocation2 + $0x508] sm:$0xff] %v2023
      %2038 = vst [vmem:[#allocation2 + $0x510] sm:$0xff] %v2024
      %2039 = vst [vmem:[#allocation2 + $0x518] sm:$0xff] %v2025
      %2040 = vst [vmem:[#allocation2 + $0x520] sm:$0xff] %v2026
      %2041 = vst [vmem:[#allocation2 + $0x528] sm:$0xff] %v2027
      %2042 = vst [vmem:[#allocation2 + $0x530] sm:$0xff] %v2028
      %2043 = vst [vmem:[#allocation2 + $0x538] sm:$0xff] %v2029
      %v2044 = vld [vmem:[%s192 + $0x4] sm:$0xff]
      %v2045 = vld [vmem:[%s192 + $0xc] sm:$0xff]
      %v2046 = vld [vmem:[%s192 + $0x14] sm:$0xff]
      %v2047 = vld [vmem:[%s192 + $0x1c] sm:$0xff]
      %v2048 = vld [vmem:[%s192 + $0x28] sm:$0xff]
      %v2049 = vld [vmem:[%s192 + $0x30] sm:$0xff]
      %v2050 = vld [vmem:[%s192 + $0x38] sm:$0xff]
      %v2051 = vld [vmem:[%s192 + $0x40] sm:$0xff]
      %v2060 = vunpack.c.l.b16 %v2044
      %v2061 = vunpack.c.h.b16 %v2044
      %v2062 = vunpack.c.l.b16 %v2045
      %v2063 = vunpack.c.h.b16 %v2045
      %v2064 = vunpack.c.l.b16 %v2046
      %v2065 = vunpack.c.h.b16 %v2046
      %v2066 = vunpack.c.l.b16 %v2047
      %v2067 = vunpack.c.h.b16 %v2047
      %v2068 = vunpack.c.l.b16 %v2048
      %v2069 = vunpack.c.h.b16 %v2048
      %v2070 = vunpack.c.l.b16 %v2049
      %v2071 = vunpack.c.h.b16 %v2049
      %v2072 = vunpack.c.l.b16 %v2050
      %v2073 = vunpack.c.h.b16 %v2050
      %v2074 = vunpack.c.l.b16 %v2051
      %v2075 = vunpack.c.h.b16 %v2051
      %v2076 = vpack.c.b16 %v2068, %v2060
      %v2077 = vpack.c.b16 %v2069, %v2061
      %v2078 = vpack.c.b16 %v2070, %v2062
      %v2079 = vpack.c.b16 %v2071, %v2063
      %v2080 = vpack.c.b16 %v2072, %v2064
      %v2081 = vpack.c.b16 %v2073, %v2065
      %v2082 = vpack.c.b16 %v2074, %v2066
      %v2083 = vpack.c.b16 %v2075, %v2067
      %2084 = vrot.lane.b32.xlu0 %v2076, 36
      %v2085 = vpop.permute.xlu0 %2084
      %2086 = vrot.lane.b32.xlu0 %v2077, 36
      %v2087 = vpop.permute.xlu0 %2086
      %2088 = vrot.lane.b32.xlu0 %v2078, 36
      %v2089 = vpop.permute.xlu0 %2088
      %2090 = vrot.lane.b32.xlu0 %v2079, 36
      %v2091 = vpop.permute.xlu0 %2090
      %2092 = vrot.lane.b32.xlu0 %v2080, 36
      %v2093 = vpop.permute.xlu0 %2092
      %2094 = vrot.lane.b32.xlu0 %v2081, 36
      %v2095 = vpop.permute.xlu0 %2094
      %2096 = vrot.lane.b32.xlu0 %v2082, 36
      %v2097 = vpop.permute.xlu0 %2096
      %2098 = vrot.lane.b32.xlu0 %v2083, 36
      %v2099 = vpop.permute.xlu0 %2098
      %vm2100 = vcmask 293888
      %v2101 = vsel %vm2100, %v2085, %v2087
      %v2102 = vsel %vm2100, %v2087, %v2089
      %v2103 = vsel %vm2100, %v2089, %v2091
      %v2104 = vsel %vm2100, %v2091, %v2093
      %v2105 = vsel %vm2100, %v2093, %v2095
      %v2106 = vsel %vm2100, %v2095, %v2097
      %v2107 = vsel %vm2100, %v2097, %v2099
      %2115 = vst [vmem:[#allocation2 + $0x540] sm:$0xff] %v2101
      %2116 = vst [vmem:[#allocation2 + $0x548] sm:$0xff] %v2102
      %2117 = vst [vmem:[#allocation2 + $0x550] sm:$0xff] %v2103
      %2118 = vst [vmem:[#allocation2 + $0x558] sm:$0xff] %v2104
      %2119 = vst [vmem:[#allocation2 + $0x560] sm:$0xff] %v2105
      %2120 = vst [vmem:[#allocation2 + $0x568] sm:$0xff] %v2106
      %2121 = vst [vmem:[#allocation2 + $0x570] sm:$0xff] %v2107
      %v2122 = vld [vmem:[%s192 + $0x4] sm:$0xff]
      %v2123 = vld [vmem:[%s192 + $0xc] sm:$0xff]
      %v2124 = vld [vmem:[%s192 + $0x14] sm:$0xff]
      %v2125 = vld [vmem:[%s192 + $0x1c] sm:$0xff]
      %v2126 = vld [vmem:[%s192 + $0x28] sm:$0xff]
      %v2127 = vld [vmem:[%s192 + $0x30] sm:$0xff]
      %v2128 = vld [vmem:[%s192 + $0x38] sm:$0xff]
      %v2129 = vld [vmem:[%s192 + $0x40] sm:$0xff]
      %v2138 = vunpack.c.l.b16 %v2122
      %v2139 = vunpack.c.h.b16 %v2122
      %v2140 = vunpack.c.l.b16 %v2123
      %v2141 = vunpack.c.h.b16 %v2123
      %v2142 = vunpack.c.l.b16 %v2124
      %v2143 = vunpack.c.h.b16 %v2124
      %v2144 = vunpack.c.l.b16 %v2125
      %v2145 = vunpack.c.h.b16 %v2125
      %v2146 = vunpack.c.l.b16 %v2126
      %v2147 = vunpack.c.h.b16 %v2126
      %v2148 = vunpack.c.l.b16 %v2127
      %v2149 = vunpack.c.h.b16 %v2127
      %v2150 = vunpack.c.l.b16 %v2128
      %v2151 = vunpack.c.h.b16 %v2128
      %v2152 = vunpack.c.l.b16 %v2129
      %v2153 = vunpack.c.h.b16 %v2129
      %v2154 = vpack.c.b16 %v2146, %v2138
      %v2155 = vpack.c.b16 %v2147, %v2139
      %v2156 = vpack.c.b16 %v2148, %v2140
      %v2157 = vpack.c.b16 %v2149, %v2141
      %v2158 = vpack.c.b16 %v2150, %v2142
      %v2159 = vpack.c.b16 %v2151, %v2143
      %v2160 = vpack.c.b16 %v2152, %v2144
      %v2161 = vpack.c.b16 %v2153, %v2145
      %2162 = vrot.lane.b32.xlu0 %v2154, 35
      %v2163 = vpop.permute.xlu0 %2162
      %2164 = vrot.lane.b32.xlu0 %v2155, 35
      %v2165 = vpop.permute.xlu0 %2164
      %2166 = vrot.lane.b32.xlu0 %v2156, 35
      %v2167 = vpop.permute.xlu0 %2166
      %2168 = vrot.lane.b32.xlu0 %v2157, 35
      %v2169 = vpop.permute.xlu0 %2168
      %2170 = vrot.lane.b32.xlu0 %v2158, 35
      %v2171 = vpop.permute.xlu0 %2170
      %2172 = vrot.lane.b32.xlu0 %v2159, 35
      %v2173 = vpop.permute.xlu0 %2172
      %2174 = vrot.lane.b32.xlu0 %v2160, 35
      %v2175 = vpop.permute.xlu0 %2174
      %2176 = vrot.lane.b32.xlu0 %v2161, 35
      %v2177 = vpop.permute.xlu0 %2176
      %vm2178 = vcmask 285696
      %v2179 = vsel %vm2178, %v2163, %v2165
      %v2180 = vsel %vm2178, %v2165, %v2167
      %v2181 = vsel %vm2178, %v2167, %v2169
      %v2182 = vsel %vm2178, %v2169, %v2171
      %v2183 = vsel %vm2178, %v2171, %v2173
      %v2184 = vsel %vm2178, %v2173, %v2175
      %v2185 = vsel %vm2178, %v2175, %v2177
      %2193 = vst [vmem:[#allocation2 + $0x578] sm:$0xff] %v2179
      %2194 = vst [vmem:[#allocation2 + $0x580] sm:$0xff] %v2180
      %2195 = vst [vmem:[#allocation2 + $0x588] sm:$0xff] %v2181
      %2196 = vst [vmem:[#allocation2 + $0x590] sm:$0xff] %v2182
      %2197 = vst [vmem:[#allocation2 + $0x598] sm:$0xff] %v2183
      %2198 = vst [vmem:[#allocation2 + $0x5a0] sm:$0xff] %v2184
      %2199 = vst [vmem:[#allocation2 + $0x5a8] sm:$0xff] %v2185
      %v2200 = vld [vmem:[%s192 + $0x4] sm:$0xff]
      %v2201 = vld [vmem:[%s192 + $0xc] sm:$0xff]
      %v2202 = vld [vmem:[%s192 + $0x14] sm:$0xff]
      %v2203 = vld [vmem:[%s192 + $0x1c] sm:$0xff]
      %v2204 = vld [vmem:[%s192 + $0x28] sm:$0xff]
      %v2205 = vld [vmem:[%s192 + $0x30] sm:$0xff]
      %v2206 = vld [vmem:[%s192 + $0x38] sm:$0xff]
      %v2207 = vld [vmem:[%s192 + $0x40] sm:$0xff]
      %v2216 = vunpack.c.l.b16 %v2200
      %v2217 = vunpack.c.h.b16 %v2200
      %v2218 = vunpack.c.l.b16 %v2201
      %v2219 = vunpack.c.h.b16 %v2201
      %v2220 = vunpack.c.l.b16 %v2202
      %v2221 = vunpack.c.h.b16 %v2202
      %v2222 = vunpack.c.l.b16 %v2203
      %v2223 = vunpack.c.h.b16 %v2203
      %v2224 = vunpack.c.l.b16 %v2204
      %v2225 = vunpack.c.h.b16 %v2204
      %v2226 = vunpack.c.l.b16 %v2205
      %v2227 = vunpack.c.h.b16 %v2205
      %v2228 = vunpack.c.l.b16 %v2206
      %v2229 = vunpack.c.h.b16 %v2206
      %v2230 = vunpack.c.l.b16 %v2207
      %v2231 = vunpack.c.h.b16 %v2207
      %v2232 = vpack.c.b16 %v2224, %v2216
      %v2233 = vpack.c.b16 %v2225, %v2217
      %v2234 = vpack.c.b16 %v2226, %v2218
      %v2235 = vpack.c.b16 %v2227, %v2219
      %v2236 = vpack.c.b16 %v2228, %v2220
      %v2237 = vpack.c.b16 %v2229, %v2221
      %v2238 = vpack.c.b16 %v2230, %v2222
      %v2239 = vpack.c.b16 %v2231, %v2223
      %2240 = vrot.lane.b32.xlu0 %v2232, 34
      %v2241 = vpop.permute.xlu0 %2240
      %2242 = vrot.lane.b32.xlu0 %v2233, 34
      %v2243 = vpop.permute.xlu0 %2242
      %2244 = vrot.lane.b32.xlu0 %v2234, 34
      %v2245 = vpop.permute.xlu0 %2244
      %2246 = vrot.lane.b32.xlu0 %v2235, 34
      %v2247 = vpop.permute.xlu0 %2246
      %2248 = vrot.lane.b32.xlu0 %v2236, 34
      %v2249 = vpop.permute.xlu0 %2248
      %2250 = vrot.lane.b32.xlu0 %v2237, 34
      %v2251 = vpop.permute.xlu0 %2250
      %2252 = vrot.lane.b32.xlu0 %v2238, 34
      %v2253 = vpop.permute.xlu0 %2252
      %2254 = vrot.lane.b32.xlu0 %v2239, 34
      %v2255 = vpop.permute.xlu0 %2254
      %vm2256 = vcmask 277504
      %v2257 = vsel %vm2256, %v2241, %v2243
      %v2258 = vsel %vm2256, %v2243, %v2245
      %v2259 = vsel %vm2256, %v2245, %v2247
      %v2260 = vsel %vm2256, %v2247, %v2249
      %v2261 = vsel %vm2256, %v2249, %v2251
      %v2262 = vsel %vm2256, %v2251, %v2253
      %v2263 = vsel %vm2256, %v2253, %v2255
      %2271 = vst [vmem:[#allocation2 + $0x5b0] sm:$0xff] %v2257
      %2272 = vst [vmem:[#allocation2 + $0x5b8] sm:$0xff] %v2258
      %2273 = vst [vmem:[#allocation2 + $0x5c0] sm:$0xff] %v2259
      %2274 = vst [vmem:[#allocation2 + $0x5c8] sm:$0xff] %v2260
      %2275 = vst [vmem:[#allocation2 + $0x5d0] sm:$0xff] %v2261
      %2276 = vst [vmem:[#allocation2 + $0x5d8] sm:$0xff] %v2262
      %2277 = vst [vmem:[#allocation2 + $0x5e0] sm:$0xff] %v2263
      %v2278 = vld [vmem:[%s1] sm:$0xff]
      %v2279 = vld [vmem:[%s1 + $0x8] sm:$0xff]
      %v2280 = vld [vmem:[%s1 + $0x10] sm:$0xff]
      %v2281 = vld [vmem:[%s1 + $0x18] sm:$0xff]
      %v2282 = vld [vmem:[%s1 + $0x20] sm:$0xff]
      %v2283 = vld [vmem:[%s1 + $0x28] sm:$0xff]
      %v2284 = vld [vmem:[%s1 + $0x30] sm:$0xff]
      %v2285 = vld [vmem:[%s1 + $0x38] sm:$0xff]
      %v2286 = vld [vmem:[#allocation2] sm:$0xff]
      %v2287 = vld [vmem:[#allocation2 + $0x8] sm:$0xff]
      %v2288 = vld [vmem:[#allocation2 + $0x10] sm:$0xff]
      %v2289 = vld [vmem:[#allocation2 + $0x18] sm:$0xff]
      %v2290 = vld [vmem:[#allocation2 + $0x20] sm:$0xff]
      %v2291 = vld [vmem:[#allocation2 + $0x28] sm:$0xff]
      %v2292 = vld [vmem:[#allocation2 + $0x30] sm:$0xff]
      %v2293 = vld [vmem:[#allocation2 + $0x38] sm:$0xff]
      %v2294 = vld [vmem:[#allocation2 + $0x40] sm:$0xff]
      %v2295 = vld [vmem:[#allocation2 + $0x48] sm:$0xff]
      %v2296 = vld [vmem:[#allocation2 + $0x50] sm:$0xff]
      %v2297 = vld [vmem:[#allocation2 + $0x58] sm:$0xff]
      %v2298 = vld [vmem:[#allocation2 + $0x60] sm:$0xff]
      %v2299 = vld [vmem:[#allocation2 + $0x68] sm:$0xff]
      %v2300 = vld [vmem:[#allocation2 + $0x70] sm:$0xff]
      %v2301 = vld [vmem:[#allocation2 + $0x78] sm:$0xff]
      %v2302 = vld [vmem:[#allocation2 + $0x80] sm:$0xff]
      %v2303 = vld [vmem:[#allocation2 + $0x88] sm:$0xff]
      %v2304 = vld [vmem:[#allocation2 + $0x90] sm:$0xff]
      %v2305 = vld [vmem:[#allocation2 + $0x98] sm:$0xff]
      %v2306 = vld [vmem:[#allocation2 + $0xa0] sm:$0xff]
      %v2307 = vld [vmem:[#allocation2 + $0xa8] sm:$0xff]
      %v2308 = vld [vmem:[#allocation2 + $0xb0] sm:$0xff]
      %v2309 = vld [vmem:[#allocation2 + $0xb8] sm:$0xff]
      %v2310 = vld [vmem:[#allocation2 + $0xc0] sm:$0xff]
      %v2311 = vld [vmem:[#allocation2 + $0xc8] sm:$0xff]
      %v2312 = vld [vmem:[#allocation2 + $0xd0] sm:$0xff]
      %v2313 = vld [vmem:[#allocation2 + $0xd8] sm:$0xff]
      %v2314 = vld [vmem:[#allocation2 + $0xe0] sm:$0xff]
      %v2315 = vld [vmem:[#allocation2 + $0xe8] sm:$0xff]
      %v2316 = vld [vmem:[#allocation2 + $0xf0] sm:$0xff]
      %v2317 = vld [vmem:[#allocation2 + $0xf8] sm:$0xff]
      %v2318 = vld [vmem:[#allocation2 + $0x100] sm:$0xff]
      %v2319 = vld [vmem:[#allocation2 + $0x108] sm:$0xff]
      %v2320 = vld [vmem:[#allocation2 + $0x110] sm:$0xff]
      %v2321 = vld [vmem:[#allocation2 + $0x118] sm:$0xff]
      %v2322 = vld [vmem:[#allocation2 + $0x120] sm:$0xff]
      %v2323 = vld [vmem:[#allocation2 + $0x128] sm:$0xff]
      %v2324 = vld [vmem:[#allocation2 + $0x130] sm:$0xff]
      %v2325 = vld [vmem:[#allocation2 + $0x138] sm:$0xff]
      %v2326 = vld [vmem:[#allocation2 + $0x140] sm:$0xff]
      %v2327 = vld [vmem:[#allocation2 + $0x148] sm:$0xff]
      %v2328 = vld [vmem:[#allocation2 + $0x150] sm:$0xff]
      %v2329 = vld [vmem:[#allocation2 + $0x158] sm:$0xff]
      %v2330 = vld [vmem:[#allocation2 + $0x160] sm:$0xff]
      %v2331 = vld [vmem:[#allocation2 + $0x168] sm:$0xff]
      %v2332 = vld [vmem:[#allocation2 + $0x170] sm:$0xff]
      %v2333 = vld [vmem:[#allocation2 + $0x178] sm:$0xff]
      %v2334 = vld [vmem:[#allocation2 + $0x180] sm:$0xff]
      %v2335 = vld [vmem:[#allocation2 + $0x188] sm:$0xff]
      %v2336 = vld [vmem:[#allocation2 + $0x190] sm:$0xff]
      %v2337 = vld [vmem:[#allocation2 + $0x198] sm:$0xff]
      %v2338 = vld [vmem:[#allocation2 + $0x1a0] sm:$0xff]
      %v2339 = vld [vmem:[#allocation2 + $0x1a8] sm:$0xff]
      %v2340 = vld [vmem:[#allocation2 + $0x1b0] sm:$0xff]
      %v2341 = vld [vmem:[#allocation2 + $0x1b8] sm:$0xff]
      %v2342 = vld [vmem:[#allocation2 + $0x1c0] sm:$0xff]
      %v2343 = vld [vmem:[#allocation2 + $0x1c8] sm:$0xff]
      %v2344 = vld [vmem:[#allocation2 + $0x1d0] sm:$0xff]
      %v2345 = vld [vmem:[#allocation2 + $0x1d8] sm:$0xff]
      %v2346 = vld [vmem:[#allocation2 + $0x1e0] sm:$0xff]
      %v2347 = vld [vmem:[#allocation2 + $0x1e8] sm:$0xff]
      %v2348 = vld [vmem:[#allocation2 + $0x1f0] sm:$0xff]
      %v2349 = vld [vmem:[#allocation2 + $0x1f8] sm:$0xff]
      %v2350 = vld [vmem:[#allocation2 + $0x200] sm:$0xff]
      %v2351 = vld [vmem:[#allocation2 + $0x208] sm:$0xff]
      %v2352 = vld [vmem:[#allocation2 + $0x210] sm:$0xff]
      %v2353 = vld [vmem:[#allocation2 + $0x218] sm:$0xff]
      %v2354 = vld [vmem:[#allocation2 + $0x220] sm:$0xff]
      %v2355 = vld [vmem:[#allocation2 + $0x228] sm:$0xff]
      %v2356 = vld [vmem:[#allocation2 + $0x230] sm:$0xff]
      %v2357 = vld [vmem:[#allocation2 + $0x238] sm:$0xff]
      %v2358 = vld [vmem:[#allocation2 + $0x240] sm:$0xff]
      %v2359 = vld [vmem:[#allocation2 + $0x248] sm:$0xff]
      %v2360 = vld [vmem:[#allocation2 + $0x250] sm:$0xff]
      %v2361 = vld [vmem:[#allocation2 + $0x258] sm:$0xff]
      %v2362 = vld [vmem:[#allocation2 + $0x260] sm:$0xff]
      %v2363 = vld [vmem:[#allocation2 + $0x268] sm:$0xff]
      %v2364 = vld [vmem:[#allocation2 + $0x270] sm:$0xff]
      %v2365 = vld [vmem:[#allocation2 + $0x278] sm:$0xff]
      %v2366 = vld [vmem:[#allocation2 + $0x280] sm:$0xff]
      %v2367 = vld [vmem:[#allocation2 + $0x288] sm:$0xff]
      %v2368 = vld [vmem:[#allocation2 + $0x290] sm:$0xff]
      %v2369 = vld [vmem:[#allocation2 + $0x298] sm:$0xff]
      %v2370 = vld [vmem:[#allocation2 + $0x2a0] sm:$0xff]
      %v2371 = vld [vmem:[#allocation2 + $0x2a8] sm:$0xff]
      %v2372 = vld [vmem:[#allocation2 + $0x2b0] sm:$0xff]
      %v2373 = vld [vmem:[#allocation2 + $0x2b8] sm:$0xff]
      %v2374 = vld [vmem:[#allocation2 + $0x2c0] sm:$0xff]
      %v2375 = vld [vmem:[#allocation2 + $0x2c8] sm:$0xff]
      %v2376 = vld [vmem:[#allocation2 + $0x2d0] sm:$0xff]
      %v2377 = vld [vmem:[#allocation2 + $0x2d8] sm:$0xff]
      %v2378 = vld [vmem:[#allocation2 + $0x2e0] sm:$0xff]
      %v2379 = vld [vmem:[#allocation2 + $0x2e8] sm:$0xff]
      %v2380 = vld [vmem:[#allocation2 + $0x2f0] sm:$0xff]
      %v2381 = vld [vmem:[#allocation2 + $0x2f8] sm:$0xff]
      %v2382 = vld [vmem:[#allocation2 + $0x300] sm:$0xff]
      %v2383 = vld [vmem:[#allocation2 + $0x308] sm:$0xff]
      %v2384 = vld [vmem:[#allocation2 + $0x310] sm:$0xff]
      %v2385 = vld [vmem:[#allocation2 + $0x318] sm:$0xff]
      %v2386 = vld [vmem:[#allocation2 + $0x320] sm:$0xff]
      %v2387 = vld [vmem:[#allocation2 + $0x328] sm:$0xff]
      %v2388 = vld [vmem:[#allocation2 + $0x330] sm:$0xff]
      %v2389 = vld [vmem:[#allocation2 + $0x338] sm:$0xff]
      %v2390 = vld [vmem:[#allocation2 + $0x340] sm:$0xff]
      %v2391 = vld [vmem:[#allocation2 + $0x348] sm:$0xff]
      %v2392 = vld [vmem:[#allocation2 + $0x350] sm:$0xff]
      %v2393 = vld [vmem:[#allocation2 + $0x358] sm:$0xff]
      %v2394 = vld [vmem:[#allocation2 + $0x360] sm:$0xff]
      %v2395 = vld [vmem:[#allocation2 + $0x368] sm:$0xff]
      %v2396 = vld [vmem:[#allocation2 + $0x370] sm:$0xff]
      %v2397 = vld [vmem:[#allocation2 + $0x378] sm:$0xff]
      %v2398 = vld [vmem:[#allocation2 + $0x380] sm:$0xff]
      %v2399 = vld [vmem:[#allocation2 + $0x388] sm:$0xff]
      %v2400 = vld [vmem:[#allocation2 + $0x390] sm:$0xff]
      %v2401 = vld [vmem:[#allocation2 + $0x398] sm:$0xff]
      %v2402 = vld [vmem:[#allocation2 + $0x3a0] sm:$0xff]
      %v2403 = vld [vmem:[#allocation2 + $0x3a8] sm:$0xff]
      %v2404 = vld [vmem:[#allocation2 + $0x3b0] sm:$0xff]
      %v2405 = vld [vmem:[#allocation2 + $0x3b8] sm:$0xff]
      %v2406 = vld [vmem:[#allocation2 + $0x3c0] sm:$0xff]
      %v2407 = vld [vmem:[#allocation2 + $0x3c8] sm:$0xff]
      %v2408 = vld [vmem:[#allocation2 + $0x3d0] sm:$0xff]
      %v2409 = vld [vmem:[#allocation2 + $0x3d8] sm:$0xff]
      %v2410 = vld [vmem:[#allocation2 + $0x3e0] sm:$0xff]
      %v2411 = vld [vmem:[#allocation2 + $0x3e8] sm:$0xff]
      %v2412 = vld [vmem:[#allocation2 + $0x3f0] sm:$0xff]
      %v2413 = vld [vmem:[#allocation2 + $0x3f8] sm:$0xff]
      %v2414 = vld [vmem:[#allocation2 + $0x400] sm:$0xff]
      %v2415 = vld [vmem:[#allocation2 + $0x408] sm:$0xff]
      %v2416 = vld [vmem:[#allocation2 + $0x410] sm:$0xff]
      %v2417 = vld [vmem:[#allocation2 + $0x418] sm:$0xff]
      %v2418 = vld [vmem:[#allocation2 + $0x420] sm:$0xff]
      %v2419 = vld [vmem:[#allocation2 + $0x428] sm:$0xff]
      %v2420 = vld [vmem:[#allocation2 + $0x430] sm:$0xff]
      %v2421 = vld [vmem:[#allocation2 + $0x438] sm:$0xff]
      %v2422 = vld [vmem:[#allocation2 + $0x440] sm:$0xff]
      %v2423 = vld [vmem:[#allocation2 + $0x448] sm:$0xff]
      %v2424 = vld [vmem:[#allocation2 + $0x450] sm:$0xff]
      %v2425 = vld [vmem:[#allocation2 + $0x458] sm:$0xff]
      %v2426 = vld [vmem:[#allocation2 + $0x460] sm:$0xff]
      %v2427 = vld [vmem:[#allocation2 + $0x468] sm:$0xff]
      %v2428 = vld [vmem:[#allocation2 + $0x470] sm:$0xff]
      %v2429 = vld [vmem:[#allocation2 + $0x478] sm:$0xff]
      %v2430 = vld [vmem:[#allocation2 + $0x480] sm:$0xff]
      %v2431 = vld [vmem:[#allocation2 + $0x488] sm:$0xff]
      %v2432 = vld [vmem:[#allocation2 + $0x490] sm:$0xff]
      %v2433 = vld [vmem:[#allocation2 + $0x498] sm:$0xff]
      %v2434 = vld [vmem:[#allocation2 + $0x4a0] sm:$0xff]
      %v2435 = vld [vmem:[#allocation2 + $0x4a8] sm:$0xff]
      %v2436 = vld [vmem:[#allocation2 + $0x4b0] sm:$0xff]
      %v2437 = vld [vmem:[#allocation2 + $0x4b8] sm:$0xff]
      %v2438 = vld [vmem:[#allocation2 + $0x4c0] sm:$0xff]
      %v2439 = vld [vmem:[#allocation2 + $0x4c8] sm:$0xff]
      %v2440 = vld [vmem:[#allocation2 + $0x4d0] sm:$0xff]
      %v2441 = vld [vmem:[#allocation2 + $0x4d8] sm:$0xff]
      %v2442 = vld [vmem:[#allocation2 + $0x4e0] sm:$0xff]
      %v2443 = vld [vmem:[#allocation2 + $0x4e8] sm:$0xff]
      %v2444 = vld [vmem:[#allocation2 + $0x4f0] sm:$0xff]
      %v2445 = vld [vmem:[#allocation2 + $0x4f8] sm:$0xff]
      %v2446 = vld [vmem:[#allocation2 + $0x500] sm:$0xff]
      %v2447 = vld [vmem:[#allocation2 + $0x508] sm:$0xff]
      %v2448 = vld [vmem:[#allocation2 + $0x510] sm:$0xff]
      %v2449 = vld [vmem:[#allocation2 + $0x518] sm:$0xff]
      %v2450 = vld [vmem:[#allocation2 + $0x520] sm:$0xff]
      %v2451 = vld [vmem:[#allocation2 + $0x528] sm:$0xff]
      %v2452 = vld [vmem:[#allocation2 + $0x530] sm:$0xff]
      %v2453 = vld [vmem:[#allocation2 + $0x538] sm:$0xff]
      %v2454 = vld [vmem:[#allocation2 + $0x540] sm:$0xff]
      %v2455 = vld [vmem:[#allocation2 + $0x548] sm:$0xff]
      %v2456 = vld [vmem:[#allocation2 + $0x550] sm:$0xff]
      %v2457 = vld [vmem:[#allocation2 + $0x558] sm:$0xff]
      %v2458 = vld [vmem:[#allocation2 + $0x560] sm:$0xff]
      %v2459 = vld [vmem:[#allocation2 + $0x568] sm:$0xff]
      %v2460 = vld [vmem:[#allocation2 + $0x570] sm:$0xff]
      %v2461 = vld [vmem:[#allocation2 + $0x578] sm:$0xff]
      %v2462 = vld [vmem:[#allocation2 + $0x580] sm:$0xff]
      %v2463 = vld [vmem:[#allocation2 + $0x588] sm:$0xff]
      %v2464 = vld [vmem:[#allocation2 + $0x590] sm:$0xff]
      %v2465 = vld [vmem:[#allocation2 + $0x598] sm:$0xff]
      %v2466 = vld [vmem:[#allocation2 + $0x5a0] sm:$0xff]
      %v2467 = vld [vmem:[#allocation2 + $0x5a8] sm:$0xff]
      %v2468 = vld [vmem:[#allocation2 + $0x5b0] sm:$0xff]
      %v2469 = vld [vmem:[#allocation2 + $0x5b8] sm:$0xff]
      %v2470 = vld [vmem:[#allocation2 + $0x5c0] sm:$0xff]
      %v2471 = vld [vmem:[#allocation2 + $0x5c8] sm:$0xff]
      %v2472 = vld [vmem:[#allocation2 + $0x5d0] sm:$0xff]
      %v2473 = vld [vmem:[#allocation2 + $0x5d8] sm:$0xff]
      %v2474 = vld [vmem:[#allocation2 + $0x5e0] sm:$0xff]
      %v2483 = vunpack.c.l.b16 %v2278
      %v2484 = vunpack.c.h.b16 %v2278
      %v2485 = vunpack.c.l.b16 %v2279
      %v2486 = vunpack.c.h.b16 %v2279
      %v2487 = vunpack.c.l.b16 %v2280
      %v2488 = vunpack.c.h.b16 %v2280
      %v2489 = vunpack.c.l.b16 %v2281
      %v2490 = vunpack.c.h.b16 %v2281
      %v2491 = vunpack.c.l.b16 %v2282
      %v2492 = vunpack.c.h.b16 %v2282
      %v2493 = vunpack.c.l.b16 %v2283
      %v2494 = vunpack.c.h.b16 %v2283
      %v2495 = vunpack.c.l.b16 %v2284
      %v2496 = vunpack.c.h.b16 %v2284
      %v2497 = vunpack.c.l.b16 %v2285
      %v2498 = vunpack.c.h.b16 %v2285
      %v2499 = vpack.c.b16 %v2487, %v2483
      %v2500 = vpack.c.b16 %v2488, %v2484
      %v2501 = vpack.c.b16 %v2489, %v2485
      %v2502 = vpack.c.b16 %v2490, %v2486
      %v2503 = vpack.c.b16 %v2495, %v2491
      %v2504 = vpack.c.b16 %v2496, %v2492
      %v2505 = vpack.c.b16 %v2497, %v2493
      %v2506 = vpack.c.b16 %v2498, %v2494
      %vm2513 = vcmask 392192
      %v2515 = vsel %vm2513, %v2502, 0
      %v2518 = vsel %vm2513, %v2506, 0
      %2520 = vmatprep.subr.bf16.mxu0 %v2287
      %2521 = vmatpush1.bf16.msra.mxu0 %v2286
      %2522 = vmatprep.subr.bf16.mxu0 %v2294
      %2523 = vmatpush1.bf16.msra.mxu0 %v2293
      %2524 = vmatprep.subr.bf16.mxu0 %v2301
      %2525 = vmatpush1.bf16.msra.mxu0 %v2300
      %2526 = vmatprep.subr.bf16.mxu0 %v2308
      %2527 = vmatpush1.bf16.msra.mxu0 %v2307
      %2528 = vmatprep.subr.bf16.mxu0 %v2315
      %2529 = vmatpush1.bf16.msra.mxu0 %v2314
      %2530 = vmatprep.subr.bf16.mxu0 %v2322
      %2531 = vmatpush1.bf16.msra.mxu0 %v2321
      %2532 = vmatprep.subr.bf16.mxu0 %v2329
      %2533 = vmatpush1.bf16.msra.mxu0 %v2328
      %2534 = vmatprep.subr.bf16.mxu0 %v2336
      %2535 = vmatpush1.bf16.msra.mxu0 %v2335
      %2536 = vmatprep.subr.bf16.mxu0 %v2343
      %2537 = vmatpush1.bf16.msra.mxu0 %v2342
      %2538 = vmatprep.subr.bf16.mxu0 %v2350
      %2539 = vmatpush1.bf16.msra.mxu0 %v2349
      %2540 = vmatprep.subr.bf16.mxu0 %v2357
      %2541 = vmatpush1.bf16.msra.mxu0 %v2356
      %2542 = vmatprep.subr.bf16.mxu0 %v2364
      %2543 = vmatpush1.bf16.msra.mxu0 %v2363
      %2544 = vmatprep.subr.bf16.mxu0 %v2371
      %2545 = vmatpush1.bf16.msra.mxu0 %v2370
      %2546 = vmatprep.subr.bf16.mxu0 %v2378
      %2547 = vmatpush1.bf16.msra.mxu0 %v2377
      %2548 = vmatprep.subr.bf16.mxu0 %v2385
      %2549 = vmatpush1.bf16.msra.mxu0 %v2384
      %2550 = vmatprep.subr.bf16.mxu0 %v2392
      %2551 = vmatpush1.bf16.msra.mxu0 %v2391
      %2552 = vmatprep.mubr.bf16.mxu0 %v2500
      %2553 = vmatmul.mubr.bf16.gmra.mrb[0].mxu0 %v2499
      %v2554 = vpop.f32.mrb[0].mxu0
      %v2555 = vadd.f32 0.0, %v2554
      %v2556 = vpop.f32.mrb[0].mxu0
      %v2557 = vadd.f32 0.0, %v2556
      %v2558 = vpop.f32.mrb[0].mxu0
      %v2559 = vadd.f32 0.0, %v2558
      %v2560 = vpop.f32.mrb[0].mxu0
      %v2561 = vadd.f32 0.0, %v2560
      %2562 = vmatprep.mubr.bf16.mxu0 %v2504
      %2563 = vmatmul.mubr.bf16.gmra.mrb[0].mxu0 %v2503
      %v2564 = vpop.f32.mrb[0].mxu0
      %v2565 = vadd.f32 0.0, %v2564
      %v2566 = vpop.f32.mrb[0].mxu0
      %v2567 = vadd.f32 0.0, %v2566
      %v2568 = vpop.f32.mrb[0].mxu0
      %v2569 = vadd.f32 0.0, %v2568
      %v2570 = vpop.f32.mrb[0].mxu0
      %v2571 = vadd.f32 0.0, %v2570
      %2572 = vdwg.mxu0
      %2573 = vmatprep.subr.bf16.mxu0 %v2399
      %2574 = vmatpush1.bf16.msra.mxu0 %v2398
      %2575 = vmatprep.subr.bf16.mxu0 %v2406
      %2576 = vmatpush1.bf16.msra.mxu0 %v2405
      %2577 = vmatprep.subr.bf16.mxu0 %v2413
      %2578 = vmatpush1.bf16.msra.mxu0 %v2412
      %2579 = vmatprep.subr.bf16.mxu0 %v2420
      %2580 = vmatpush1.bf16.msra.mxu0 %v2419
      %2581 = vmatprep.subr.bf16.mxu0 %v2427
      %2582 = vmatpush1.bf16.msra.mxu0 %v2426
      %2583 = vmatprep.subr.bf16.mxu0 %v2434
      %2584 = vmatpush1.bf16.msra.mxu0 %v2433
      %2585 = vmatprep.subr.bf16.mxu0 %v2441
      %2586 = vmatpush1.bf16.msra.mxu0 %v2440
      %2587 = vmatprep.subr.bf16.mxu0 %v2448
      %2588 = vmatpush1.bf16.msra.mxu0 %v2447
      %2589 = vmatprep.subr.bf16.mxu0 %v2455
      %2590 = vmatpush1.bf16.msra.mxu0 %v2454
      %2591 = vmatprep.subr.bf16.mxu0 %v2462
      %2592 = vmatpush1.bf16.msra.mxu0 %v2461
      %2593 = vmatprep.subr.bf16.mxu0 %v2469
      %2594 = vmatpush1.bf16.msra.mxu0 %v2468
      %2595 = vmatprep.subr.bf16.mxu0 0
      %2596 = vmatpush1.bf16.msra.mxu0 0
      %2597 = vmatprep.subr.bf16.mxu0 0
      %2598 = vmatpush1.bf16.msra.mxu0 0
      %2599 = vmatprep.subr.bf16.mxu0 0
      %2600 = vmatpush1.bf16.msra.mxu0 0
      %2601 = vmatprep.subr.bf16.mxu0 0
      %2602 = vmatpush1.bf16.msra.mxu0 0
      %2603 = vmatprep.subr.bf16.mxu0 0
      %2604 = vmatpush1.bf16.msra.mxu0 0
      %2605 = vmatprep.mubr.bf16.mxu0 %v2515
      %2606 = vmatmul.mubr.bf16.gmra.mrb[0].mxu0 %v2501
      %v2607 = vpop.f32.mrb[0].mxu0
      %v2608 = vadd.f32 %v2555, %v2607
      %v2609 = vpop.f32.mrb[0].mxu0
      %v2610 = vadd.f32 %v2557, %v2609
      %v2611 = vpop.f32.mrb[0].mxu0
      %v2612 = vadd.f32 %v2559, %v2611
      %v2613 = vpop.f32.mrb[0].mxu0
      %v2614 = vadd.f32 %v2561, %v2613
      %2615 = vmatprep.mubr.bf16.mxu0 %v2518
      %2616 = vmatmul.mubr.bf16.gmra.mrb[0].mxu0 %v2505
      %v2617 = vpop.f32.mrb[0].mxu0
      %v2618 = vadd.f32 %v2565, %v2617
      %v2619 = vpop.f32.mrb[0].mxu0
      %v2620 = vadd.f32 %v2567, %v2619
      %v2621 = vpop.f32.mrb[0].mxu0
      %v2622 = vadd.f32 %v2569, %v2621
      %v2623 = vpop.f32.mrb[0].mxu0
      %v2624 = vadd.f32 %v2571, %v2623
      %2625 = vdwg.mxu0
      %2626 = vmatprep.subr.bf16.mxu0 %v2289
      %2627 = vmatpush1.bf16.msra.mxu0 %v2288
      %2628 = vmatprep.subr.bf16.mxu0 %v2296
      %2629 = vmatpush1.bf16.msra.mxu0 %v2295
      %2630 = vmatprep.subr.bf16.mxu0 %v2303
      %2631 = vmatpush1.bf16.msra.mxu0 %v2302
      %2632 = vmatprep.subr.bf16.mxu0 %v2310
      %2633 = vmatpush1.bf16.msra.mxu0 %v2309
      %2634 = vmatprep.subr.bf16.mxu0 %v2317
      %2635 = vmatpush1.bf16.msra.mxu0 %v2316
      %2636 = vmatprep.subr.bf16.mxu0 %v2324
      %2637 = vmatpush1.bf16.msra.mxu0 %v2323
      %2638 = vmatprep.subr.bf16.mxu0 %v2331
      %2639 = vmatpush1.bf16.msra.mxu0 %v2330
      %2640 = vmatprep.subr.bf16.mxu0 %v2338
      %2641 = vmatpush1.bf16.msra.mxu0 %v2337
      %2642 = vmatprep.subr.bf16.mxu0 %v2345
      %2643 = vmatpush1.bf16.msra.mxu0 %v2344
      %2644 = vmatprep.subr.bf16.mxu0 %v2352
      %2645 = vmatpush1.bf16.msra.mxu0 %v2351
      %2646 = vmatprep.subr.bf16.mxu0 %v2359
      %2647 = vmatpush1.bf16.msra.mxu0 %v2358
      %2648 = vmatprep.subr.bf16.mxu0 %v2366
      %2649 = vmatpush1.bf16.msra.mxu0 %v2365
      %2650 = vmatprep.subr.bf16.mxu0 %v2373
      %2651 = vmatpush1.bf16.msra.mxu0 %v2372
      %2652 = vmatprep.subr.bf16.mxu0 %v2380
      %2653 = vmatpush1.bf16.msra.mxu0 %v2379
      %2654 = vmatprep.subr.bf16.mxu0 %v2387
      %2655 = vmatpush1.bf16.msra.mxu0 %v2386
      %2656 = vmatprep.subr.bf16.mxu0 %v2394
      %2657 = vmatpush1.bf16.msra.mxu0 %v2393
      %2658 = vmatprep.mubr.bf16.mxu0 %v2500
      %2659 = vmatmul.mubr.bf16.gmra.mrb[0].mxu0 %v2499
      %v2660 = vpop.f32.mrb[0].mxu0
      %v2661 = vadd.f32 0.0, %v2660
      %v2662 = vpop.f32.mrb[0].mxu0
      %v2663 = vadd.f32 0.0, %v2662
      %v2664 = vpop.f32.mrb[0].mxu0
      %v2665 = vadd.f32 0.0, %v2664
      %v2666 = vpop.f32.mrb[0].mxu0
      %v2667 = vadd.f32 0.0, %v2666
      %2668 = vmatprep.mubr.bf16.mxu0 %v2504
      %2669 = vmatmul.mubr.bf16.gmra.mrb[0].mxu0 %v2503
      %v2670 = vpop.f32.mrb[0].mxu0
      %v2671 = vadd.f32 0.0, %v2670
      %v2672 = vpop.f32.mrb[0].mxu0
      %v2673 = vadd.f32 0.0, %v2672
      %v2674 = vpop.f32.mrb[0].mxu0
      %v2675 = vadd.f32 0.0, %v2674
      %v2676 = vpop.f32.mrb[0].mxu0
      %v2677 = vadd.f32 0.0, %v2676
      %2678 = vdwg.mxu0
      %2679 = vmatprep.subr.bf16.mxu0 %v2401
      %2680 = vmatpush1.bf16.msra.mxu0 %v2400
      %2681 = vmatprep.subr.bf16.mxu0 %v2408
      %2682 = vmatpush1.bf16.msra.mxu0 %v2407
      %2683 = vmatprep.subr.bf16.mxu0 %v2415
      %2684 = vmatpush1.bf16.msra.mxu0 %v2414
      %2685 = vmatprep.subr.bf16.mxu0 %v2422
      %2686 = vmatpush1.bf16.msra.mxu0 %v2421
      %2687 = vmatprep.subr.bf16.mxu0 %v2429
      %2688 = vmatpush1.bf16.msra.mxu0 %v2428
      %2689 = vmatprep.subr.bf16.mxu0 %v2436
      %2690 = vmatpush1.bf16.msra.mxu0 %v2435
      %2691 = vmatprep.subr.bf16.mxu0 %v2443
      %2692 = vmatpush1.bf16.msra.mxu0 %v2442
      %2693 = vmatprep.subr.bf16.mxu0 %v2450
      %2694 = vmatpush1.bf16.msra.mxu0 %v2449
      %2695 = vmatprep.subr.bf16.mxu0 %v2457
      %2696 = vmatpush1.bf16.msra.mxu0 %v2456
      %2697 = vmatprep.subr.bf16.mxu0 %v2464
      %2698 = vmatpush1.bf16.msra.mxu0 %v2463
      %2699 = vmatprep.subr.bf16.mxu0 %v2471
      %2700 = vmatpush1.bf16.msra.mxu0 %v2470
      %2701 = vmatprep.subr.bf16.mxu0 0
      %2702 = vmatpush1.bf16.msra.mxu0 0
      %2703 = vmatprep.subr.bf16.mxu0 0
      %2704 = vmatpush1.bf16.msra.mxu0 0
      %2705 = vmatprep.subr.bf16.mxu0 0
      %2706 = vmatpush1.bf16.msra.mxu0 0
      %2707 = vmatprep.subr.bf16.mxu0 0
      %2708 = vmatpush1.bf16.msra.mxu0 0
      %2709 = vmatprep.subr.bf16.mxu0 0
      %2710 = vmatpush1.bf16.msra.mxu0 0
      %2711 = vmatprep.mubr.bf16.mxu0 %v2515
      %2712 = vmatmul.mubr.bf16.gmra.mrb[0].mxu0 %v2501
      %v2713 = vpop.f32.mrb[0].mxu0
      %v2714 = vadd.f32 %v2661, %v2713
      %v2715 = vpop.f32.mrb[0].mxu0
      %v2716 = vadd.f32 %v2663, %v2715
      %v2717 = vpop.f32.mrb[0].mxu0
      %v2718 = vadd.f32 %v2665, %v2717
      %v2719 = vpop.f32.mrb[0].mxu0
      %v2720 = vadd.f32 %v2667, %v2719
      %2721 = vmatprep.mubr.bf16.mxu0 %v2518
      %2722 = vmatmul.mubr.bf16.gmra.mrb[0].mxu0 %v2505
      %v2723 = vpop.f32.mrb[0].mxu0
      %v2724 = vadd.f32 %v2671, %v2723
      %v2725 = vpop.f32.mrb[0].mxu0
      %v2726 = vadd.f32 %v2673, %v2725
      %v2727 = vpop.f32.mrb[0].mxu0
      %v2728 = vadd.f32 %v2675, %v2727
      %v2729 = vpop.f32.mrb[0].mxu0
      %v2730 = vadd.f32 %v2677, %v2729
      %2731 = vdwg.mxu0
      %2732 = vmatprep.subr.bf16.mxu0 %v2291
      %2733 = vmatpush1.bf16.msra.mxu0 %v2290
      %2734 = vmatprep.subr.bf16.mxu0 %v2298
      %2735 = vmatpush1.bf16.msra.mxu0 %v2297
      %2736 = vmatprep.subr.bf16.mxu0 %v2305
      %2737 = vmatpush1.bf16.msra.mxu0 %v2304
      %2738 = vmatprep.subr.bf16.mxu0 %v2312
      %2739 = vmatpush1.bf16.msra.mxu0 %v2311
      %2740 = vmatprep.subr.bf16.mxu0 %v2319
      %2741 = vmatpush1.bf16.msra.mxu0 %v2318
      %2742 = vmatprep.subr.bf16.mxu0 %v2326
      %2743 = vmatpush1.bf16.msra.mxu0 %v2325
      %2744 = vmatprep.subr.bf16.mxu0 %v2333
      %2745 = vmatpush1.bf16.msra.mxu0 %v2332
      %2746 = vmatprep.subr.bf16.mxu0 %v2340
      %2747 = vmatpush1.bf16.msra.mxu0 %v2339
      %2748 = vmatprep.subr.bf16.mxu0 %v2347
      %2749 = vmatpush1.bf16.msra.mxu0 %v2346
      %2750 = vmatprep.subr.bf16.mxu0 %v2354
      %2751 = vmatpush1.bf16.msra.mxu0 %v2353
      %2752 = vmatprep.subr.bf16.mxu0 %v2361
      %2753 = vmatpush1.bf16.msra.mxu0 %v2360
      %2754 = vmatprep.subr.bf16.mxu0 %v2368
      %2755 = vmatpush1.bf16.msra.mxu0 %v2367
      %2756 = vmatprep.subr.bf16.mxu0 %v2375
      %2757 = vmatpush1.bf16.msra.mxu0 %v2374
      %2758 = vmatprep.subr.bf16.mxu0 %v2382
      %2759 = vmatpush1.bf16.msra.mxu0 %v2381
      %2760 = vmatprep.subr.bf16.mxu0 %v2389
      %2761 = vmatpush1.bf16.msra.mxu0 %v2388
      %2762 = vmatprep.subr.bf16.mxu0 %v2396
      %2763 = vmatpush1.bf16.msra.mxu0 %v2395
      %2764 = vmatprep.mubr.bf16.mxu0 %v2500
      %2765 = vmatmul.mubr.bf16.gmra.mrb[0].mxu0 %v2499
      %v2766 = vpop.f32.mrb[0].mxu0
      %v2767 = vadd.f32 0.0, %v2766
      %v2768 = vpop.f32.mrb[0].mxu0
      %v2769 = vadd.f32 0.0, %v2768
      %v2770 = vpop.f32.mrb[0].mxu0
      %v2771 = vadd.f32 0.0, %v2770
      %v2772 = vpop.f32.mrb[0].mxu0
      %v2773 = vadd.f32 0.0, %v2772
      %2774 = vmatprep.mubr.bf16.mxu0 %v2504
      %2775 = vmatmul.mubr.bf16.gmra.mrb[0].mxu0 %v2503
      %v2776 = vpop.f32.mrb[0].mxu0
      %v2777 = vadd.f32 0.0, %v2776
      %v2778 = vpop.f32.mrb[0].mxu0
      %v2779 = vadd.f32 0.0, %v2778
      %v2780 = vpop.f32.mrb[0].mxu0
      %v2781 = vadd.f32 0.0, %v2780
      %v2782 = vpop.f32.mrb[0].mxu0
      %v2783 = vadd.f32 0.0, %v2782
      %2784 = vdwg.mxu0
      %2785 = vmatprep.subr.bf16.mxu0 %v2403
      %2786 = vmatpush1.bf16.msra.mxu0 %v2402
      %2787 = vmatprep.subr.bf16.mxu0 %v2410
      %2788 = vmatpush1.bf16.msra.mxu0 %v2409
      %2789 = vmatprep.subr.bf16.mxu0 %v2417
      %2790 = vmatpush1.bf16.msra.mxu0 %v2416
      %2791 = vmatprep.subr.bf16.mxu0 %v2424
      %2792 = vmatpush1.bf16.msra.mxu0 %v2423
      %2793 = vmatprep.subr.bf16.mxu0 %v2431
      %2794 = vmatpush1.bf16.msra.mxu0 %v2430
      %2795 = vmatprep.subr.bf16.mxu0 %v2438
      %2796 = vmatpush1.bf16.msra.mxu0 %v2437
      %2797 = vmatprep.subr.bf16.mxu0 %v2445
      %2798 = vmatpush1.bf16.msra.mxu0 %v2444
      %2799 = vmatprep.subr.bf16.mxu0 %v2452
      %2800 = vmatpush1.bf16.msra.mxu0 %v2451
      %2801 = vmatprep.subr.bf16.mxu0 %v2459
      %2802 = vmatpush1.bf16.msra.mxu0 %v2458
      %2803 = vmatprep.subr.bf16.mxu0 %v2466
      %2804 = vmatpush1.bf16.msra.mxu0 %v2465
      %2805 = vmatprep.subr.bf16.mxu0 %v2473
      %2806 = vmatpush1.bf16.msra.mxu0 %v2472
      %2807 = vmatprep.subr.bf16.mxu0 0
      %2808 = vmatpush1.bf16.msra.mxu0 0
      %2809 = vmatprep.subr.bf16.mxu0 0
      %2810 = vmatpush1.bf16.msra.mxu0 0
      %2811 = vmatprep.subr.bf16.mxu0 0
      %2812 = vmatpush1.bf16.msra.mxu0 0
      %2813 = vmatprep.subr.bf16.mxu0 0
      %2814 = vmatpush1.bf16.msra.mxu0 0
      %2815 = vmatprep.subr.bf16.mxu0 0
      %2816 = vmatpush1.bf16.msra.mxu0 0
      %2817 = vmatprep.mubr.bf16.mxu0 %v2515
      %2818 = vmatmul.mubr.bf16.gmra.mrb[0].mxu0 %v2501
      %v2819 = vpop.f32.mrb[0].mxu0
      %v2820 = vadd.f32 %v2767, %v2819
      %v2821 = vpop.f32.mrb[0].mxu0
      %v2822 = vadd.f32 %v2769, %v2821
      %v2823 = vpop.f32.mrb[0].mxu0
      %v2824 = vadd.f32 %v2771, %v2823
      %v2825 = vpop.f32.mrb[0].mxu0
      %v2826 = vadd.f32 %v2773, %v2825
      %2827 = vmatprep.mubr.bf16.mxu0 %v2518
      %2828 = vmatmul.mubr.bf16.gmra.mrb[0].mxu0 %v2505
      %v2829 = vpop.f32.mrb[0].mxu0
      %v2830 = vadd.f32 %v2777, %v2829
      %v2831 = vpop.f32.mrb[0].mxu0
      %v2832 = vadd.f32 %v2779, %v2831
      %v2833 = vpop.f32.mrb[0].mxu0
      %v2834 = vadd.f32 %v2781, %v2833
      %v2835 = vpop.f32.mrb[0].mxu0
      %v2836 = vadd.f32 %v2783, %v2835
      %2837 = vdwg.mxu0
      %2838 = vmatprep.subr.bf16.mxu0 0
      %2839 = vmatpush1.bf16.msra.mxu0 %v2292
      %2840 = vmatprep.subr.bf16.mxu0 0
      %2841 = vmatpush1.bf16.msra.mxu0 %v2299
      %2842 = vmatprep.subr.bf16.mxu0 0
      %2843 = vmatpush1.bf16.msra.mxu0 %v2306
      %2844 = vmatprep.subr.bf16.mxu0 0
      %2845 = vmatpush1.bf16.msra.mxu0 %v2313
      %2846 = vmatprep.subr.bf16.mxu0 0
      %2847 = vmatpush1.bf16.msra.mxu0 %v2320
      %2848 = vmatprep.subr.bf16.mxu0 0
      %2849 = vmatpush1.bf16.msra.mxu0 %v2327
      %2850 = vmatprep.subr.bf16.mxu0 0
      %2851 = vmatpush1.bf16.msra.mxu0 %v2334
      %2852 = vmatprep.subr.bf16.mxu0 0
      %2853 = vmatpush1.bf16.msra.mxu0 %v2341
      %2854 = vmatprep.subr.bf16.mxu0 0
      %2855 = vmatpush1.bf16.msra.mxu0 %v2348
      %2856 = vmatprep.subr.bf16.mxu0 0
      %2857 = vmatpush1.bf16.msra.mxu0 %v2355
      %2858 = vmatprep.subr.bf16.mxu0 0
      %2859 = vmatpush1.bf16.msra.mxu0 %v2362
      %2860 = vmatprep.subr.bf16.mxu0 0
      %2861 = vmatpush1.bf16.msra.mxu0 %v2369
      %2862 = vmatprep.subr.bf16.mxu0 0
      %2863 = vmatpush1.bf16.msra.mxu0 %v2376
      %2864 = vmatprep.subr.bf16.mxu0 0
      %2865 = vmatpush1.bf16.msra.mxu0 %v2383
      %2866 = vmatprep.subr.bf16.mxu0 0
      %2867 = vmatpush1.bf16.msra.mxu0 %v2390
      %2868 = vmatprep.subr.bf16.mxu0 0
      %2869 = vmatpush1.bf16.msra.mxu0 %v2397
      %2870 = vmatprep.mubr.bf16.mxu0 %v2500
      %2871 = vmatmul.mubr.bf16.gmra.mrb[0].mxu0 %v2499
      %v2872 = vpop.f32.mrb[0].mxu0
      %v2873 = vadd.f32 0.0, %v2872
      %v2874 = vpop.f32.mrb[0].mxu0
      %v2875 = vpop.f32.mrb[0].mxu0
      %v2876 = vadd.f32 0.0, %v2875
      %v2877 = vpop.f32.mrb[0].mxu0
      %2878 = vmatprep.mubr.bf16.mxu0 %v2504
      %2879 = vmatmul.mubr.bf16.gmra.mrb[0].mxu0 %v2503
      %v2880 = vpop.f32.mrb[0].mxu0
      %v2881 = vadd.f32 0.0, %v2880
      %v2882 = vpop.f32.mrb[0].mxu0
      %v2883 = vpop.f32.mrb[0].mxu0
      %v2884 = vadd.f32 0.0, %v2883
      %v2885 = vpop.f32.mrb[0].mxu0
      %2886 = vdwg.mxu0
      %2887 = vmatprep.subr.bf16.mxu0 0
      %2888 = vmatpush1.bf16.msra.mxu0 %v2404
      %2889 = vmatprep.subr.bf16.mxu0 0
      %2890 = vmatpush1.bf16.msra.mxu0 %v2411
      %2891 = vmatprep.subr.bf16.mxu0 0
      %2892 = vmatpush1.bf16.msra.mxu0 %v2418
      %2893 = vmatprep.subr.bf16.mxu0 0
      %2894 = vmatpush1.bf16.msra.mxu0 %v2425
      %2895 = vmatprep.subr.bf16.mxu0 0
      %2896 = vmatpush1.bf16.msra.mxu0 %v2432
      %2897 = vmatprep.subr.bf16.mxu0 0
      %2898 = vmatpush1.bf16.msra.mxu0 %v2439
      %2899 = vmatprep.subr.bf16.mxu0 0
      %2900 = vmatpush1.bf16.msra.mxu0 %v2446
      %2901 = vmatprep.subr.bf16.mxu0 0
      %2902 = vmatpush1.bf16.msra.mxu0 %v2453
      %2903 = vmatprep.subr.bf16.mxu0 0
      %2904 = vmatpush1.bf16.msra.mxu0 %v2460
      %2905 = vmatprep.subr.bf16.mxu0 0
      %2906 = vmatpush1.bf16.msra.mxu0 %v2467
      %2907 = vmatprep.subr.bf16.mxu0 0
      %2908 = vmatpush1.bf16.msra.mxu0 %v2474
      %2909 = vmatprep.subr.bf16.mxu0 0
      %2910 = vmatpush1.bf16.msra.mxu0 0
      %2911 = vmatprep.subr.bf16.mxu0 0
      %2912 = vmatpush1.bf16.msra.mxu0 0
      %2913 = vmatprep.subr.bf16.mxu0 0
      %2914 = vmatpush1.bf16.msra.mxu0 0
      %2915 = vmatprep.subr.bf16.mxu0 0
      %2916 = vmatpush1.bf16.msra.mxu0 0
      %2917 = vmatprep.subr.bf16.mxu0 0
      %2918 = vmatpush1.bf16.msra.mxu0 0
      %2919 = vmatprep.mubr.bf16.mxu0 %v2515
      %2920 = vmatmul.mubr.bf16.gmra.mrb[0].mxu0 %v2501
      %v2921 = vpop.f32.mrb[0].mxu0
      %v2922 = vadd.f32 %v2873, %v2921
      %v2923 = vpop.f32.mrb[0].mxu0
      %v2924 = vpop.f32.mrb[0].mxu0
      %v2925 = vadd.f32 %v2876, %v2924
      %v2926 = vpop.f32.mrb[0].mxu0
      %2927 = vmatprep.mubr.bf16.mxu0 %v2518
      %2928 = vmatmul.mubr.bf16.gmra.mrb[0].mxu0 %v2505
      %v2929 = vpop.f32.mrb[0].mxu0
      %v2930 = vadd.f32 %v2881, %v2929
      %v2931 = vpop.f32.mrb[0].mxu0
      %v2932 = vpop.f32.mrb[0].mxu0
      %v2933 = vadd.f32 %v2884, %v2932
      %v2934 = vpop.f32.mrb[0].mxu0
      %2935 = vdwg.mxu0
      %v2936 = vld [vmem:[%s2] sm:$0xff]
      %v2937 = vld [vmem:[%s2 + $0x8] sm:$0xff]
      %v2938 = vld [vmem:[%s2 + $0x10] sm:$0xff]
      %v2939 = vld [vmem:[%s2 + $0x18] sm:$0xff]
      %2941 = vset.pattern.permute.xlu0 0
      %2942 = vperm.xlu0 %2941, %v2936
      %v2943 = vpop.permute.xlu0 %2942
      %2946 = vset.pattern.permute.xlu0 0
      %2947 = vperm.xlu0 %2946, %v2937
      %v2948 = vpop.permute.xlu0 %2947
      %2951 = vset.pattern.permute.xlu0 0
      %2952 = vperm.xlu0 %2951, %v2938
      %v2953 = vpop.permute.xlu0 %2952
      %2956 = vset.pattern.permute.xlu0 0
      %2957 = vperm.xlu0 %2956, %v2939
      %v2958 = vpop.permute.xlu0 %2957
      %v2960 = vmul.f32 %v2608, %v2943
      %v2961 = vmul.f32 %v2610, %v2943
      %v2962 = vmul.f32 %v2714, %v2943
      %v2963 = vmul.f32 %v2716, %v2943
      %v2964 = vmul.f32 %v2820, %v2943
      %v2965 = vmul.f32 %v2822, %v2943
      %v2966 = vmul.f32 %v2922, %v2943
      %v2967 = vmul.f32 %v2612, %v2948
      %v2968 = vmul.f32 %v2614, %v2948
      %v2969 = vmul.f32 %v2718, %v2948
      %v2970 = vmul.f32 %v2720, %v2948
      %v2971 = vmul.f32 %v2824, %v2948
      %v2972 = vmul.f32 %v2826, %v2948
      %v2973 = vmul.f32 %v2925, %v2948
      %v2974 = vmul.f32 %v2618, %v2953
      %v2975 = vmul.f32 %v2620, %v2953
      %v2976 = vmul.f32 %v2724, %v2953
      %v2977 = vmul.f32 %v2726, %v2953
      %v2978 = vmul.f32 %v2830, %v2953
      %v2979 = vmul.f32 %v2832, %v2953
      %v2980 = vmul.f32 %v2930, %v2953
      %v2981 = vmul.f32 %v2622, %v2958
      %v2982 = vmul.f32 %v2624, %v2958
      %v2983 = vmul.f32 %v2728, %v2958
      %v2984 = vmul.f32 %v2730, %v2958
      %v2985 = vmul.f32 %v2834, %v2958
      %v2986 = vmul.f32 %v2836, %v2958
      %v2987 = vmul.f32 %v2933, %v2958
      %v2988 = vld [vmem:[%s3] sm:$0xff]
      %v2989 = vld [vmem:[%s3 + $0x8] sm:$0xff]
      %v2990 = vld [vmem:[%s3 + $0x10] sm:$0xff]
      %v2991 = vld [vmem:[%s3 + $0x18] sm:$0xff]
      %2993 = vset.pattern.permute.xlu0 0
      %2994 = vperm.xlu0 %2993, %v2988
      %v2995 = vpop.permute.xlu0 %2994
      %2998 = vset.pattern.permute.xlu0 0
      %2999 = vperm.xlu0 %2998, %v2989
      %v3000 = vpop.permute.xlu0 %2999
      %3003 = vset.pattern.permute.xlu0 0
      %3004 = vperm.xlu0 %3003, %v2990
      %v3005 = vpop.permute.xlu0 %3004
      %3008 = vset.pattern.permute.xlu0 0
      %3009 = vperm.xlu0 %3008, %v2991
      %v3010 = vpop.permute.xlu0 %3009
      %v3012 = vadd.f32 %v2960, %v2995
      %v3013 = vadd.f32 %v2961, %v2995
      %v3014 = vadd.f32 %v2962, %v2995
      %v3015 = vadd.f32 %v2963, %v2995
      %v3016 = vadd.f32 %v2964, %v2995
      %v3017 = vadd.f32 %v2965, %v2995
      %v3018 = vadd.f32 %v2966, %v2995
      %v3019 = vadd.f32 %v2967, %v3000
      %v3020 = vadd.f32 %v2968, %v3000
      %v3021 = vadd.f32 %v2969, %v3000
      %v3022 = vadd.f32 %v2970, %v3000
      %v3023 = vadd.f32 %v2971, %v3000
      %v3024 = vadd.f32 %v2972, %v3000
      %v3025 = vadd.f32 %v2973, %v3000
      %v3026 = vadd.f32 %v2974, %v3005
      %v3027 = vadd.f32 %v2975, %v3005
      %v3028 = vadd.f32 %v2976, %v3005
      %v3029 = vadd.f32 %v2977, %v3005
      %v3030 = vadd.f32 %v2978, %v3005
      %v3031 = vadd.f32 %v2979, %v3005
      %v3032 = vadd.f32 %v2980, %v3005
      %v3033 = vadd.f32 %v2981, %v3010
      %v3034 = vadd.f32 %v2982, %v3010
      %v3035 = vadd.f32 %v2983, %v3010
      %v3036 = vadd.f32 %v2984, %v3010
      %v3037 = vadd.f32 %v2985, %v3010
      %v3038 = vadd.f32 %v2986, %v3010
      %v3039 = vadd.f32 %v2987, %v3010
      %v3040 = vmax.f32 %v3012, 0.0
      %v3041 = vmax.f32 %v3013, 0.0
      %v3042 = vmax.f32 %v3014, 0.0
      %v3043 = vmax.f32 %v3015, 0.0
      %v3044 = vmax.f32 %v3016, 0.0
      %v3045 = vmax.f32 %v3017, 0.0
      %v3046 = vmax.f32 %v3018, 0.0
      %v3047 = vmax.f32 %v3019, 0.0
      %v3048 = vmax.f32 %v3020, 0.0
      %v3049 = vmax.f32 %v3021, 0.0
      %v3050 = vmax.f32 %v3022, 0.0
      %v3051 = vmax.f32 %v3023, 0.0
      %v3052 = vmax.f32 %v3024, 0.0
      %v3053 = vmax.f32 %v3025, 0.0
      %v3054 = vmax.f32 %v3026, 0.0
      %v3055 = vmax.f32 %v3027, 0.0
      %v3056 = vmax.f32 %v3028, 0.0
      %v3057 = vmax.f32 %v3029, 0.0
      %v3058 = vmax.f32 %v3030, 0.0
      %v3059 = vmax.f32 %v3031, 0.0
      %v3060 = vmax.f32 %v3032, 0.0
      %v3061 = vmax.f32 %v3033, 0.0
      %v3062 = vmax.f32 %v3034, 0.0
      %v3063 = vmax.f32 %v3035, 0.0
      %v3064 = vmax.f32 %v3036, 0.0
      %v3065 = vmax.f32 %v3037, 0.0
      %v3066 = vmax.f32 %v3038, 0.0
      %v3067 = vmax.f32 %v3039, 0.0
      %3068 = vst [vmem:[%s197] sm:$0xff] %v3040
      %3069 = vst [vmem:[%s197 + $0x8] sm:$0xff] %v3041
      %3070 = vst [vmem:[%s197 + $0x10] sm:$0xff] %v3042
      %3071 = vst [vmem:[%s197 + $0x18] sm:$0xff] %v3043
      %3072 = vst [vmem:[%s197 + $0x20] sm:$0xff] %v3044
      %3073 = vst [vmem:[%s197 + $0x28] sm:$0xff] %v3045
      %3074 = vst [vmem:[%s197 + $0x30] sm:$0xff] %v3046
      %3075 = vst [vmem:[%s197 + $0x38] sm:$0xff] %v3047
      %3076 = vst [vmem:[%s197 + $0x40] sm:$0xff] %v3048
      %3077 = vst [vmem:[%s197 + $0x48] sm:$0xff] %v3049
      %3078 = vst [vmem:[%s197 + $0x50] sm:$0xff] %v3050
      %3079 = vst [vmem:[%s197 + $0x58] sm:$0xff] %v3051
      %3080 = vst [vmem:[%s197 + $0x60] sm:$0xff] %v3052
      %3081 = vst [vmem:[%s197 + $0x68] sm:$0xff] %v3053
      %3082 = vst [vmem:[%s197 + $0x70] sm:$0xff] %v3054
      %3083 = vst [vmem:[%s197 + $0x78] sm:$0xff] %v3055
      %3084 = vst [vmem:[%s197 + $0x80] sm:$0xff] %v3056
      %3085 = vst [vmem:[%s197 + $0x88] sm:$0xff] %v3057
      %3086 = vst [vmem:[%s197 + $0x90] sm:$0xff] %v3058
      %3087 = vst [vmem:[%s197 + $0x98] sm:$0xff] %v3059
      %3088 = vst [vmem:[%s197 + $0xa0] sm:$0xff] %v3060
      %3089 = vst [vmem:[%s197 + $0xa8] sm:$0xff] %v3061
      %3090 = vst [vmem:[%s197 + $0xb0] sm:$0xff] %v3062
      %3091 = vst [vmem:[%s197 + $0xb8] sm:$0xff] %v3063
      %3092 = vst [vmem:[%s197 + $0xc0] sm:$0xff] %v3064
      %3093 = vst [vmem:[%s197 + $0xc8] sm:$0xff] %v3065
      %3094 = vst [vmem:[%s197 + $0xd0] sm:$0xff] %v3066
      %3095 = vst [vmem:[%s197 + $0xd8] sm:$0xff] %v3067
      %p3096 = scmp.lt.s32.totalorder %s15, 1
      %s3097 = scalar_select %p3096, %s15, 1
      %s3098 = smul.addr %s3097, 28
      %s3099 = smul.addr %s3098, 8
      %s3100 = scalar_lea.vmem %s4, %s3099
      // Predicated region
      $region37: #{deconv3d_bn_relu.1} parent=35 // pred_check
        %p3101 = pneg %p122
      $region38: #{deconv3d_bn_relu.1} parent=35 // pred_check_branch
        %3103 = sbr.rel (%p3101) target = $region40
      $region39: #{deconv3d_bn_relu.1} parent=35 // pred_region
        _
      $region40: #{deconv3d_bn_relu.1} parent=35 // pred_fallthru
        _
    $region36: #{deconv3d_bn_relu.1} parent=5 // pred_fallthru
      _
    %p3104 = scmp.le.s32.totalorder 2, %s10
    // Predicated region
    $region41: #{deconv3d_bn_relu.1} parent=5 // pred_check
      %p3105 = pneg %p3104
    $region42: #{deconv3d_bn_relu.1} parent=5 // pred_check_branch
      %3107 = sbr.rel (%p3105) target = $region44
    $region43: #{deconv3d_bn_relu.1} parent=5 // pred_region
      %s3108 = ssub.s32 %s10, 2
      // Predicated region
      $region45: #{deconv3d_bn_relu.1} parent=43 // pred_check
        %p3109 = pneg %p128
      $region46: #{deconv3d_bn_relu.1} parent=43 // pred_check_branch
        %3111 = sbr.rel (%p3109) target = $region48
      $region47: #{deconv3d_bn_relu.1} parent=43 // pred_region
        %p3112 = scmp.lt.s32.totalorder %s16, 1
        %s3113 = scalar_select %p3112, %s16, 1
        %s3114 = smul.addr %s3113, 28
        %s3115 = smul.addr %s3114, 8
        %s3116 = scalar_lea.vmem %s4, %s3115
      $region48: #{deconv3d_bn_relu.1} parent=43 // pred_fallthru
        _
    $region44: #{deconv3d_bn_relu.1} parent=5 // pred_fallthru
      _
  $region6: #{deconv3d_bn_relu.1} parent=0 // loop_footer
    %s14 = sadd.s32 1, %s10
  $region7: #{deconv3d_bn_relu.1} parent=0 // loop_footer_branch
    %9 = sbr.rel target = $region3
  $region8: #{deconv3d_bn_relu.1} parent=0 // loop_exit
    _

</llo_original>
